<compile_context>
chip_gen: v5e
topology: v5e:2x2
jax: 0.10.0
libtpu: 0.0.40
codegen_flags: <defaults>
</compile_context>

<pallas_src>
import jax
import jax.numpy as jnp
from jax.experimental import pallas as pl
from jax.experimental.pallas import tpu as pltpu

F = 768          # per-input feature width hardcoded by the module
OUT_PAD = 128    # lane-dense padded width for the 2-wide logits
TM_MAX = 256     # batch tile rows (fits scoped VMEM on v5e/v6e/v7x)


def _round_up(n, m):
    return ((n + m - 1) // m) * m


# ---- fused 2-layer MLP (Linear -> ReLU -> Linear), one kernel per feature_type ----
# Feature construction is folded into the first matmul:
#   ft0: a = [x, y]       -> h = x@W1x + y@W1y
#   ft1: a = [x, y, x*y]  -> h = x@W1x + y@W1y + (x*y)@W1p   (VPU mul hides under MXU)
#   ft2: a = x*y          -> h = (x*y)@W1

def _kernel_ft0(x_ref, y_ref, w1x_ref, w1y_ref, b1_ref, w2_ref, b2_ref, o_ref):
    h = jnp.dot(x_ref[...], w1x_ref[...], preferred_element_type=jnp.float32)
    h += jnp.dot(y_ref[...], w1y_ref[...], preferred_element_type=jnp.float32)
    h = jnp.maximum(h + b1_ref[...], 0.0)
    o_ref[...] = (jnp.dot(h, w2_ref[...], preferred_element_type=jnp.float32)
                  + b2_ref[...]).astype(o_ref.dtype)


def _kernel_ft1(x_ref, y_ref, w1x_ref, w1y_ref, w1p_ref, b1_ref, w2_ref, b2_ref, o_ref):
    x = x_ref[...]
    y = y_ref[...]
    h = jnp.dot(x, w1x_ref[...], preferred_element_type=jnp.float32)
    h += jnp.dot(y, w1y_ref[...], preferred_element_type=jnp.float32)
    h += jnp.dot(x * y, w1p_ref[...], preferred_element_type=jnp.float32)
    h = jnp.maximum(h + b1_ref[...], 0.0)
    o_ref[...] = (jnp.dot(h, w2_ref[...], preferred_element_type=jnp.float32)
                  + b2_ref[...]).astype(o_ref.dtype)


def _kernel_ft2(x_ref, y_ref, w1_ref, b1_ref, w2_ref, b2_ref, o_ref):
    h = jnp.dot(x_ref[...] * y_ref[...], w1_ref[...], preferred_element_type=jnp.float32)
    h = jnp.maximum(h + b1_ref[...], 0.0)
    o_ref[...] = (jnp.dot(h, w2_ref[...], preferred_element_type=jnp.float32)
                  + b2_ref[...]).astype(o_ref.dtype)


def net_forward(x, y, params, feature_type=0):
    """Net.forward (num_layer=2, act='ReLU') as a single fused Pallas kernel."""
    if feature_type not in (0, 1, 2):
        raise ValueError("feature_type must be 0, 1 or 2")
    w1, b1, w2, b2 = params
    in_size = F * (2, 3, 1)[feature_type]
    hidden = w1.shape[1]
    out_size = w2.shape[1]
    assert w1.shape[0] == in_size and x.shape[1] == F and y.shape[1] == F

    # Split W1 into per-input (768, hidden) chunks so the concat happens on the MXU.
    w1_chunks = tuple(w1[i * F:(i + 1) * F] for i in range(in_size // F))
    b1 = b1.reshape(1, hidden)

    # Pad the 2-wide logits to a lane-dense 128 columns (unmasked stores).
    w2p = jnp.zeros((hidden, OUT_PAD), w2.dtype).at[:, :out_size].set(w2)
    b2p = jnp.zeros((1, OUT_PAD), b2.dtype).at[:, :out_size].set(b2.reshape(1, out_size))

    # Batch tiling (pad B to a sublane-friendly multiple of the tile).
    B = x.shape[0]
    TM = min(TM_MAX, _round_up(B, 8))
    B_pad = _round_up(B, TM)
    if B_pad != B:
        pad = ((0, B_pad - B), (0, 0))
        x = jnp.pad(x, pad)
        y = jnp.pad(y, pad)
    grid = (B_pad // TM,)

    act_spec = pl.BlockSpec((TM, F), lambda i: (i, 0))
    res_spec = lambda s: pl.BlockSpec(s, lambda i: (0, 0))   # VMEM-resident weights
    in_specs = ([act_spec, act_spec]
                + [res_spec((F, hidden)) for _ in w1_chunks]
                + [res_spec((1, hidden)),
                   res_spec((hidden, OUT_PAD)),
                   res_spec((1, OUT_PAD))])
    out_spec = pl.BlockSpec((TM, OUT_PAD), lambda i: (i, 0))

    kernel = (_kernel_ft0, _kernel_ft1, _kernel_ft2)[feature_type]

    flops = 2 * B_pad * hidden * (in_size + OUT_PAD)
    bytes_accessed = 4 * (2 * B_pad * F + in_size * hidden + hidden * OUT_PAD
                          + hidden + OUT_PAD + B_pad * OUT_PAD)

    out = pl.pallas_call(
        kernel,
        out_shape=jax.ShapeDtypeStruct((B_pad, OUT_PAD), jnp.float32),
        grid=grid,
        in_specs=in_specs,
        out_specs=out_spec,
        compiler_params=pltpu.CompilerParams(
            dimension_semantics=("parallel",),      # megacore-shard batch tiles on v7x
            vmem_limit_bytes=32 * 1024 * 1024,      # double-buffered tiles + resident W1
        ),
        cost_estimate=pl.CostEstimate(flops=flops, transcendentals=0,
                                      bytes_accessed=bytes_accessed),
    )(x, y, *w1_chunks, b1, w2p, b2p)

    return out[:B, :out_size]


def init_params(key, in_size=2 * F, hidden_size=768, out_size=2):
    """Deterministic init mimicking torch.nn.Linear (uniform +/- 1/sqrt(fan_in))."""
    k1, k2, k3, k4 = jax.random.split(key, 4)
    lim1 = 1.0 / jnp.sqrt(jnp.float32(in_size))
    lim2 = 1.0 / jnp.sqrt(jnp.float32(hidden_size))
    w1 = jax.random.uniform(k1, (in_size, hidden_size), jnp.float32, -lim1, lim1)
    b1 = jax.random.uniform(k2, (1, hidden_size), jnp.float32, -lim1, lim1)
    w2 = jax.random.uniform(k3, (hidden_size, out_size), jnp.float32, -lim2, lim2)
    b2 = jax.random.uniform(k4, (1, out_size), jnp.float32, -lim2, lim2)
    return w1, b1, w2, b2


# TODO(synk): non-default configs (act='GLU', num_layer != 2) are not implemented;
# only the module's default 2-layer ReLU path is fused here.

if __name__ == "__main__":
    key = jax.random.PRNGKey(0)
    kx, ky, kp = jax.random.split(key, 3)

    B = 8
    x = jax.random.normal(kx, (B, F), jnp.float32)
    y = jax.random.normal(ky, (B, F), jnp.float32)

    # Check all three feature types at small batch.
    for ft in (0, 1, 2):
        in_size = F * (2, 3, 1)[ft]
        params = init_params(jax.random.fold_in(kp, ft), in_size=in_size,
                             hidden_size=768, out_size=2)
        out = jax.block_until_ready(net_forward(x, y, params, feature_type=ft))

        if ft == 0:
            a = jnp.concatenate((x, y), axis=1)
        elif ft == 1:
            a = jnp.concatenate((x, y, x * y), axis=1)
        else:
            a = x * y
        w1, b1, w2, b2 = params
        ref = jnp.maximum(a @ w1 + b1, 0.0) @ w2 + b2
        assert out.shape == (B, 2)
        assert jnp.allclose(out, ref, atol=2e-4, rtol=2e-4), f"mismatch ft={ft}"

    # Exercise the batch-tiled grid path with a non-tile-multiple batch.
    B2 = 300
    x2 = jax.random.normal(jax.random.fold_in(kx, 1), (B2, F), jnp.float32)
    y2 = jax.random.normal(jax.random.fold_in(ky, 1), (B2, F), jnp.float32)
    params = init_params(kp, in_size=2 * F, hidden_size=768, out_size=2)
    out2 = jax.block_until_ready(net_forward(x2, y2, params, feature_type=0))
    a2 = jnp.concatenate((x2, y2), axis=1)
    w1, b1, w2, b2 = params
    ref2 = jnp.maximum(a2 @ w1 + b1, 0.0) @ w2 + b2
    assert out2.shape == (B2, 2)
    assert jnp.allclose(out2, ref2, atol=2e-4, rtol=2e-4)

    print("KERNEL_OK")
</pallas_src>

<mosaic_0001>
module attributes {stable_mosaic.version = 11 : i64} {
  func.func @_kernel_ft0(%arg0: i32, %arg1: memref<8x768xf32, #tpu.memory_space<vmem>>, %arg2: memref<8x768xf32, #tpu.memory_space<vmem>>, %arg3: memref<768x768xf32, #tpu.memory_space<vmem>>, %arg4: memref<768x768xf32, #tpu.memory_space<vmem>>, %arg5: memref<1x768xf32, #tpu.memory_space<vmem>>, %arg6: memref<768x128xf32, #tpu.memory_space<vmem>>, %arg7: memref<1x128xf32, #tpu.memory_space<vmem>>, %arg8: memref<8x128xf32, #tpu.memory_space<vmem>>) attributes {dimension_semantics = [#tpu.dimension_semantics<parallel>], iteration_bounds = array<i64: 1>, scalar_prefetch = 0 : i64, scratch_operands = 0 : i64, tpu.core_type = #tpu.core_type<tc>, window_params = [{transform_indices = @transform_0, window_bounds = array<i64: 8, 768>}, {transform_indices = @transform_1, window_bounds = array<i64: 8, 768>}, {pipeline_mode = #tpu.pipeline_mode<synchronous>, transform_indices = @transform_2, window_bounds = array<i64: 768, 768>}, {pipeline_mode = #tpu.pipeline_mode<synchronous>, transform_indices = @transform_3, window_bounds = array<i64: 768, 768>}, {pipeline_mode = #tpu.pipeline_mode<synchronous>, transform_indices = @transform_4, window_bounds = array<i64: 1, 768>}, {pipeline_mode = #tpu.pipeline_mode<synchronous>, transform_indices = @transform_5, window_bounds = array<i64: 768, 128>}, {pipeline_mode = #tpu.pipeline_mode<synchronous>, transform_indices = @transform_6, window_bounds = array<i64: 1, 128>}, {transform_indices = @transform_7, window_bounds = array<i64: 8, 128>}]} {
    %c0 = arith.constant 0 : index
    %c0_0 = arith.constant 0 : index
    %0 = vector.load %arg1[%c0, %c0_0] : memref<8x768xf32, #tpu.memory_space<vmem>>, vector<8x768xf32>
    %c0_1 = arith.constant 0 : index
    %c0_2 = arith.constant 0 : index
    %1 = vector.load %arg3[%c0_1, %c0_2] : memref<768x768xf32, #tpu.memory_space<vmem>>, vector<768x768xf32>
    %cst = arith.constant dense<0.000000e+00> : vector<8x768xf32>
    %2 = tpu.matmul %0, %1, %cst {dimension_numbers = #tpu.dot_dimension_numbers<[1], [0], [0], [1], [0, 0, 1, 1], [], []>} : vector<8x768xf32>, vector<768x768xf32>, vector<8x768xf32> -> vector<8x768xf32>
    %c0_3 = arith.constant 0 : index
    %c0_4 = arith.constant 0 : index
    %3 = vector.load %arg2[%c0_3, %c0_4] : memref<8x768xf32, #tpu.memory_space<vmem>>, vector<8x768xf32>
    %c0_5 = arith.constant 0 : index
    %c0_6 = arith.constant 0 : index
    %4 = vector.load %arg4[%c0_5, %c0_6] : memref<768x768xf32, #tpu.memory_space<vmem>>, vector<768x768xf32>
    %cst_7 = arith.constant dense<0.000000e+00> : vector<8x768xf32>
    %5 = tpu.matmul %3, %4, %cst_7 {dimension_numbers = #tpu.dot_dimension_numbers<[1], [0], [0], [1], [0, 0, 1, 1], [], []>} : vector<8x768xf32>, vector<768x768xf32>, vector<8x768xf32> -> vector<8x768xf32>
    %6 = arith.addf %2, %5 : vector<8x768xf32>
    %c0_8 = arith.constant 0 : index
    %c0_9 = arith.constant 0 : index
    %7 = vector.load %arg5[%c0_8, %c0_9] : memref<1x768xf32, #tpu.memory_space<vmem>>, vector<1x768xf32>
    %8 = vector.broadcast %7 : vector<1x768xf32> to vector<8x768xf32>
    %9 = arith.addf %6, %8 : vector<8x768xf32>
    %cst_10 = arith.constant 0.000000e+00 : f32
    %10 = vector.broadcast %cst_10 : f32 to vector<8x768xf32>
    %11 = arith.maximumf %9, %10 : vector<8x768xf32>
    %c0_11 = arith.constant 0 : index
    %c0_12 = arith.constant 0 : index
    %12 = vector.load %arg6[%c0_11, %c0_12] : memref<768x128xf32, #tpu.memory_space<vmem>>, vector<768x128xf32>
    %cst_13 = arith.constant dense<0.000000e+00> : vector<8x128xf32>
    %13 = tpu.matmul %11, %12, %cst_13 {dimension_numbers = #tpu.dot_dimension_numbers<[1], [0], [0], [1], [0, 0, 1, 1], [], []>} : vector<8x768xf32>, vector<768x128xf32>, vector<8x128xf32> -> vector<8x128xf32>
    %c0_14 = arith.constant 0 : index
    %c0_15 = arith.constant 0 : index
    %14 = vector.load %arg7[%c0_14, %c0_15] : memref<1x128xf32, #tpu.memory_space<vmem>>, vector<1x128xf32>
    %15 = vector.broadcast %14 : vector<1x128xf32> to vector<8x128xf32>
    %16 = arith.addf %13, %15 : vector<8x128xf32>
    %c0_16 = arith.constant 0 : index
    %c0_17 = arith.constant 0 : index
    %17 = vector.load %arg8[%c0_16, %c0_17] : memref<8x128xf32, #tpu.memory_space<vmem>>, vector<8x128xf32>
    tpu.vector_store %arg8[%c0_16, %c0_17], %16 {strides = array<i32>} : memref<8x128xf32, #tpu.memory_space<vmem>>, vector<8x128xf32>,
    return
  }
  func.func @transform_0(%arg0: i32) -> (i32, i32) {
    %c0_i32 = arith.constant 0 : i32
    %c0_i32_0 = arith.constant 0 : i32
    return %arg0, %c0_i32 : i32, i32
  }
  func.func @transform_1(%arg0: i32) -> (i32, i32) {
    %c0_i32 = arith.constant 0 : i32
    %c0_i32_0 = arith.constant 0 : i32
    return %arg0, %c0_i32 : i32, i32
  }
  func.func @transform_2(%arg0: i32) -> (i32, i32) {
    %c0_i32 = arith.constant 0 : i32
    %c0_i32_0 = arith.constant 0 : i32
    %c0_i32_1 = arith.constant 0 : i32
    return %c0_i32, %c0_i32_0 : i32, i32
  }
  func.func @transform_3(%arg0: i32) -> (i32, i32) {
    %c0_i32 = arith.constant 0 : i32
    %c0_i32_0 = arith.constant 0 : i32
    %c0_i32_1 = arith.constant 0 : i32
    return %c0_i32, %c0_i32_0 : i32, i32
  }
  func.func @transform_4(%arg0: i32) -> (i32, i32) {
    %c0_i32 = arith.constant 0 : i32
    %c0_i32_0 = arith.constant 0 : i32
    %c0_i32_1 = arith.constant 0 : i32
    return %c0_i32, %c0_i32_0 : i32, i32
  }
  func.func @transform_5(%arg0: i32) -> (i32, i32) {
    %c0_i32 = arith.constant 0 : i32
    %c0_i32_0 = arith.constant 0 : i32
    %c0_i32_1 = arith.constant 0 : i32
    return %c0_i32, %c0_i32_0 : i32, i32
  }
  func.func @transform_6(%arg0: i32) -> (i32, i32) {
    %c0_i32 = arith.constant 0 : i32
    %c0_i32_0 = arith.constant 0 : i32
    %c0_i32_1 = arith.constant 0 : i32
    return %c0_i32, %c0_i32_0 : i32, i32
  }
  func.func @transform_7(%arg0: i32) -> (i32, i32) {
    %c0_i32 = arith.constant 0 : i32
    %c0_i32_0 = arith.constant 0 : i32
    return %arg0, %c0_i32 : i32, i32
  }
}

</mosaic_0001>

<llo_original>
// kernel: tpu_custom_call.1
$region0: #{tpu_custom_call.1}
  #allocation0 [shape = 'u32[]', space=smem, size = 0x4, offset = 0x4, fixed_abs, tag = 'smem constant byte address 0x4 - core index']
  #allocation1 [shape = 'u32[72,128]{1,0:T(1,128)}', space=vmem, size = 0x9000, scoped, tag = 'internal scratch']
  %s0 = inlined_call_operand.hbm [shape: f32[8,768], index: 0, kind: input, shape index: {}]
  %s1 = inlined_call_operand.hbm [shape: f32[8,768], index: 1, kind: input, shape index: {}]
  %s2 = inlined_call_operand.hbm [shape: f32[768,768], index: 2, kind: input, shape index: {}]
  %s3 = inlined_call_operand.hbm [shape: f32[768,768], index: 3, kind: input, shape index: {}]
  %s4 = inlined_call_operand.hbm [shape: f32[1,768], index: 4, kind: input, shape index: {}]
  %s5 = inlined_call_operand.hbm [shape: f32[768,128], index: 5, kind: input, shape index: {}]
  %s6 = inlined_call_operand.hbm [shape: f32[1,128], index: 6, kind: input, shape index: {}]
  %s7 = inlined_call_operand.hbm [shape: f32[8,128], index: 7, kind: output, shape index: {}]
  %s8 = sld [smem:[#allocation0]]
  $region66: #{tpu_custom_call.1} parent=0
    _
  %s10 = ssub.s32 1, %s8
  %s11 = scalar_select 0, %s10, %s8
  $region1: #{tpu_custom_call.1} parent=0
    #allocation2 [shape = 'u8[24576]{0}', space=vmem, size = 0x6000, scoped, tag = 'input window, operand 0, single buffered']
    #allocation3 [shape = 's32[1]{0}', space=sflag, size = 0x4, scoped, tag = 'scoped memory for tpu_custom_call.1']
    #allocation4 [shape = 's32[1]{0}', space=sflag, size = 0x4, scoped, tag = 'scoped memory for tpu_custom_call.1']
    #allocation5 [shape = 'u8[24576]{0}', space=vmem, size = 0x6000, scoped, tag = 'input window, operand 1, single buffered']
    #allocation6 [shape = 's32[1]{0}', space=sflag, size = 0x4, scoped, tag = 'scoped memory for tpu_custom_call.1']
    #allocation7 [shape = 'u8[2359296]{0}', space=vmem, size = 0x240000, scoped, tag = 'input window, operand 2, single buffered']
    #allocation8 [shape = 'u8[2359296]{0}', space=vmem, size = 0x240000, scoped, tag = 'input window, operand 3, single buffered']
    #allocation9 [shape = 's32[1]{0}', space=sflag, size = 0x4, scoped, tag = 'scoped memory for tpu_custom_call.1']
    #allocation10 [shape = 'u8[3072]{0}', space=vmem, size = 0xc00, scoped, tag = 'input window, operand 4, single buffered']
    #allocation11 [shape = 'u8[393216]{0}', space=vmem, size = 0x60000, scoped, tag = 'input window, operand 5, single buffered']
    #allocation12 [shape = 's32[1]{0}', space=sflag, size = 0x4, scoped, tag = 'scoped memory for tpu_custom_call.1']
    #allocation13 [shape = 'u8[512]{0}', space=vmem, size = 0x400, scoped, tag = 'input window, operand 6, single buffered']
    #allocation14 [shape = 'u8[4096]{0}', space=vmem, size = 0x1000, scoped, tag = 'output window, operand 0, single buffered']
    %12 = vsyncpa [#allocation3], 0
    %13 = vsyncpa [#allocation6], 0
    %14 = vsyncpa [#allocation9], 0
    %15 = vsyncpa [#allocation12], 0
    %16 = vsyncpa [#allocation4], 0
    // Predicated region
    $region2: #{tpu_custom_call.1} parent=1 // pred_check
      _
    $region3: #{tpu_custom_call.1} parent=1 // pred_check_branch
      %18 = sbr.rel (0) target = $region5
    $region4: #{tpu_custom_call.1} parent=1 // pred_region
      %20 = vsyncadd [#allocation3], 0
      %s22 = sshll.u32 %s0, 4
      %s23 = int_to_ptr.hbm [resolvable:$true] %s22
      %s24 = sshll.u32 [#allocation2], 4
      %s25 = int_to_ptr.vmem [resolvable:$true] %s24
      %27 = dma.hbm_to_vmem [thread:$0]  %s23, 768, %s25, [#allocation3]
    $region5: #{tpu_custom_call.1} parent=1 // pred_fallthru
      _
    // Predicated region
    $region6: #{tpu_custom_call.1} parent=1 // pred_check
      _
    $region7: #{tpu_custom_call.1} parent=1 // pred_check_branch
      %29 = sbr.rel (0) target = $region9
    $region8: #{tpu_custom_call.1} parent=1 // pred_region
      %31 = vsyncadd [#allocation6], 0
      %s33 = sshll.u32 %s1, 4
      %s34 = int_to_ptr.hbm [resolvable:$true] %s33
      %s35 = sshll.u32 [#allocation5], 4
      %s36 = int_to_ptr.vmem [resolvable:$true] %s35
      %38 = dma.hbm_to_vmem [thread:$0]  %s34, 768, %s36, [#allocation6]
    $region9: #{tpu_custom_call.1} parent=1 // pred_fallthru
      _
    // Predicated region
    $region10: #{tpu_custom_call.1} parent=1 // pred_check
      _
    $region11: #{tpu_custom_call.1} parent=1 // pred_check_branch
      %40 = sbr.rel (0) target = $region13
    $region12: #{tpu_custom_call.1} parent=1 // pred_region
      %42 = vsyncadd [#allocation6], 0
      %s43 = sshll.u32 %s2, 4
      %s44 = int_to_ptr.hbm [resolvable:$true] %s43
      %s45 = sshll.u32 [#allocation7], 4
      %s46 = int_to_ptr.vmem [resolvable:$true] %s45
      %51 = dma.hbm_to_vmem [thread:$0]  %s44, 73728, %s46, [#allocation6], 768, 768, 48
    $region13: #{tpu_custom_call.1} parent=1 // pred_fallthru
      _
    // Predicated region
    $region14: #{tpu_custom_call.1} parent=1 // pred_check
      _
    $region15: #{tpu_custom_call.1} parent=1 // pred_check_branch
      %53 = sbr.rel (0) target = $region17
    $region16: #{tpu_custom_call.1} parent=1 // pred_region
      %55 = vsyncadd [#allocation9], 0
      %s56 = sshll.u32 %s3, 4
      %s57 = int_to_ptr.hbm [resolvable:$true] %s56
      %s58 = sshll.u32 [#allocation8], 4
      %s59 = int_to_ptr.vmem [resolvable:$true] %s58
      %64 = dma.hbm_to_vmem [thread:$0]  %s57, 73728, %s59, [#allocation9], 768, 768, 48
    $region17: #{tpu_custom_call.1} parent=1 // pred_fallthru
      _
    // Predicated region
    $region18: #{tpu_custom_call.1} parent=1 // pred_check
      _
    $region19: #{tpu_custom_call.1} parent=1 // pred_check_branch
      %66 = sbr.rel (0) target = $region21
    $region20: #{tpu_custom_call.1} parent=1 // pred_region
      %68 = vsyncadd [#allocation9], 0
      %s70 = sshll.u32 %s4, 4
      %s71 = int_to_ptr.hbm [resolvable:$true] %s70
      %s72 = sshll.u32 [#allocation10], 4
      %s73 = int_to_ptr.vmem [resolvable:$true] %s72
      %75 = dma.hbm_to_vmem [thread:$0]  %s71, 96, %s73, [#allocation9]
    $region21: #{tpu_custom_call.1} parent=1 // pred_fallthru
      _
    // Predicated region
    $region22: #{tpu_custom_call.1} parent=1 // pred_check
      _
    $region23: #{tpu_custom_call.1} parent=1 // pred_check_branch
      %77 = sbr.rel (0) target = $region25
    $region24: #{tpu_custom_call.1} parent=1 // pred_region
      %79 = vsyncadd [#allocation12], 0
      %s80 = sshll.u32 %s5, 4
      %s81 = int_to_ptr.hbm [resolvable:$true] %s80
      %s82 = sshll.u32 [#allocation11], 4
      %s83 = int_to_ptr.vmem [resolvable:$true] %s82
      %88 = dma.hbm_to_vmem [thread:$0]  %s81, 12288, %s83, [#allocation12], 128, 128, 8
    $region25: #{tpu_custom_call.1} parent=1 // pred_fallthru
      _
    // Predicated region
    $region26: #{tpu_custom_call.1} parent=1 // pred_check
      _
    $region27: #{tpu_custom_call.1} parent=1 // pred_check_branch
      %90 = sbr.rel (0) target = $region29
    $region28: #{tpu_custom_call.1} parent=1 // pred_region
      %92 = vsyncadd [#allocation12], 0
      %s94 = sshll.u32 %s6, 4
      %s95 = int_to_ptr.hbm [resolvable:$true] %s94
      %s96 = sshll.u32 [#allocation13], 4
      %s97 = int_to_ptr.vmem [resolvable:$true] %s96
      %99 = dma.hbm_to_vmem [thread:$0]  %s95, 16, %s97, [#allocation12]
    $region29: #{tpu_custom_call.1} parent=1 // pred_fallthru
      _
    // Predicated region
    $region30: #{tpu_custom_call.1} parent=1 // pred_check
      _
    $region31: #{tpu_custom_call.1} parent=1 // pred_check_branch
      %101 = sbr.rel (0) target = $region33
    $region32: #{tpu_custom_call.1} parent=1 // pred_region
      %103 = dma.done [#allocation3], 768
    $region33: #{tpu_custom_call.1} parent=1 // pred_fallthru
      _
    // Predicated region
    $region34: #{tpu_custom_call.1} parent=1 // pred_check
      _
    $region35: #{tpu_custom_call.1} parent=1 // pred_check_branch
      %105 = sbr.rel (0) target = $region37
    $region36: #{tpu_custom_call.1} parent=1 // pred_region
      %107 = dma.done [#allocation6], 768
    $region37: #{tpu_custom_call.1} parent=1 // pred_fallthru
      _
    // Predicated region
    $region38: #{tpu_custom_call.1} parent=1 // pred_check
      _
    $region39: #{tpu_custom_call.1} parent=1 // pred_check_branch
      %109 = sbr.rel (0) target = $region41
    $region40: #{tpu_custom_call.1} parent=1 // pred_region
      %111 = dma.done [#allocation6], 73728
    $region41: #{tpu_custom_call.1} parent=1 // pred_fallthru
      _
    // Predicated region
    $region42: #{tpu_custom_call.1} parent=1 // pred_check
      _
    $region43: #{tpu_custom_call.1} parent=1 // pred_check_branch
      %113 = sbr.rel (0) target = $region45
    $region44: #{tpu_custom_call.1} parent=1 // pred_region
      %115 = dma.done [#allocation9], 73728
    $region45: #{tpu_custom_call.1} parent=1 // pred_fallthru
      _
    // Predicated region
    $region46: #{tpu_custom_call.1} parent=1 // pred_check
      _
    $region47: #{tpu_custom_call.1} parent=1 // pred_check_branch
      %117 = sbr.rel (0) target = $region49
    $region48: #{tpu_custom_call.1} parent=1 // pred_region
      %119 = dma.done [#allocation9], 96
    $region49: #{tpu_custom_call.1} parent=1 // pred_fallthru
      _
    // Predicated region
    $region50: #{tpu_custom_call.1} parent=1 // pred_check
      _
    $region51: #{tpu_custom_call.1} parent=1 // pred_check_branch
      %121 = sbr.rel (0) target = $region53
    $region52: #{tpu_custom_call.1} parent=1 // pred_region
      %123 = dma.done [#allocation12], 12288
    $region53: #{tpu_custom_call.1} parent=1 // pred_fallthru
      _
    // Predicated region
    $region54: #{tpu_custom_call.1} parent=1 // pred_check
      _
    $region55: #{tpu_custom_call.1} parent=1 // pred_check_branch
      %125 = sbr.rel (0) target = $region57
    $region56: #{tpu_custom_call.1} parent=1 // pred_region
      %127 = dma.done [#allocation12], 16
    $region57: #{tpu_custom_call.1} parent=1 // pred_fallthru
      _
    %v128 = vld [vmem:[#allocation2] sm:$0xff]
    %v129 = vld [vmem:[#allocation2 + $0x8] sm:$0xff]
    %v130 = vld [vmem:[#allocation2 + $0x10] sm:$0xff]
    %v131 = vld [vmem:[#allocation2 + $0x18] sm:$0xff]
    %v132 = vld [vmem:[#allocation2 + $0x20] sm:$0xff]
    %v133 = vld [vmem:[#allocation2 + $0x28] sm:$0xff]
    %v134 = vld [vmem:[#allocation7] sm:$0xff]
    %v135 = vld [vmem:[#allocation7 + $0x8] sm:$0xff]
    %v136 = vld [vmem:[#allocation7 + $0x10] sm:$0xff]
    %v137 = vld [vmem:[#allocation7 + $0x18] sm:$0xff]
    %v138 = vld [vmem:[#allocation7 + $0x20] sm:$0xff]
    %v139 = vld [vmem:[#allocation7 + $0x28] sm:$0xff]
    %v140 = vld [vmem:[#allocation7 + $0x30] sm:$0xff]
    %v141 = vld [vmem:[#allocation7 + $0x38] sm:$0xff]
    %v142 = vld [vmem:[#allocation7 + $0x40] sm:$0xff]
    %v143 = vld [vmem:[#allocation7 + $0x48] sm:$0xff]
    %v144 = vld [vmem:[#allocation7 + $0x50] sm:$0xff]
    %v145 = vld [vmem:[#allocation7 + $0x58] sm:$0xff]
    %v146 = vld [vmem:[#allocation7 + $0x60] sm:$0xff]
    %v147 = vld [vmem:[#allocation7 + $0x68] sm:$0xff]
    %v148 = vld [vmem:[#allocation7 + $0x70] sm:$0xff]
    %v149 = vld [vmem:[#allocation7 + $0x78] sm:$0xff]
    %v150 = vld [vmem:[#allocation7 + $0x80] sm:$0xff]
    %v151 = vld [vmem:[#allocation7 + $0x88] sm:$0xff]
    %v152 = vld [vmem:[#allocation7 + $0x90] sm:$0xff]
    %v153 = vld [vmem:[#allocation7 + $0x98] sm:$0xff]
    %v154 = vld [vmem:[#allocation7 + $0xa0] sm:$0xff]
    %v155 = vld [vmem:[#allocation7 + $0xa8] sm:$0xff]
    %v156 = vld [vmem:[#allocation7 + $0xb0] sm:$0xff]
    %v157 = vld [vmem:[#allocation7 + $0xb8] sm:$0xff]
    %v158 = vld [vmem:[#allocation7 + $0xc0] sm:$0xff]
    %v159 = vld [vmem:[#allocation7 + $0xc8] sm:$0xff]
    %v160 = vld [vmem:[#allocation7 + $0xd0] sm:$0xff]
    %v161 = vld [vmem:[#allocation7 + $0xd8] sm:$0xff]
    %v162 = vld [vmem:[#allocation7 + $0xe0] sm:$0xff]
    %v163 = vld [vmem:[#allocation7 + $0xe8] sm:$0xff]
    %v164 = vld [vmem:[#allocation7 + $0xf0] sm:$0xff]
    %v165 = vld [vmem:[#allocation7 + $0xf8] sm:$0xff]
    %v166 = vld [vmem:[#allocation7 + $0x100] sm:$0xff]
    %v167 = vld [vmem:[#allocation7 + $0x108] sm:$0xff]
    %v168 = vld [vmem:[#allocation7 + $0x110] sm:$0xff]
    %v169 = vld [vmem:[#allocation7 + $0x118] sm:$0xff]
    %v170 = vld [vmem:[#allocation7 + $0x120] sm:$0xff]
    %v171 = vld [vmem:[#allocation7 + $0x128] sm:$0xff]
    %v172 = vld [vmem:[#allocation7 + $0x130] sm:$0xff]
    %v173 = vld [vmem:[#allocation7 + $0x138] sm:$0xff]
    %v174 = vld [vmem:[#allocation7 + $0x140] sm:$0xff]
    %v175 = vld [vmem:[#allocation7 + $0x148] sm:$0xff]
    %v176 = vld [vmem:[#allocation7 + $0x150] sm:$0xff]
    %v177 = vld [vmem:[#allocation7 + $0x158] sm:$0xff]
    %v178 = vld [vmem:[#allocation7 + $0x160] sm:$0xff]
    %v179 = vld [vmem:[#allocation7 + $0x168] sm:$0xff]
    %v180 = vld [vmem:[#allocation7 + $0x170] sm:$0xff]
    %v181 = vld [vmem:[#allocation7 + $0x178] sm:$0xff]
    %v182 = vld [vmem:[#allocation7 + $0x180] sm:$0xff]
    %v183 = vld [vmem:[#allocation7 + $0x188] sm:$0xff]
    %v184 = vld [vmem:[#allocation7 + $0x190] sm:$0xff]
    %v185 = vld [vmem:[#allocation7 + $0x198] sm:$0xff]
    %v186 = vld [vmem:[#allocation7 + $0x1a0] sm:$0xff]
    %v187 = vld [vmem:[#allocation7 + $0x1a8] sm:$0xff]
    %v188 = vld [vmem:[#allocation7 + $0x1b0] sm:$0xff]
    %v189 = vld [vmem:[#allocation7 + $0x1b8] sm:$0xff]
    %v190 = vld [vmem:[#allocation7 + $0x1c0] sm:$0xff]
    %v191 = vld [vmem:[#allocation7 + $0x1c8] sm:$0xff]
    %v192 = vld [vmem:[#allocation7 + $0x1d0] sm:$0xff]
    %v193 = vld [vmem:[#allocation7 + $0x1d8] sm:$0xff]
    %v194 = vld [vmem:[#allocation7 + $0x1e0] sm:$0xff]
    %v195 = vld [vmem:[#allocation7 + $0x1e8] sm:$0xff]
    %v196 = vld [vmem:[#allocation7 + $0x1f0] sm:$0xff]
    %v197 = vld [vmem:[#allocation7 + $0x1f8] sm:$0xff]
    %v198 = vld [vmem:[#allocation7 + $0x200] sm:$0xff]
    %v199 = vld [vmem:[#allocation7 + $0x208] sm:$0xff]
    %v200 = vld [vmem:[#allocation7 + $0x210] sm:$0xff]
    %v201 = vld [vmem:[#allocation7 + $0x218] sm:$0xff]
    %v202 = vld [vmem:[#allocation7 + $0x220] sm:$0xff]
    %v203 = vld [vmem:[#allocation7 + $0x228] sm:$0xff]
    %v204 = vld [vmem:[#allocation7 + $0x230] sm:$0xff]
    %v205 = vld [vmem:[#allocation7 + $0x238] sm:$0xff]
    %v206 = vld [vmem:[#allocation7 + $0x240] sm:$0xff]
    %v207 = vld [vmem:[#allocation7 + $0x248] sm:$0xff]
    %v208 = vld [vmem:[#allocation7 + $0x250] sm:$0xff]
    %v209 = vld [vmem:[#allocation7 + $0x258] sm:$0xff]
    %v210 = vld [vmem:[#allocation7 + $0x260] sm:$0xff]
    %v211 = vld [vmem:[#allocation7 + $0x268] sm:$0xff]
    %v212 = vld [vmem:[#allocation7 + $0x270] sm:$0xff]
    %v213 = vld [vmem:[#allocation7 + $0x278] sm:$0xff]
    %v214 = vld [vmem:[#allocation7 + $0x280] sm:$0xff]
    %v215 = vld [vmem:[#allocation7 + $0x288] sm:$0xff]
    %v216 = vld [vmem:[#allocation7 + $0x290] sm:$0xff]
    %v217 = vld [vmem:[#allocation7 + $0x298] sm:$0xff]
    %v218 = vld [vmem:[#allocation7 + $0x2a0] sm:$0xff]
    %v219 = vld [vmem:[#allocation7 + $0x2a8] sm:$0xff]
    %v220 = vld [vmem:[#allocation7 + $0x2b0] sm:$0xff]
    %v221 = vld [vmem:[#allocation7 + $0x2b8] sm:$0xff]
    %v222 = vld [vmem:[#allocation7 + $0x2c0] sm:$0xff]
    %v223 = vld [vmem:[#allocation7 + $0x2c8] sm:$0xff]
    %v224 = vld [vmem:[#allocation7 + $0x2d0] sm:$0xff]
    %v225 = vld [vmem:[#allocation7 + $0x2d8] sm:$0xff]
    %v226 = vld [vmem:[#allocation7 + $0x2e0] sm:$0xff]
    %v227 = vld [vmem:[#allocation7 + $0x2e8] sm:$0xff]
    %v228 = vld [vmem:[#allocation7 + $0x2f0] sm:$0xff]
    %v229 = vld [vmem:[#allocation7 + $0x2f8] sm:$0xff]
    %v230 = vld [vmem:[#allocation7 + $0x300] sm:$0xff]
    %v231 = vld [vmem:[#allocation7 + $0x308] sm:$0xff]
    %v232 = vld [vmem:[#allocation7 + $0x310] sm:$0xff]
    %v233 = vld [vmem:[#allocation7 + $0x318] sm:$0xff]
    %v234 = vld [vmem:[#allocation7 + $0x320] sm:$0xff]
    %v235 = vld [vmem:[#allocation7 + $0x328] sm:$0xff]
    %v236 = vld [vmem:[#allocation7 + $0x330] sm:$0xff]
    %v237 = vld [vmem:[#allocation7 + $0x338] sm:$0xff]
    %v238 = vld [vmem:[#allocation7 + $0x340] sm:$0xff]
    %v239 = vld [vmem:[#allocation7 + $0x348] sm:$0xff]
    %v240 = vld [vmem:[#allocation7 + $0x350] sm:$0xff]
    %v241 = vld [vmem:[#allocation7 + $0x358] sm:$0xff]
    %v242 = vld [vmem:[#allocation7 + $0x360] sm:$0xff]
    %v243 = vld [vmem:[#allocation7 + $0x368] sm:$0xff]
    %v244 = vld [vmem:[#allocation7 + $0x370] sm:$0xff]
    %v245 = vld [vmem:[#allocation7 + $0x378] sm:$0xff]
    %v246 = vld [vmem:[#allocation7 + $0x380] sm:$0xff]
    %v247 = vld [vmem:[#allocation7 + $0x388] sm:$0xff]
    %v248 = vld [vmem:[#allocation7 + $0x390] sm:$0xff]
    %v249 = vld [vmem:[#allocation7 + $0x398] sm:$0xff]
    %v250 = vld [vmem:[#allocation7 + $0x3a0] sm:$0xff]
    %v251 = vld [vmem:[#allocation7 + $0x3a8] sm:$0xff]
    %v252 = vld [vmem:[#allocation7 + $0x3b0] sm:$0xff]
    %v253 = vld [vmem:[#allocation7 + $0x3b8] sm:$0xff]
    %v254 = vld [vmem:[#allocation7 + $0x3c0] sm:$0xff]
    %v255 = vld [vmem:[#allocation7 + $0x3c8] sm:$0xff]
    %v256 = vld [vmem:[#allocation7 + $0x3d0] sm:$0xff]
    %v257 = vld [vmem:[#allocation7 + $0x3d8] sm:$0xff]
    %v258 = vld [vmem:[#allocation7 + $0x3e0] sm:$0xff]
    %v259 = vld [vmem:[#allocation7 + $0x3e8] sm:$0xff]
    %v260 = vld [vmem:[#allocation7 + $0x3f0] sm:$0xff]
    %v261 = vld [vmem:[#allocation7 + $0x3f8] sm:$0xff]
    %v262 = vld [vmem:[#allocation7 + $0x400] sm:$0xff]
    %v263 = vld [vmem:[#allocation7 + $0x408] sm:$0xff]
    %v264 = vld [vmem:[#allocation7 + $0x410] sm:$0xff]
    %v265 = vld [vmem:[#allocation7 + $0x418] sm:$0xff]
    %v266 = vld [vmem:[#allocation7 + $0x420] sm:$0xff]
    %v267 = vld [vmem:[#allocation7 + $0x428] sm:$0xff]
    %v268 = vld [vmem:[#allocation7 + $0x430] sm:$0xff]
    %v269 = vld [vmem:[#allocation7 + $0x438] sm:$0xff]
    %v270 = vld [vmem:[#allocation7 + $0x440] sm:$0xff]
    %v271 = vld [vmem:[#allocation7 + $0x448] sm:$0xff]
    %v272 = vld [vmem:[#allocation7 + $0x450] sm:$0xff]
    %v273 = vld [vmem:[#allocation7 + $0x458] sm:$0xff]
    %v274 = vld [vmem:[#allocation7 + $0x460] sm:$0xff]
    %v275 = vld [vmem:[#allocation7 + $0x468] sm:$0xff]
    %v276 = vld [vmem:[#allocation7 + $0x470] sm:$0xff]
    %v277 = vld [vmem:[#allocation7 + $0x478] sm:$0xff]
    %v278 = vld [vmem:[#allocation7 + $0x480] sm:$0xff]
    %v279 = vld [vmem:[#allocation7 + $0x488] sm:$0xff]
    %v280 = vld [vmem:[#allocation7 + $0x490] sm:$0xff]
    %v281 = vld [vmem:[#allocation7 + $0x498] sm:$0xff]
    %v282 = vld [vmem:[#allocation7 + $0x4a0] sm:$0xff]
    %v283 = vld [vmem:[#allocation7 + $0x4a8] sm:$0xff]
    %v284 = vld [vmem:[#allocation7 + $0x4b0] sm:$0xff]
    %v285 = vld [vmem:[#allocation7 + $0x4b8] sm:$0xff]
    %v286 = vld [vmem:[#allocation7 + $0x4c0] sm:$0xff]
    %v287 = vld [vmem:[#allocation7 + $0x4c8] sm:$0xff]
    %v288 = vld [vmem:[#allocation7 + $0x4d0] sm:$0xff]
    %v289 = vld [vmem:[#allocation7 + $0x4d8] sm:$0xff]
    %v290 = vld [vmem:[#allocation7 + $0x4e0] sm:$0xff]
    %v291 = vld [vmem:[#allocation7 + $0x4e8] sm:$0xff]
    %v292 = vld [vmem:[#allocation7 + $0x4f0] sm:$0xff]
    %v293 = vld [vmem:[#allocation7 + $0x4f8] sm:$0xff]
    %v294 = vld [vmem:[#allocation7 + $0x500] sm:$0xff]
    %v295 = vld [vmem:[#allocation7 + $0x508] sm:$0xff]
    %v296 = vld [vmem:[#allocation7 + $0x510] sm:$0xff]
    %v297 = vld [vmem:[#allocation7 + $0x518] sm:$0xff]
    %v298 = vld [vmem:[#allocation7 + $0x520] sm:$0xff]
    %v299 = vld [vmem:[#allocation7 + $0x528] sm:$0xff]
    %v300 = vld [vmem:[#allocation7 + $0x530] sm:$0xff]
    %v301 = vld [vmem:[#allocation7 + $0x538] sm:$0xff]
    %v302 = vld [vmem:[#allocation7 + $0x540] sm:$0xff]
    %v303 = vld [vmem:[#allocation7 + $0x548] sm:$0xff]
    %v304 = vld [vmem:[#allocation7 + $0x550] sm:$0xff]
    %v305 = vld [vmem:[#allocation7 + $0x558] sm:$0xff]
    %v306 = vld [vmem:[#allocation7 + $0x560] sm:$0xff]
    %v307 = vld [vmem:[#allocation7 + $0x568] sm:$0xff]
    %v308 = vld [vmem:[#allocation7 + $0x570] sm:$0xff]
    %v309 = vld [vmem:[#allocation7 + $0x578] sm:$0xff]
    %v310 = vld [vmem:[#allocation7 + $0x580] sm:$0xff]
    %v311 = vld [vmem:[#allocation7 + $0x588] sm:$0xff]
    %v312 = vld [vmem:[#allocation7 + $0x590] sm:$0xff]
    %v313 = vld [vmem:[#allocation7 + $0x598] sm:$0xff]
    %v314 = vld [vmem:[#allocation7 + $0x5a0] sm:$0xff]
    %v315 = vld [vmem:[#allocation7 + $0x5a8] sm:$0xff]
    %v316 = vld [vmem:[#allocation7 + $0x5b0] sm:$0xff]
    %v317 = vld [vmem:[#allocation7 + $0x5b8] sm:$0xff]
    %v318 = vld [vmem:[#allocation7 + $0x5c0] sm:$0xff]
    %v319 = vld [vmem:[#allocation7 + $0x5c8] sm:$0xff]
    %v320 = vld [vmem:[#allocation7 + $0x5d0] sm:$0xff]
    %v321 = vld [vmem:[#allocation7 + $0x5d8] sm:$0xff]
    %v322 = vld [vmem:[#allocation7 + $0x5e0] sm:$0xff]
    %v323 = vld [vmem:[#allocation7 + $0x5e8] sm:$0xff]
    %v324 = vld [vmem:[#allocation7 + $0x5f0] sm:$0xff]
    %v325 = vld [vmem:[#allocation7 + $0x5f8] sm:$0xff]
    %v326 = vld [vmem:[#allocation7 + $0x600] sm:$0xff]
    %v327 = vld [vmem:[#allocation7 + $0x608] sm:$0xff]
    %v328 = vld [vmem:[#allocation7 + $0x610] sm:$0xff]
    %v329 = vld [vmem:[#allocation7 + $0x618] sm:$0xff]
    %v330 = vld [vmem:[#allocation7 + $0x620] sm:$0xff]
    %v331 = vld [vmem:[#allocation7 + $0x628] sm:$0xff]
    %v332 = vld [vmem:[#allocation7 + $0x630] sm:$0xff]
    %v333 = vld [vmem:[#allocation7 + $0x638] sm:$0xff]
    %v334 = vld [vmem:[#allocation7 + $0x640] sm:$0xff]
    %v335 = vld [vmem:[#allocation7 + $0x648] sm:$0xff]
    %v336 = vld [vmem:[#allocation7 + $0x650] sm:$0xff]
    %v337 = vld [vmem:[#allocation7 + $0x658] sm:$0xff]
    %v338 = vld [vmem:[#allocation7 + $0x660] sm:$0xff]
    %v339 = vld [vmem:[#allocation7 + $0x668] sm:$0xff]
    %v340 = vld [vmem:[#allocation7 + $0x670] sm:$0xff]
    %v341 = vld [vmem:[#allocation7 + $0x678] sm:$0xff]
    %v342 = vld [vmem:[#allocation7 + $0x680] sm:$0xff]
    %v343 = vld [vmem:[#allocation7 + $0x688] sm:$0xff]
    %v344 = vld [vmem:[#allocation7 + $0x690] sm:$0xff]
    %v345 = vld [vmem:[#allocation7 + $0x698] sm:$0xff]
    %v346 = vld [vmem:[#allocation7 + $0x6a0] sm:$0xff]
    %v347 = vld [vmem:[#allocation7 + $0x6a8] sm:$0xff]
    %v348 = vld [vmem:[#allocation7 + $0x6b0] sm:$0xff]
    %v349 = vld [vmem:[#allocation7 + $0x6b8] sm:$0xff]
    %v350 = vld [vmem:[#allocation7 + $0x6c0] sm:$0xff]
    %v351 = vld [vmem:[#allocation7 + $0x6c8] sm:$0xff]
    %v352 = vld [vmem:[#allocation7 + $0x6d0] sm:$0xff]
    %v353 = vld [vmem:[#allocation7 + $0x6d8] sm:$0xff]
    %v354 = vld [vmem:[#allocation7 + $0x6e0] sm:$0xff]
    %v355 = vld [vmem:[#allocation7 + $0x6e8] sm:$0xff]
    %v356 = vld [vmem:[#allocation7 + $0x6f0] sm:$0xff]
    %v357 = vld [vmem:[#allocation7 + $0x6f8] sm:$0xff]
    %v358 = vld [vmem:[#allocation7 + $0x700] sm:$0xff]
    %v359 = vld [vmem:[#allocation7 + $0x708] sm:$0xff]
    %v360 = vld [vmem:[#allocation7 + $0x710] sm:$0xff]
    %v361 = vld [vmem:[#allocation7 + $0x718] sm:$0xff]
    %v362 = vld [vmem:[#allocation7 + $0x720] sm:$0xff]
    %v363 = vld [vmem:[#allocation7 + $0x728] sm:$0xff]
    %v364 = vld [vmem:[#allocation7 + $0x730] sm:$0xff]
    %v365 = vld [vmem:[#allocation7 + $0x738] sm:$0xff]
    %v366 = vld [vmem:[#allocation7 + $0x740] sm:$0xff]
    %v367 = vld [vmem:[#allocation7 + $0x748] sm:$0xff]
    %v368 = vld [vmem:[#allocation7 + $0x750] sm:$0xff]
    %v369 = vld [vmem:[#allocation7 + $0x758] sm:$0xff]
    %v370 = vld [vmem:[#allocation7 + $0x760] sm:$0xff]
    %v371 = vld [vmem:[#allocation7 + $0x768] sm:$0xff]
    %v372 = vld [vmem:[#allocation7 + $0x770] sm:$0xff]
    %v373 = vld [vmem:[#allocation7 + $0x778] sm:$0xff]
    %v374 = vld [vmem:[#allocation7 + $0x780] sm:$0xff]
    %v375 = vld [vmem:[#allocation7 + $0x788] sm:$0xff]
    %v376 = vld [vmem:[#allocation7 + $0x790] sm:$0xff]
    %v377 = vld [vmem:[#allocation7 + $0x798] sm:$0xff]
    %v378 = vld [vmem:[#allocation7 + $0x7a0] sm:$0xff]
    %v379 = vld [vmem:[#allocation7 + $0x7a8] sm:$0xff]
    %v380 = vld [vmem:[#allocation7 + $0x7b0] sm:$0xff]
    %v381 = vld [vmem:[#allocation7 + $0x7b8] sm:$0xff]
    %v382 = vld [vmem:[#allocation7 + $0x7c0] sm:$0xff]
    %v383 = vld [vmem:[#allocation7 + $0x7c8] sm:$0xff]
    %v384 = vld [vmem:[#allocation7 + $0x7d0] sm:$0xff]
    %v385 = vld [vmem:[#allocation7 + $0x7d8] sm:$0xff]
    %v386 = vld [vmem:[#allocation7 + $0x7e0] sm:$0xff]
    %v387 = vld [vmem:[#allocation7 + $0x7e8] sm:$0xff]
    %v388 = vld [vmem:[#allocation7 + $0x7f0] sm:$0xff]
    %v389 = vld [vmem:[#allocation7 + $0x7f8] sm:$0xff]
    %v390 = vld [vmem:[#allocation7 + $0x800] sm:$0xff]
    %v391 = vld [vmem:[#allocation7 + $0x808] sm:$0xff]
    %v392 = vld [vmem:[#allocation7 + $0x810] sm:$0xff]
    %v393 = vld [vmem:[#allocation7 + $0x818] sm:$0xff]
    %v394 = vld [vmem:[#allocation7 + $0x820] sm:$0xff]
    %v395 = vld [vmem:[#allocation7 + $0x828] sm:$0xff]
    %v396 = vld [vmem:[#allocation7 + $0x830] sm:$0xff]
    %v397 = vld [vmem:[#allocation7 + $0x838] sm:$0xff]
    %v398 = vld [vmem:[#allocation7 + $0x840] sm:$0xff]
    %v399 = vld [vmem:[#allocation7 + $0x848] sm:$0xff]
    %v400 = vld [vmem:[#allocation7 + $0x850] sm:$0xff]
    %v401 = vld [vmem:[#allocation7 + $0x858] sm:$0xff]
    %v402 = vld [vmem:[#allocation7 + $0x860] sm:$0xff]
    %v403 = vld [vmem:[#allocation7 + $0x868] sm:$0xff]
    %v404 = vld [vmem:[#allocation7 + $0x870] sm:$0xff]
    %v405 = vld [vmem:[#allocation7 + $0x878] sm:$0xff]
    %v406 = vld [vmem:[#allocation7 + $0x880] sm:$0xff]
    %v407 = vld [vmem:[#allocation7 + $0x888] sm:$0xff]
    %v408 = vld [vmem:[#allocation7 + $0x890] sm:$0xff]
    %v409 = vld [vmem:[#allocation7 + $0x898] sm:$0xff]
    %v410 = vld [vmem:[#allocation7 + $0x8a0] sm:$0xff]
    %v411 = vld [vmem:[#allocation7 + $0x8a8] sm:$0xff]
    %v412 = vld [vmem:[#allocation7 + $0x8b0] sm:$0xff]
    %v413 = vld [vmem:[#allocation7 + $0x8b8] sm:$0xff]
    %v414 = vld [vmem:[#allocation7 + $0x8c0] sm:$0xff]
    %v415 = vld [vmem:[#allocation7 + $0x8c8] sm:$0xff]
    %v416 = vld [vmem:[#allocation7 + $0x8d0] sm:$0xff]
    %v417 = vld [vmem:[#allocation7 + $0x8d8] sm:$0xff]
    %v418 = vld [vmem:[#allocation7 + $0x8e0] sm:$0xff]
    %v419 = vld [vmem:[#allocation7 + $0x8e8] sm:$0xff]
    %v420 = vld [vmem:[#allocation7 + $0x8f0] sm:$0xff]
    %v421 = vld [vmem:[#allocation7 + $0x8f8] sm:$0xff]
    %v422 = vld [vmem:[#allocation7 + $0x900] sm:$0xff]
    %v423 = vld [vmem:[#allocation7 + $0x908] sm:$0xff]
    %v424 = vld [vmem:[#allocation7 + $0x910] sm:$0xff]
    %v425 = vld [vmem:[#allocation7 + $0x918] sm:$0xff]
    %v426 = vld [vmem:[#allocation7 + $0x920] sm:$0xff]
    %v427 = vld [vmem:[#allocation7 + $0x928] sm:$0xff]
    %v428 = vld [vmem:[#allocation7 + $0x930] sm:$0xff]
    %v429 = vld [vmem:[#allocation7 + $0x938] sm:$0xff]
    %v430 = vld [vmem:[#allocation7 + $0x940] sm:$0xff]
    %v431 = vld [vmem:[#allocation7 + $0x948] sm:$0xff]
    %v432 = vld [vmem:[#allocation7 + $0x950] sm:$0xff]
    %v433 = vld [vmem:[#allocation7 + $0x958] sm:$0xff]
    %v434 = vld [vmem:[#allocation7 + $0x960] sm:$0xff]
    %v435 = vld [vmem:[#allocation7 + $0x968] sm:$0xff]
    %v436 = vld [vmem:[#allocation7 + $0x970] sm:$0xff]
    %v437 = vld [vmem:[#allocation7 + $0x978] sm:$0xff]
    %v438 = vld [vmem:[#allocation7 + $0x980] sm:$0xff]
    %v439 = vld [vmem:[#allocation7 + $0x988] sm:$0xff]
    %v440 = vld [vmem:[#allocation7 + $0x990] sm:$0xff]
    %v441 = vld [vmem:[#allocation7 + $0x998] sm:$0xff]
    %v442 = vld [vmem:[#allocation7 + $0x9a0] sm:$0xff]
    %v443 = vld [vmem:[#allocation7 + $0x9a8] sm:$0xff]
    %v444 = vld [vmem:[#allocation7 + $0x9b0] sm:$0xff]
    %v445 = vld [vmem:[#allocation7 + $0x9b8] sm:$0xff]
    %v446 = vld [vmem:[#allocation7 + $0x9c0] sm:$0xff]
    %v447 = vld [vmem:[#allocation7 + $0x9c8] sm:$0xff]
    %v448 = vld [vmem:[#allocation7 + $0x9d0] sm:$0xff]
    %v449 = vld [vmem:[#allocation7 + $0x9d8] sm:$0xff]
    %v450 = vld [vmem:[#allocation7 + $0x9e0] sm:$0xff]
    %v451 = vld [vmem:[#allocation7 + $0x9e8] sm:$0xff]
    %v452 = vld [vmem:[#allocation7 + $0x9f0] sm:$0xff]
    %v453 = vld [vmem:[#allocation7 + $0x9f8] sm:$0xff]
    %v454 = vld [vmem:[#allocation7 + $0xa00] sm:$0xff]
    %v455 = vld [vmem:[#allocation7 + $0xa08] sm:$0xff]
    %v456 = vld [vmem:[#allocation7 + $0xa10] sm:$0xff]
    %v457 = vld [vmem:[#allocation7 + $0xa18] sm:$0xff]
    %v458 = vld [vmem:[#allocation7 + $0xa20] sm:$0xff]
    %v459 = vld [vmem:[#allocation7 + $0xa28] sm:$0xff]
    %v460 = vld [vmem:[#allocation7 + $0xa30] sm:$0xff]
    %v461 = vld [vmem:[#allocation7 + $0xa38] sm:$0xff]
    %v462 = vld [vmem:[#allocation7 + $0xa40] sm:$0xff]
    %v463 = vld [vmem:[#allocation7 + $0xa48] sm:$0xff]
    %v464 = vld [vmem:[#allocation7 + $0xa50] sm:$0xff]
    %v465 = vld [vmem:[#allocation7 + $0xa58] sm:$0xff]
    %v466 = vld [vmem:[#allocation7 + $0xa60] sm:$0xff]
    %v467 = vld [vmem:[#allocation7 + $0xa68] sm:$0xff]
    %v468 = vld [vmem:[#allocation7 + $0xa70] sm:$0xff]
    %v469 = vld [vmem:[#allocation7 + $0xa78] sm:$0xff]
    %v470 = vld [vmem:[#allocation7 + $0xa80] sm:$0xff]
    %v471 = vld [vmem:[#allocation7 + $0xa88] sm:$0xff]
    %v472 = vld [vmem:[#allocation7 + $0xa90] sm:$0xff]
    %v473 = vld [vmem:[#allocation7 + $0xa98] sm:$0xff]
    %v474 = vld [vmem:[#allocation7 + $0xaa0] sm:$0xff]
    %v475 = vld [vmem:[#allocation7 + $0xaa8] sm:$0xff]
    %v476 = vld [vmem:[#allocation7 + $0xab0] sm:$0xff]
    %v477 = vld [vmem:[#allocation7 + $0xab8] sm:$0xff]
    %v478 = vld [vmem:[#allocation7 + $0xac0] sm:$0xff]
    %v479 = vld [vmem:[#allocation7 + $0xac8] sm:$0xff]
    %v480 = vld [vmem:[#allocation7 + $0xad0] sm:$0xff]
    %v481 = vld [vmem:[#allocation7 + $0xad8] sm:$0xff]
    %v482 = vld [vmem:[#allocation7 + $0xae0] sm:$0xff]
    %v483 = vld [vmem:[#allocation7 + $0xae8] sm:$0xff]
    %v484 = vld [vmem:[#allocation7 + $0xaf0] sm:$0xff]
    %v485 = vld [vmem:[#allocation7 + $0xaf8] sm:$0xff]
    %v486 = vld [vmem:[#allocation7 + $0xb00] sm:$0xff]
    %v487 = vld [vmem:[#allocation7 + $0xb08] sm:$0xff]
    %v488 = vld [vmem:[#allocation7 + $0xb10] sm:$0xff]
    %v489 = vld [vmem:[#allocation7 + $0xb18] sm:$0xff]
    %v490 = vld [vmem:[#allocation7 + $0xb20] sm:$0xff]
    %v491 = vld [vmem:[#allocation7 + $0xb28] sm:$0xff]
    %v492 = vld [vmem:[#allocation7 + $0xb30] sm:$0xff]
    %v493 = vld [vmem:[#allocation7 + $0xb38] sm:$0xff]
    %v494 = vld [vmem:[#allocation7 + $0xb40] sm:$0xff]
    %v495 = vld [vmem:[#allocation7 + $0xb48] sm:$0xff]
    %v496 = vld [vmem:[#allocation7 + $0xb50] sm:$0xff]
    %v497 = vld [vmem:[#allocation7 + $0xb58] sm:$0xff]
    %v498 = vld [vmem:[#allocation7 + $0xb60] sm:$0xff]
    %v499 = vld [vmem:[#allocation7 + $0xb68] sm:$0xff]
    %v500 = vld [vmem:[#allocation7 + $0xb70] sm:$0xff]
    %v501 = vld [vmem:[#allocation7 + $0xb78] sm:$0xff]
    %v502 = vld [vmem:[#allocation7 + $0xb80] sm:$0xff]
    %v503 = vld [vmem:[#allocation7 + $0xb88] sm:$0xff]
    %v504 = vld [vmem:[#allocation7 + $0xb90] sm:$0xff]
    %v505 = vld [vmem:[#allocation7 + $0xb98] sm:$0xff]
    %v506 = vld [vmem:[#allocation7 + $0xba0] sm:$0xff]
    %v507 = vld [vmem:[#allocation7 + $0xba8] sm:$0xff]
    %v508 = vld [vmem:[#allocation7 + $0xbb0] sm:$0xff]
    %v509 = vld [vmem:[#allocation7 + $0xbb8] sm:$0xff]
    %v510 = vld [vmem:[#allocation7 + $0xbc0] sm:$0xff]
    %v511 = vld [vmem:[#allocation7 + $0xbc8] sm:$0xff]
    %v512 = vld [vmem:[#allocation7 + $0xbd0] sm:$0xff]
    %v513 = vld [vmem:[#allocation7 + $0xbd8] sm:$0xff]
    %v514 = vld [vmem:[#allocation7 + $0xbe0] sm:$0xff]
    %v515 = vld [vmem:[#allocation7 + $0xbe8] sm:$0xff]
    %v516 = vld [vmem:[#allocation7 + $0xbf0] sm:$0xff]
    %v517 = vld [vmem:[#allocation7 + $0xbf8] sm:$0xff]
    %v518 = vld [vmem:[#allocation7 + $0xc00] sm:$0xff]
    %v519 = vld [vmem:[#allocation7 + $0xc08] sm:$0xff]
    %v520 = vld [vmem:[#allocation7 + $0xc10] sm:$0xff]
    %v521 = vld [vmem:[#allocation7 + $0xc18] sm:$0xff]
    %v522 = vld [vmem:[#allocation7 + $0xc20] sm:$0xff]
    %v523 = vld [vmem:[#allocation7 + $0xc28] sm:$0xff]
    %v524 = vld [vmem:[#allocation7 + $0xc30] sm:$0xff]
    %v525 = vld [vmem:[#allocation7 + $0xc38] sm:$0xff]
    %v526 = vld [vmem:[#allocation7 + $0xc40] sm:$0xff]
    %v527 = vld [vmem:[#allocation7 + $0xc48] sm:$0xff]
    %v528 = vld [vmem:[#allocation7 + $0xc50] sm:$0xff]
    %v529 = vld [vmem:[#allocation7 + $0xc58] sm:$0xff]
    %v530 = vld [vmem:[#allocation7 + $0xc60] sm:$0xff]
    %v531 = vld [vmem:[#allocation7 + $0xc68] sm:$0xff]
    %v532 = vld [vmem:[#allocation7 + $0xc70] sm:$0xff]
    %v533 = vld [vmem:[#allocation7 + $0xc78] sm:$0xff]
    %v534 = vld [vmem:[#allocation7 + $0xc80] sm:$0xff]
    %v535 = vld [vmem:[#allocation7 + $0xc88] sm:$0xff]
    %v536 = vld [vmem:[#allocation7 + $0xc90] sm:$0xff]
    %v537 = vld [vmem:[#allocation7 + $0xc98] sm:$0xff]
    %v538 = vld [vmem:[#allocation7 + $0xca0] sm:$0xff]
    %v539 = vld [vmem:[#allocation7 + $0xca8] sm:$0xff]
    %v540 = vld [vmem:[#allocation7 + $0xcb0] sm:$0xff]
    %v541 = vld [vmem:[#allocation7 + $0xcb8] sm:$0xff]
    %v542 = vld [vmem:[#allocation7 + $0xcc0] sm:$0xff]
    %v543 = vld [vmem:[#allocation7 + $0xcc8] sm:$0xff]
    %v544 = vld [vmem:[#allocation7 + $0xcd0] sm:$0xff]
    %v545 = vld [vmem:[#allocation7 + $0xcd8] sm:$0xff]
    %v546 = vld [vmem:[#allocation7 + $0xce0] sm:$0xff]
    %v547 = vld [vmem:[#allocation7 + $0xce8] sm:$0xff]
    %v548 = vld [vmem:[#allocation7 + $0xcf0] sm:$0xff]
    %v549 = vld [vmem:[#allocation7 + $0xcf8] sm:$0xff]
    %v550 = vld [vmem:[#allocation7 + $0xd00] sm:$0xff]
    %v551 = vld [vmem:[#allocation7 + $0xd08] sm:$0xff]
    %v552 = vld [vmem:[#allocation7 + $0xd10] sm:$0xff]
    %v553 = vld [vmem:[#allocation7 + $0xd18] sm:$0xff]
    %v554 = vld [vmem:[#allocation7 + $0xd20] sm:$0xff]
    %v555 = vld [vmem:[#allocation7 + $0xd28] sm:$0xff]
    %v556 = vld [vmem:[#allocation7 + $0xd30] sm:$0xff]
    %v557 = vld [vmem:[#allocation7 + $0xd38] sm:$0xff]
    %v558 = vld [vmem:[#allocation7 + $0xd40] sm:$0xff]
    %v559 = vld [vmem:[#allocation7 + $0xd48] sm:$0xff]
    %v560 = vld [vmem:[#allocation7 + $0xd50] sm:$0xff]
    %v561 = vld [vmem:[#allocation7 + $0xd58] sm:$0xff]
    %v562 = vld [vmem:[#allocation7 + $0xd60] sm:$0xff]
    %v563 = vld [vmem:[#allocation7 + $0xd68] sm:$0xff]
    %v564 = vld [vmem:[#allocation7 + $0xd70] sm:$0xff]
    %v565 = vld [vmem:[#allocation7 + $0xd78] sm:$0xff]
    %v566 = vld [vmem:[#allocation7 + $0xd80] sm:$0xff]
    %v567 = vld [vmem:[#allocation7 + $0xd88] sm:$0xff]
    %v568 = vld [vmem:[#allocation7 + $0xd90] sm:$0xff]
    %v569 = vld [vmem:[#allocation7 + $0xd98] sm:$0xff]
    %v570 = vld [vmem:[#allocation7 + $0xda0] sm:$0xff]
    %v571 = vld [vmem:[#allocation7 + $0xda8] sm:$0xff]
    %v572 = vld [vmem:[#allocation7 + $0xdb0] sm:$0xff]
    %v573 = vld [vmem:[#allocation7 + $0xdb8] sm:$0xff]
    %v574 = vld [vmem:[#allocation7 + $0xdc0] sm:$0xff]
    %v575 = vld [vmem:[#allocation7 + $0xdc8] sm:$0xff]
    %v576 = vld [vmem:[#allocation7 + $0xdd0] sm:$0xff]
    %v577 = vld [vmem:[#allocation7 + $0xdd8] sm:$0xff]
    %v578 = vld [vmem:[#allocation7 + $0xde0] sm:$0xff]
    %v579 = vld [vmem:[#allocation7 + $0xde8] sm:$0xff]
    %v580 = vld [vmem:[#allocation7 + $0xdf0] sm:$0xff]
    %v581 = vld [vmem:[#allocation7 + $0xdf8] sm:$0xff]
    %v582 = vld [vmem:[#allocation7 + $0xe00] sm:$0xff]
    %v583 = vld [vmem:[#allocation7 + $0xe08] sm:$0xff]
    %v584 = vld [vmem:[#allocation7 + $0xe10] sm:$0xff]
    %v585 = vld [vmem:[#allocation7 + $0xe18] sm:$0xff]
    %v586 = vld [vmem:[#allocation7 + $0xe20] sm:$0xff]
    %v587 = vld [vmem:[#allocation7 + $0xe28] sm:$0xff]
    %v588 = vld [vmem:[#allocation7 + $0xe30] sm:$0xff]
    %v589 = vld [vmem:[#allocation7 + $0xe38] sm:$0xff]
    %v590 = vld [vmem:[#allocation7 + $0xe40] sm:$0xff]
    %v591 = vld [vmem:[#allocation7 + $0xe48] sm:$0xff]
    %v592 = vld [vmem:[#allocation7 + $0xe50] sm:$0xff]
    %v593 = vld [vmem:[#allocation7 + $0xe58] sm:$0xff]
    %v594 = vld [vmem:[#allocation7 + $0xe60] sm:$0xff]
    %v595 = vld [vmem:[#allocation7 + $0xe68] sm:$0xff]
    %v596 = vld [vmem:[#allocation7 + $0xe70] sm:$0xff]
    %v597 = vld [vmem:[#allocation7 + $0xe78] sm:$0xff]
    %v598 = vld [vmem:[#allocation7 + $0xe80] sm:$0xff]
    %v599 = vld [vmem:[#allocation7 + $0xe88] sm:$0xff]
    %v600 = vld [vmem:[#allocation7 + $0xe90] sm:$0xff]
    %v601 = vld [vmem:[#allocation7 + $0xe98] sm:$0xff]
    %v602 = vld [vmem:[#allocation7 + $0xea0] sm:$0xff]
    %v603 = vld [vmem:[#allocation7 + $0xea8] sm:$0xff]
    %v604 = vld [vmem:[#allocation7 + $0xeb0] sm:$0xff]
    %v605 = vld [vmem:[#allocation7 + $0xeb8] sm:$0xff]
    %v606 = vld [vmem:[#allocation7 + $0xec0] sm:$0xff]
    %v607 = vld [vmem:[#allocation7 + $0xec8] sm:$0xff]
    %v608 = vld [vmem:[#allocation7 + $0xed0] sm:$0xff]
    %v609 = vld [vmem:[#allocation7 + $0xed8] sm:$0xff]
    %v610 = vld [vmem:[#allocation7 + $0xee0] sm:$0xff]
    %v611 = vld [vmem:[#allocation7 + $0xee8] sm:$0xff]
    %v612 = vld [vmem:[#allocation7 + $0xef0] sm:$0xff]
    %v613 = vld [vmem:[#allocation7 + $0xef8] sm:$0xff]
    %v614 = vld [vmem:[#allocation7 + $0xf00] sm:$0xff]
    %v615 = vld [vmem:[#allocation7 + $0xf08] sm:$0xff]
    %v616 = vld [vmem:[#allocation7 + $0xf10] sm:$0xff]
    %v617 = vld [vmem:[#allocation7 + $0xf18] sm:$0xff]
    %v618 = vld [vmem:[#allocation7 + $0xf20] sm:$0xff]
    %v619 = vld [vmem:[#allocation7 + $0xf28] sm:$0xff]
    %v620 = vld [vmem:[#allocation7 + $0xf30] sm:$0xff]
    %v621 = vld [vmem:[#allocation7 + $0xf38] sm:$0xff]
    %v622 = vld [vmem:[#allocation7 + $0xf40] sm:$0xff]
    %v623 = vld [vmem:[#allocation7 + $0xf48] sm:$0xff]
    %v624 = vld [vmem:[#allocation7 + $0xf50] sm:$0xff]
    %v625 = vld [vmem:[#allocation7 + $0xf58] sm:$0xff]
    %v626 = vld [vmem:[#allocation7 + $0xf60] sm:$0xff]
    %v627 = vld [vmem:[#allocation7 + $0xf68] sm:$0xff]
    %v628 = vld [vmem:[#allocation7 + $0xf70] sm:$0xff]
    %v629 = vld [vmem:[#allocation7 + $0xf78] sm:$0xff]
    %v630 = vld [vmem:[#allocation7 + $0xf80] sm:$0xff]
    %v631 = vld [vmem:[#allocation7 + $0xf88] sm:$0xff]
    %v632 = vld [vmem:[#allocation7 + $0xf90] sm:$0xff]
    %v633 = vld [vmem:[#allocation7 + $0xf98] sm:$0xff]
    %v634 = vld [vmem:[#allocation7 + $0xfa0] sm:$0xff]
    %v635 = vld [vmem:[#allocation7 + $0xfa8] sm:$0xff]
    %v636 = vld [vmem:[#allocation7 + $0xfb0] sm:$0xff]
    %v637 = vld [vmem:[#allocation7 + $0xfb8] sm:$0xff]
    %v638 = vld [vmem:[#allocation7 + $0xfc0] sm:$0xff]
    %v639 = vld [vmem:[#allocation7 + $0xfc8] sm:$0xff]
    %v640 = vld [vmem:[#allocation7 + $0xfd0] sm:$0xff]
    %v641 = vld [vmem:[#allocation7 + $0xfd8] sm:$0xff]
    %v642 = vld [vmem:[#allocation7 + $0xfe0] sm:$0xff]
    %v643 = vld [vmem:[#allocation7 + $0xfe8] sm:$0xff]
    %v644 = vld [vmem:[#allocation7 + $0xff0] sm:$0xff]
    %v645 = vld [vmem:[#allocation7 + $0xff8] sm:$0xff]
    %v646 = vld [vmem:[#allocation7 + $0x1000] sm:$0xff]
    %v647 = vld [vmem:[#allocation7 + $0x1008] sm:$0xff]
    %v648 = vld [vmem:[#allocation7 + $0x1010] sm:$0xff]
    %v649 = vld [vmem:[#allocation7 + $0x1018] sm:$0xff]
    %v650 = vld [vmem:[#allocation7 + $0x1020] sm:$0xff]
    %v651 = vld [vmem:[#allocation7 + $0x1028] sm:$0xff]
    %v652 = vld [vmem:[#allocation7 + $0x1030] sm:$0xff]
    %v653 = vld [vmem:[#allocation7 + $0x1038] sm:$0xff]
    %v654 = vld [vmem:[#allocation7 + $0x1040] sm:$0xff]
    %v655 = vld [vmem:[#allocation7 + $0x1048] sm:$0xff]
    %v656 = vld [vmem:[#allocation7 + $0x1050] sm:$0xff]
    %v657 = vld [vmem:[#allocation7 + $0x1058] sm:$0xff]
    %v658 = vld [vmem:[#allocation7 + $0x1060] sm:$0xff]
    %v659 = vld [vmem:[#allocation7 + $0x1068] sm:$0xff]
    %v660 = vld [vmem:[#allocation7 + $0x1070] sm:$0xff]
    %v661 = vld [vmem:[#allocation7 + $0x1078] sm:$0xff]
    %v662 = vld [vmem:[#allocation7 + $0x1080] sm:$0xff]
    %v663 = vld [vmem:[#allocation7 + $0x1088] sm:$0xff]
    %v664 = vld [vmem:[#allocation7 + $0x1090] sm:$0xff]
    %v665 = vld [vmem:[#allocation7 + $0x1098] sm:$0xff]
    %v666 = vld [vmem:[#allocation7 + $0x10a0] sm:$0xff]
    %v667 = vld [vmem:[#allocation7 + $0x10a8] sm:$0xff]
    %v668 = vld [vmem:[#allocation7 + $0x10b0] sm:$0xff]
    %v669 = vld [vmem:[#allocation7 + $0x10b8] sm:$0xff]
    %v670 = vld [vmem:[#allocation7 + $0x10c0] sm:$0xff]
    %v671 = vld [vmem:[#allocation7 + $0x10c8] sm:$0xff]
    %v672 = vld [vmem:[#allocation7 + $0x10d0] sm:$0xff]
    %v673 = vld [vmem:[#allocation7 + $0x10d8] sm:$0xff]
    %v674 = vld [vmem:[#allocation7 + $0x10e0] sm:$0xff]
    %v675 = vld [vmem:[#allocation7 + $0x10e8] sm:$0xff]
    %v676 = vld [vmem:[#allocation7 + $0x10f0] sm:$0xff]
    %v677 = vld [vmem:[#allocation7 + $0x10f8] sm:$0xff]
    %v678 = vld [vmem:[#allocation7 + $0x1100] sm:$0xff]
    %v679 = vld [vmem:[#allocation7 + $0x1108] sm:$0xff]
    %v680 = vld [vmem:[#allocation7 + $0x1110] sm:$0xff]
    %v681 = vld [vmem:[#allocation7 + $0x1118] sm:$0xff]
    %v682 = vld [vmem:[#allocation7 + $0x1120] sm:$0xff]
    %v683 = vld [vmem:[#allocation7 + $0x1128] sm:$0xff]
    %v684 = vld [vmem:[#allocation7 + $0x1130] sm:$0xff]
    %v685 = vld [vmem:[#allocation7 + $0x1138] sm:$0xff]
    %v686 = vld [vmem:[#allocation7 + $0x1140] sm:$0xff]
    %v687 = vld [vmem:[#allocation7 + $0x1148] sm:$0xff]
    %v688 = vld [vmem:[#allocation7 + $0x1150] sm:$0xff]
    %v689 = vld [vmem:[#allocation7 + $0x1158] sm:$0xff]
    %v690 = vld [vmem:[#allocation7 + $0x1160] sm:$0xff]
    %v691 = vld [vmem:[#allocation7 + $0x1168] sm:$0xff]
    %v692 = vld [vmem:[#allocation7 + $0x1170] sm:$0xff]
    %v693 = vld [vmem:[#allocation7 + $0x1178] sm:$0xff]
    %v694 = vld [vmem:[#allocation7 + $0x1180] sm:$0xff]
    %v695 = vld [vmem:[#allocation7 + $0x1188] sm:$0xff]
    %v696 = vld [vmem:[#allocation7 + $0x1190] sm:$0xff]
    %v697 = vld [vmem:[#allocation7 + $0x1198] sm:$0xff]
    %v698 = vld [vmem:[#allocation7 + $0x11a0] sm:$0xff]
    %v699 = vld [vmem:[#allocation7 + $0x11a8] sm:$0xff]
    %v700 = vld [vmem:[#allocation7 + $0x11b0] sm:$0xff]
    %v701 = vld [vmem:[#allocation7 + $0x11b8] sm:$0xff]
    %v702 = vld [vmem:[#allocation7 + $0x11c0] sm:$0xff]
    %v703 = vld [vmem:[#allocation7 + $0x11c8] sm:$0xff]
    %v704 = vld [vmem:[#allocation7 + $0x11d0] sm:$0xff]
    %v705 = vld [vmem:[#allocation7 + $0x11d8] sm:$0xff]
    %v706 = vld [vmem:[#allocation7 + $0x11e0] sm:$0xff]
    %v707 = vld [vmem:[#allocation7 + $0x11e8] sm:$0xff]
    %v708 = vld [vmem:[#allocation7 + $0x11f0] sm:$0xff]
    %v709 = vld [vmem:[#allocation7 + $0x11f8] sm:$0xff]
    %v710 = vld [vmem:[#allocation5] sm:$0xff]
    %v711 = vld [vmem:[#allocation5 + $0x8] sm:$0xff]
    %v712 = vld [vmem:[#allocation5 + $0x10] sm:$0xff]
    %v713 = vld [vmem:[#allocation5 + $0x18] sm:$0xff]
    %v714 = vld [vmem:[#allocation5 + $0x20] sm:$0xff]
    %v715 = vld [vmem:[#allocation5 + $0x28] sm:$0xff]
    %v716 = vld [vmem:[#allocation8] sm:$0xff]
    %v717 = vld [vmem:[#allocation8 + $0x8] sm:$0xff]
    %v718 = vld [vmem:[#allocation8 + $0x10] sm:$0xff]
    %v719 = vld [vmem:[#allocation8 + $0x18] sm:$0xff]
    %v720 = vld [vmem:[#allocation8 + $0x20] sm:$0xff]
    %v721 = vld [vmem:[#allocation8 + $0x28] sm:$0xff]
    %v722 = vld [vmem:[#allocation8 + $0x30] sm:$0xff]
    %v723 = vld [vmem:[#allocation8 + $0x38] sm:$0xff]
    %v724 = vld [vmem:[#allocation8 + $0x40] sm:$0xff]
    %v725 = vld [vmem:[#allocation8 + $0x48] sm:$0xff]
    %v726 = vld [vmem:[#allocation8 + $0x50] sm:$0xff]
    %v727 = vld [vmem:[#allocation8 + $0x58] sm:$0xff]
    %v728 = vld [vmem:[#allocation8 + $0x60] sm:$0xff]
    %v729 = vld [vmem:[#allocation8 + $0x68] sm:$0xff]
    %v730 = vld [vmem:[#allocation8 + $0x70] sm:$0xff]
    %v731 = vld [vmem:[#allocation8 + $0x78] sm:$0xff]
    %v732 = vld [vmem:[#allocation8 + $0x80] sm:$0xff]
    %v733 = vld [vmem:[#allocation8 + $0x88] sm:$0xff]
    %v734 = vld [vmem:[#allocation8 + $0x90] sm:$0xff]
    %v735 = vld [vmem:[#allocation8 + $0x98] sm:$0xff]
    %v736 = vld [vmem:[#allocation8 + $0xa0] sm:$0xff]
    %v737 = vld [vmem:[#allocation8 + $0xa8] sm:$0xff]
    %v738 = vld [vmem:[#allocation8 + $0xb0] sm:$0xff]
    %v739 = vld [vmem:[#allocation8 + $0xb8] sm:$0xff]
    %v740 = vld [vmem:[#allocation8 + $0xc0] sm:$0xff]
    %v741 = vld [vmem:[#allocation8 + $0xc8] sm:$0xff]
    %v742 = vld [vmem:[#allocation8 + $0xd0] sm:$0xff]
    %v743 = vld [vmem:[#allocation8 + $0xd8] sm:$0xff]
    %v744 = vld [vmem:[#allocation8 + $0xe0] sm:$0xff]
    %v745 = vld [vmem:[#allocation8 + $0xe8] sm:$0xff]
    %v746 = vld [vmem:[#allocation8 + $0xf0] sm:$0xff]
    %v747 = vld [vmem:[#allocation8 + $0xf8] sm:$0xff]
    %v748 = vld [vmem:[#allocation8 + $0x100] sm:$0xff]
    %v749 = vld [vmem:[#allocation8 + $0x108] sm:$0xff]
    %v750 = vld [vmem:[#allocation8 + $0x110] sm:$0xff]
    %v751 = vld [vmem:[#allocation8 + $0x118] sm:$0xff]
    %v752 = vld [vmem:[#allocation8 + $0x120] sm:$0xff]
    %v753 = vld [vmem:[#allocation8 + $0x128] sm:$0xff]
    %v754 = vld [vmem:[#allocation8 + $0x130] sm:$0xff]
    %v755 = vld [vmem:[#allocation8 + $0x138] sm:$0xff]
    %v756 = vld [vmem:[#allocation8 + $0x140] sm:$0xff]
    %v757 = vld [vmem:[#allocation8 + $0x148] sm:$0xff]
    %v758 = vld [vmem:[#allocation8 + $0x150] sm:$0xff]
    %v759 = vld [vmem:[#allocation8 + $0x158] sm:$0xff]
    %v760 = vld [vmem:[#allocation8 + $0x160] sm:$0xff]
    %v761 = vld [vmem:[#allocation8 + $0x168] sm:$0xff]
    %v762 = vld [vmem:[#allocation8 + $0x170] sm:$0xff]
    %v763 = vld [vmem:[#allocation8 + $0x178] sm:$0xff]
    %v764 = vld [vmem:[#allocation8 + $0x180] sm:$0xff]
    %v765 = vld [vmem:[#allocation8 + $0x188] sm:$0xff]
    %v766 = vld [vmem:[#allocation8 + $0x190] sm:$0xff]
    %v767 = vld [vmem:[#allocation8 + $0x198] sm:$0xff]
    %v768 = vld [vmem:[#allocation8 + $0x1a0] sm:$0xff]
    %v769 = vld [vmem:[#allocation8 + $0x1a8] sm:$0xff]
    %v770 = vld [vmem:[#allocation8 + $0x1b0] sm:$0xff]
    %v771 = vld [vmem:[#allocation8 + $0x1b8] sm:$0xff]
    %v772 = vld [vmem:[#allocation8 + $0x1c0] sm:$0xff]
    %v773 = vld [vmem:[#allocation8 + $0x1c8] sm:$0xff]
    %v774 = vld [vmem:[#allocation8 + $0x1d0] sm:$0xff]
    %v775 = vld [vmem:[#allocation8 + $0x1d8] sm:$0xff]
    %v776 = vld [vmem:[#allocation8 + $0x1e0] sm:$0xff]
    %v777 = vld [vmem:[#allocation8 + $0x1e8] sm:$0xff]
    %v778 = vld [vmem:[#allocation8 + $0x1f0] sm:$0xff]
    %v779 = vld [vmem:[#allocation8 + $0x1f8] sm:$0xff]
    %v780 = vld [vmem:[#allocation8 + $0x200] sm:$0xff]
    %v781 = vld [vmem:[#allocation8 + $0x208] sm:$0xff]
    %v782 = vld [vmem:[#allocation8 + $0x210] sm:$0xff]
    %v783 = vld [vmem:[#allocation8 + $0x218] sm:$0xff]
    %v784 = vld [vmem:[#allocation8 + $0x220] sm:$0xff]
    %v785 = vld [vmem:[#allocation8 + $0x228] sm:$0xff]
    %v786 = vld [vmem:[#allocation8 + $0x230] sm:$0xff]
    %v787 = vld [vmem:[#allocation8 + $0x238] sm:$0xff]
    %v788 = vld [vmem:[#allocation8 + $0x240] sm:$0xff]
    %v789 = vld [vmem:[#allocation8 + $0x248] sm:$0xff]
    %v790 = vld [vmem:[#allocation8 + $0x250] sm:$0xff]
    %v791 = vld [vmem:[#allocation8 + $0x258] sm:$0xff]
    %v792 = vld [vmem:[#allocation8 + $0x260] sm:$0xff]
    %v793 = vld [vmem:[#allocation8 + $0x268] sm:$0xff]
    %v794 = vld [vmem:[#allocation8 + $0x270] sm:$0xff]
    %v795 = vld [vmem:[#allocation8 + $0x278] sm:$0xff]
    %v796 = vld [vmem:[#allocation8 + $0x280] sm:$0xff]
    %v797 = vld [vmem:[#allocation8 + $0x288] sm:$0xff]
    %v798 = vld [vmem:[#allocation8 + $0x290] sm:$0xff]
    %v799 = vld [vmem:[#allocation8 + $0x298] sm:$0xff]
    %v800 = vld [vmem:[#allocation8 + $0x2a0] sm:$0xff]
    %v801 = vld [vmem:[#allocation8 + $0x2a8] sm:$0xff]
    %v802 = vld [vmem:[#allocation8 + $0x2b0] sm:$0xff]
    %v803 = vld [vmem:[#allocation8 + $0x2b8] sm:$0xff]
    %v804 = vld [vmem:[#allocation8 + $0x2c0] sm:$0xff]
    %v805 = vld [vmem:[#allocation8 + $0x2c8] sm:$0xff]
    %v806 = vld [vmem:[#allocation8 + $0x2d0] sm:$0xff]
    %v807 = vld [vmem:[#allocation8 + $0x2d8] sm:$0xff]
    %v808 = vld [vmem:[#allocation8 + $0x2e0] sm:$0xff]
    %v809 = vld [vmem:[#allocation8 + $0x2e8] sm:$0xff]
    %v810 = vld [vmem:[#allocation8 + $0x2f0] sm:$0xff]
    %v811 = vld [vmem:[#allocation8 + $0x2f8] sm:$0xff]
    %v812 = vld [vmem:[#allocation8 + $0x300] sm:$0xff]
    %v813 = vld [vmem:[#allocation8 + $0x308] sm:$0xff]
    %v814 = vld [vmem:[#allocation8 + $0x310] sm:$0xff]
    %v815 = vld [vmem:[#allocation8 + $0x318] sm:$0xff]
    %v816 = vld [vmem:[#allocation8 + $0x320] sm:$0xff]
    %v817 = vld [vmem:[#allocation8 + $0x328] sm:$0xff]
    %v818 = vld [vmem:[#allocation8 + $0x330] sm:$0xff]
    %v819 = vld [vmem:[#allocation8 + $0x338] sm:$0xff]
    %v820 = vld [vmem:[#allocation8 + $0x340] sm:$0xff]
    %v821 = vld [vmem:[#allocation8 + $0x348] sm:$0xff]
    %v822 = vld [vmem:[#allocation8 + $0x350] sm:$0xff]
    %v823 = vld [vmem:[#allocation8 + $0x358] sm:$0xff]
    %v824 = vld [vmem:[#allocation8 + $0x360] sm:$0xff]
    %v825 = vld [vmem:[#allocation8 + $0x368] sm:$0xff]
    %v826 = vld [vmem:[#allocation8 + $0x370] sm:$0xff]
    %v827 = vld [vmem:[#allocation8 + $0x378] sm:$0xff]
    %v828 = vld [vmem:[#allocation8 + $0x380] sm:$0xff]
    %v829 = vld [vmem:[#allocation8 + $0x388] sm:$0xff]
    %v830 = vld [vmem:[#allocation8 + $0x390] sm:$0xff]
    %v831 = vld [vmem:[#allocation8 + $0x398] sm:$0xff]
    %v832 = vld [vmem:[#allocation8 + $0x3a0] sm:$0xff]
    %v833 = vld [vmem:[#allocation8 + $0x3a8] sm:$0xff]
    %v834 = vld [vmem:[#allocation8 + $0x3b0] sm:$0xff]
    %v835 = vld [vmem:[#allocation8 + $0x3b8] sm:$0xff]
    %v836 = vld [vmem:[#allocation8 + $0x3c0] sm:$0xff]
    %v837 = vld [vmem:[#allocation8 + $0x3c8] sm:$0xff]
    %v838 = vld [vmem:[#allocation8 + $0x3d0] sm:$0xff]
    %v839 = vld [vmem:[#allocation8 + $0x3d8] sm:$0xff]
    %v840 = vld [vmem:[#allocation8 + $0x3e0] sm:$0xff]
    %v841 = vld [vmem:[#allocation8 + $0x3e8] sm:$0xff]
    %v842 = vld [vmem:[#allocation8 + $0x3f0] sm:$0xff]
    %v843 = vld [vmem:[#allocation8 + $0x3f8] sm:$0xff]
    %v844 = vld [vmem:[#allocation8 + $0x400] sm:$0xff]
    %v845 = vld [vmem:[#allocation8 + $0x408] sm:$0xff]
    %v846 = vld [vmem:[#allocation8 + $0x410] sm:$0xff]
    %v847 = vld [vmem:[#allocation8 + $0x418] sm:$0xff]
    %v848 = vld [vmem:[#allocation8 + $0x420] sm:$0xff]
    %v849 = vld [vmem:[#allocation8 + $0x428] sm:$0xff]
    %v850 = vld [vmem:[#allocation8 + $0x430] sm:$0xff]
    %v851 = vld [vmem:[#allocation8 + $0x438] sm:$0xff]
    %v852 = vld [vmem:[#allocation8 + $0x440] sm:$0xff]
    %v853 = vld [vmem:[#allocation8 + $0x448] sm:$0xff]
    %v854 = vld [vmem:[#allocation8 + $0x450] sm:$0xff]
    %v855 = vld [vmem:[#allocation8 + $0x458] sm:$0xff]
    %v856 = vld [vmem:[#allocation8 + $0x460] sm:$0xff]
    %v857 = vld [vmem:[#allocation8 + $0x468] sm:$0xff]
    %v858 = vld [vmem:[#allocation8 + $0x470] sm:$0xff]
    %v859 = vld [vmem:[#allocation8 + $0x478] sm:$0xff]
    %v860 = vld [vmem:[#allocation8 + $0x480] sm:$0xff]
    %v861 = vld [vmem:[#allocation8 + $0x488] sm:$0xff]
    %v862 = vld [vmem:[#allocation8 + $0x490] sm:$0xff]
    %v863 = vld [vmem:[#allocation8 + $0x498] sm:$0xff]
    %v864 = vld [vmem:[#allocation8 + $0x4a0] sm:$0xff]
    %v865 = vld [vmem:[#allocation8 + $0x4a8] sm:$0xff]
    %v866 = vld [vmem:[#allocation8 + $0x4b0] sm:$0xff]
    %v867 = vld [vmem:[#allocation8 + $0x4b8] sm:$0xff]
    %v868 = vld [vmem:[#allocation8 + $0x4c0] sm:$0xff]
    %v869 = vld [vmem:[#allocation8 + $0x4c8] sm:$0xff]
    %v870 = vld [vmem:[#allocation8 + $0x4d0] sm:$0xff]
    %v871 = vld [vmem:[#allocation8 + $0x4d8] sm:$0xff]
    %v872 = vld [vmem:[#allocation8 + $0x4e0] sm:$0xff]
    %v873 = vld [vmem:[#allocation8 + $0x4e8] sm:$0xff]
    %v874 = vld [vmem:[#allocation8 + $0x4f0] sm:$0xff]
    %v875 = vld [vmem:[#allocation8 + $0x4f8] sm:$0xff]
    %v876 = vld [vmem:[#allocation8 + $0x500] sm:$0xff]
    %v877 = vld [vmem:[#allocation8 + $0x508] sm:$0xff]
    %v878 = vld [vmem:[#allocation8 + $0x510] sm:$0xff]
    %v879 = vld [vmem:[#allocation8 + $0x518] sm:$0xff]
    %v880 = vld [vmem:[#allocation8 + $0x520] sm:$0xff]
    %v881 = vld [vmem:[#allocation8 + $0x528] sm:$0xff]
    %v882 = vld [vmem:[#allocation8 + $0x530] sm:$0xff]
    %v883 = vld [vmem:[#allocation8 + $0x538] sm:$0xff]
    %v884 = vld [vmem:[#allocation8 + $0x540] sm:$0xff]
    %v885 = vld [vmem:[#allocation8 + $0x548] sm:$0xff]
    %v886 = vld [vmem:[#allocation8 + $0x550] sm:$0xff]
    %v887 = vld [vmem:[#allocation8 + $0x558] sm:$0xff]
    %v888 = vld [vmem:[#allocation8 + $0x560] sm:$0xff]
    %v889 = vld [vmem:[#allocation8 + $0x568] sm:$0xff]
    %v890 = vld [vmem:[#allocation8 + $0x570] sm:$0xff]
    %v891 = vld [vmem:[#allocation8 + $0x578] sm:$0xff]
    %v892 = vld [vmem:[#allocation8 + $0x580] sm:$0xff]
    %v893 = vld [vmem:[#allocation8 + $0x588] sm:$0xff]
    %v894 = vld [vmem:[#allocation8 + $0x590] sm:$0xff]
    %v895 = vld [vmem:[#allocation8 + $0x598] sm:$0xff]
    %v896 = vld [vmem:[#allocation8 + $0x5a0] sm:$0xff]
    %v897 = vld [vmem:[#allocation8 + $0x5a8] sm:$0xff]
    %v898 = vld [vmem:[#allocation8 + $0x5b0] sm:$0xff]
    %v899 = vld [vmem:[#allocation8 + $0x5b8] sm:$0xff]
    %v900 = vld [vmem:[#allocation8 + $0x5c0] sm:$0xff]
    %v901 = vld [vmem:[#allocation8 + $0x5c8] sm:$0xff]
    %v902 = vld [vmem:[#allocation8 + $0x5d0] sm:$0xff]
    %v903 = vld [vmem:[#allocation8 + $0x5d8] sm:$0xff]
    %v904 = vld [vmem:[#allocation8 + $0x5e0] sm:$0xff]
    %v905 = vld [vmem:[#allocation8 + $0x5e8] sm:$0xff]
    %v906 = vld [vmem:[#allocation8 + $0x5f0] sm:$0xff]
    %v907 = vld [vmem:[#allocation8 + $0x5f8] sm:$0xff]
    %v908 = vld [vmem:[#allocation8 + $0x600] sm:$0xff]
    %v909 = vld [vmem:[#allocation8 + $0x608] sm:$0xff]
    %v910 = vld [vmem:[#allocation8 + $0x610] sm:$0xff]
    %v911 = vld [vmem:[#allocation8 + $0x618] sm:$0xff]
    %v912 = vld [vmem:[#allocation8 + $0x620] sm:$0xff]
    %v913 = vld [vmem:[#allocation8 + $0x628] sm:$0xff]
    %v914 = vld [vmem:[#allocation8 + $0x630] sm:$0xff]
    %v915 = vld [vmem:[#allocation8 + $0x638] sm:$0xff]
    %v916 = vld [vmem:[#allocation8 + $0x640] sm:$0xff]
    %v917 = vld [vmem:[#allocation8 + $0x648] sm:$0xff]
    %v918 = vld [vmem:[#allocation8 + $0x650] sm:$0xff]
    %v919 = vld [vmem:[#allocation8 + $0x658] sm:$0xff]
    %v920 = vld [vmem:[#allocation8 + $0x660] sm:$0xff]
    %v921 = vld [vmem:[#allocation8 + $0x668] sm:$0xff]
    %v922 = vld [vmem:[#allocation8 + $0x670] sm:$0xff]
    %v923 = vld [vmem:[#allocation8 + $0x678] sm:$0xff]
    %v924 = vld [vmem:[#allocation8 + $0x680] sm:$0xff]
    %v925 = vld [vmem:[#allocation8 + $0x688] sm:$0xff]
    %v926 = vld [vmem:[#allocation8 + $0x690] sm:$0xff]
    %v927 = vld [vmem:[#allocation8 + $0x698] sm:$0xff]
    %v928 = vld [vmem:[#allocation8 + $0x6a0] sm:$0xff]
    %v929 = vld [vmem:[#allocation8 + $0x6a8] sm:$0xff]
    %v930 = vld [vmem:[#allocation8 + $0x6b0] sm:$0xff]
    %v931 = vld [vmem:[#allocation8 + $0x6b8] sm:$0xff]
    %v932 = vld [vmem:[#allocation8 + $0x6c0] sm:$0xff]
    %v933 = vld [vmem:[#allocation8 + $0x6c8] sm:$0xff]
    %v934 = vld [vmem:[#allocation8 + $0x6d0] sm:$0xff]
    %v935 = vld [vmem:[#allocation8 + $0x6d8] sm:$0xff]
    %v936 = vld [vmem:[#allocation8 + $0x6e0] sm:$0xff]
    %v937 = vld [vmem:[#allocation8 + $0x6e8] sm:$0xff]
    %v938 = vld [vmem:[#allocation8 + $0x6f0] sm:$0xff]
    %v939 = vld [vmem:[#allocation8 + $0x6f8] sm:$0xff]
    %v940 = vld [vmem:[#allocation8 + $0x700] sm:$0xff]
    %v941 = vld [vmem:[#allocation8 + $0x708] sm:$0xff]
    %v942 = vld [vmem:[#allocation8 + $0x710] sm:$0xff]
    %v943 = vld [vmem:[#allocation8 + $0x718] sm:$0xff]
    %v944 = vld [vmem:[#allocation8 + $0x720] sm:$0xff]
    %v945 = vld [vmem:[#allocation8 + $0x728] sm:$0xff]
    %v946 = vld [vmem:[#allocation8 + $0x730] sm:$0xff]
    %v947 = vld [vmem:[#allocation8 + $0x738] sm:$0xff]
    %v948 = vld [vmem:[#allocation8 + $0x740] sm:$0xff]
    %v949 = vld [vmem:[#allocation8 + $0x748] sm:$0xff]
    %v950 = vld [vmem:[#allocation8 + $0x750] sm:$0xff]
    %v951 = vld [vmem:[#allocation8 + $0x758] sm:$0xff]
    %v952 = vld [vmem:[#allocation8 + $0x760] sm:$0xff]
    %v953 = vld [vmem:[#allocation8 + $0x768] sm:$0xff]
    %v954 = vld [vmem:[#allocation8 + $0x770] sm:$0xff]
    %v955 = vld [vmem:[#allocation8 + $0x778] sm:$0xff]
    %v956 = vld [vmem:[#allocation8 + $0x780] sm:$0xff]
    %v957 = vld [vmem:[#allocation8 + $0x788] sm:$0xff]
    %v958 = vld [vmem:[#allocation8 + $0x790] sm:$0xff]
    %v959 = vld [vmem:[#allocation8 + $0x798] sm:$0xff]
    %v960 = vld [vmem:[#allocation8 + $0x7a0] sm:$0xff]
    %v961 = vld [vmem:[#allocation8 + $0x7a8] sm:$0xff]
    %v962 = vld [vmem:[#allocation8 + $0x7b0] sm:$0xff]
    %v963 = vld [vmem:[#allocation8 + $0x7b8] sm:$0xff]
    %v964 = vld [vmem:[#allocation8 + $0x7c0] sm:$0xff]
    %v965 = vld [vmem:[#allocation8 + $0x7c8] sm:$0xff]
    %v966 = vld [vmem:[#allocation8 + $0x7d0] sm:$0xff]
    %v967 = vld [vmem:[#allocation8 + $0x7d8] sm:$0xff]
    %v968 = vld [vmem:[#allocation8 + $0x7e0] sm:$0xff]
    %v969 = vld [vmem:[#allocation8 + $0x7e8] sm:$0xff]
    %v970 = vld [vmem:[#allocation8 + $0x7f0] sm:$0xff]
    %v971 = vld [vmem:[#allocation8 + $0x7f8] sm:$0xff]
    %v972 = vld [vmem:[#allocation8 + $0x800] sm:$0xff]
    %v973 = vld [vmem:[#allocation8 + $0x808] sm:$0xff]
    %v974 = vld [vmem:[#allocation8 + $0x810] sm:$0xff]
    %v975 = vld [vmem:[#allocation8 + $0x818] sm:$0xff]
    %v976 = vld [vmem:[#allocation8 + $0x820] sm:$0xff]
    %v977 = vld [vmem:[#allocation8 + $0x828] sm:$0xff]
    %v978 = vld [vmem:[#allocation8 + $0x830] sm:$0xff]
    %v979 = vld [vmem:[#allocation8 + $0x838] sm:$0xff]
    %v980 = vld [vmem:[#allocation8 + $0x840] sm:$0xff]
    %v981 = vld [vmem:[#allocation8 + $0x848] sm:$0xff]
    %v982 = vld [vmem:[#allocation8 + $0x850] sm:$0xff]
    %v983 = vld [vmem:[#allocation8 + $0x858] sm:$0xff]
    %v984 = vld [vmem:[#allocation8 + $0x860] sm:$0xff]
    %v985 = vld [vmem:[#allocation8 + $0x868] sm:$0xff]
    %v986 = vld [vmem:[#allocation8 + $0x870] sm:$0xff]
    %v987 = vld [vmem:[#allocation8 + $0x878] sm:$0xff]
    %v988 = vld [vmem:[#allocation8 + $0x880] sm:$0xff]
    %v989 = vld [vmem:[#allocation8 + $0x888] sm:$0xff]
    %v990 = vld [vmem:[#allocation8 + $0x890] sm:$0xff]
    %v991 = vld [vmem:[#allocation8 + $0x898] sm:$0xff]
    %v992 = vld [vmem:[#allocation8 + $0x8a0] sm:$0xff]
    %v993 = vld [vmem:[#allocation8 + $0x8a8] sm:$0xff]
    %v994 = vld [vmem:[#allocation8 + $0x8b0] sm:$0xff]
    %v995 = vld [vmem:[#allocation8 + $0x8b8] sm:$0xff]
    %v996 = vld [vmem:[#allocation8 + $0x8c0] sm:$0xff]
    %v997 = vld [vmem:[#allocation8 + $0x8c8] sm:$0xff]
    %v998 = vld [vmem:[#allocation8 + $0x8d0] sm:$0xff]
    %v999 = vld [vmem:[#allocation8 + $0x8d8] sm:$0xff]
    %v1000 = vld [vmem:[#allocation8 + $0x8e0] sm:$0xff]
    %v1001 = vld [vmem:[#allocation8 + $0x8e8] sm:$0xff]
    %v1002 = vld [vmem:[#allocation8 + $0x8f0] sm:$0xff]
    %v1003 = vld [vmem:[#allocation8 + $0x8f8] sm:$0xff]
    %v1004 = vld [vmem:[#allocation8 + $0x900] sm:$0xff]
    %v1005 = vld [vmem:[#allocation8 + $0x908] sm:$0xff]
    %v1006 = vld [vmem:[#allocation8 + $0x910] sm:$0xff]
    %v1007 = vld [vmem:[#allocation8 + $0x918] sm:$0xff]
    %v1008 = vld [vmem:[#allocation8 + $0x920] sm:$0xff]
    %v1009 = vld [vmem:[#allocation8 + $0x928] sm:$0xff]
    %v1010 = vld [vmem:[#allocation8 + $0x930] sm:$0xff]
    %v1011 = vld [vmem:[#allocation8 + $0x938] sm:$0xff]
    %v1012 = vld [vmem:[#allocation8 + $0x940] sm:$0xff]
    %v1013 = vld [vmem:[#allocation8 + $0x948] sm:$0xff]
    %v1014 = vld [vmem:[#allocation8 + $0x950] sm:$0xff]
    %v1015 = vld [vmem:[#allocation8 + $0x958] sm:$0xff]
    %v1016 = vld [vmem:[#allocation8 + $0x960] sm:$0xff]
    %v1017 = vld [vmem:[#allocation8 + $0x968] sm:$0xff]
    %v1018 = vld [vmem:[#allocation8 + $0x970] sm:$0xff]
    %v1019 = vld [vmem:[#allocation8 + $0x978] sm:$0xff]
    %v1020 = vld [vmem:[#allocation8 + $0x980] sm:$0xff]
    %v1021 = vld [vmem:[#allocation8 + $0x988] sm:$0xff]
    %v1022 = vld [vmem:[#allocation8 + $0x990] sm:$0xff]
    %v1023 = vld [vmem:[#allocation8 + $0x998] sm:$0xff]
    %v1024 = vld [vmem:[#allocation8 + $0x9a0] sm:$0xff]
    %v1025 = vld [vmem:[#allocation8 + $0x9a8] sm:$0xff]
    %v1026 = vld [vmem:[#allocation8 + $0x9b0] sm:$0xff]
    %v1027 = vld [vmem:[#allocation8 + $0x9b8] sm:$0xff]
    %v1028 = vld [vmem:[#allocation8 + $0x9c0] sm:$0xff]
    %v1029 = vld [vmem:[#allocation8 + $0x9c8] sm:$0xff]
    %v1030 = vld [vmem:[#allocation8 + $0x9d0] sm:$0xff]
    %v1031 = vld [vmem:[#allocation8 + $0x9d8] sm:$0xff]
    %v1032 = vld [vmem:[#allocation8 + $0x9e0] sm:$0xff]
    %v1033 = vld [vmem:[#allocation8 + $0x9e8] sm:$0xff]
    %v1034 = vld [vmem:[#allocation8 + $0x9f0] sm:$0xff]
    %v1035 = vld [vmem:[#allocation8 + $0x9f8] sm:$0xff]
    %v1036 = vld [vmem:[#allocation8 + $0xa00] sm:$0xff]
    %v1037 = vld [vmem:[#allocation8 + $0xa08] sm:$0xff]
    %v1038 = vld [vmem:[#allocation8 + $0xa10] sm:$0xff]
    %v1039 = vld [vmem:[#allocation8 + $0xa18] sm:$0xff]
    %v1040 = vld [vmem:[#allocation8 + $0xa20] sm:$0xff]
    %v1041 = vld [vmem:[#allocation8 + $0xa28] sm:$0xff]
    %v1042 = vld [vmem:[#allocation8 + $0xa30] sm:$0xff]
    %v1043 = vld [vmem:[#allocation8 + $0xa38] sm:$0xff]
    %v1044 = vld [vmem:[#allocation8 + $0xa40] sm:$0xff]
    %v1045 = vld [vmem:[#allocation8 + $0xa48] sm:$0xff]
    %v1046 = vld [vmem:[#allocation8 + $0xa50] sm:$0xff]
    %v1047 = vld [vmem:[#allocation8 + $0xa58] sm:$0xff]
    %v1048 = vld [vmem:[#allocation8 + $0xa60] sm:$0xff]
    %v1049 = vld [vmem:[#allocation8 + $0xa68] sm:$0xff]
    %v1050 = vld [vmem:[#allocation8 + $0xa70] sm:$0xff]
    %v1051 = vld [vmem:[#allocation8 + $0xa78] sm:$0xff]
    %v1052 = vld [vmem:[#allocation8 + $0xa80] sm:$0xff]
    %v1053 = vld [vmem:[#allocation8 + $0xa88] sm:$0xff]
    %v1054 = vld [vmem:[#allocation8 + $0xa90] sm:$0xff]
    %v1055 = vld [vmem:[#allocation8 + $0xa98] sm:$0xff]
    %v1056 = vld [vmem:[#allocation8 + $0xaa0] sm:$0xff]
    %v1057 = vld [vmem:[#allocation8 + $0xaa8] sm:$0xff]
    %v1058 = vld [vmem:[#allocation8 + $0xab0] sm:$0xff]
    %v1059 = vld [vmem:[#allocation8 + $0xab8] sm:$0xff]
    %v1060 = vld [vmem:[#allocation8 + $0xac0] sm:$0xff]
    %v1061 = vld [vmem:[#allocation8 + $0xac8] sm:$0xff]
    %v1062 = vld [vmem:[#allocation8 + $0xad0] sm:$0xff]
    %v1063 = vld [vmem:[#allocation8 + $0xad8] sm:$0xff]
    %v1064 = vld [vmem:[#allocation8 + $0xae0] sm:$0xff]
    %v1065 = vld [vmem:[#allocation8 + $0xae8] sm:$0xff]
    %v1066 = vld [vmem:[#allocation8 + $0xaf0] sm:$0xff]
    %v1067 = vld [vmem:[#allocation8 + $0xaf8] sm:$0xff]
    %v1068 = vld [vmem:[#allocation8 + $0xb00] sm:$0xff]
    %v1069 = vld [vmem:[#allocation8 + $0xb08] sm:$0xff]
    %v1070 = vld [vmem:[#allocation8 + $0xb10] sm:$0xff]
    %v1071 = vld [vmem:[#allocation8 + $0xb18] sm:$0xff]
    %v1072 = vld [vmem:[#allocation8 + $0xb20] sm:$0xff]
    %v1073 = vld [vmem:[#allocation8 + $0xb28] sm:$0xff]
    %v1074 = vld [vmem:[#allocation8 + $0xb30] sm:$0xff]
    %v1075 = vld [vmem:[#allocation8 + $0xb38] sm:$0xff]
    %v1076 = vld [vmem:[#allocation8 + $0xb40] sm:$0xff]
    %v1077 = vld [vmem:[#allocation8 + $0xb48] sm:$0xff]
    %v1078 = vld [vmem:[#allocation8 + $0xb50] sm:$0xff]
    %v1079 = vld [vmem:[#allocation8 + $0xb58] sm:$0xff]
    %v1080 = vld [vmem:[#allocation8 + $0xb60] sm:$0xff]
    %v1081 = vld [vmem:[#allocation8 + $0xb68] sm:$0xff]
    %v1082 = vld [vmem:[#allocation8 + $0xb70] sm:$0xff]
    %v1083 = vld [vmem:[#allocation8 + $0xb78] sm:$0xff]
    %v1084 = vld [vmem:[#allocation8 + $0xb80] sm:$0xff]
    %v1085 = vld [vmem:[#allocation8 + $0xb88] sm:$0xff]
    %v1086 = vld [vmem:[#allocation8 + $0xb90] sm:$0xff]
    %v1087 = vld [vmem:[#allocation8 + $0xb98] sm:$0xff]
    %v1088 = vld [vmem:[#allocation8 + $0xba0] sm:$0xff]
    %v1089 = vld [vmem:[#allocation8 + $0xba8] sm:$0xff]
    %v1090 = vld [vmem:[#allocation8 + $0xbb0] sm:$0xff]
    %v1091 = vld [vmem:[#allocation8 + $0xbb8] sm:$0xff]
    %v1092 = vld [vmem:[#allocation8 + $0xbc0] sm:$0xff]
    %v1093 = vld [vmem:[#allocation8 + $0xbc8] sm:$0xff]
    %v1094 = vld [vmem:[#allocation8 + $0xbd0] sm:$0xff]
    %v1095 = vld [vmem:[#allocation8 + $0xbd8] sm:$0xff]
    %v1096 = vld [vmem:[#allocation8 + $0xbe0] sm:$0xff]
    %v1097 = vld [vmem:[#allocation8 + $0xbe8] sm:$0xff]
    %v1098 = vld [vmem:[#allocation8 + $0xbf0] sm:$0xff]
    %v1099 = vld [vmem:[#allocation8 + $0xbf8] sm:$0xff]
    %v1100 = vld [vmem:[#allocation8 + $0xc00] sm:$0xff]
    %v1101 = vld [vmem:[#allocation8 + $0xc08] sm:$0xff]
    %v1102 = vld [vmem:[#allocation8 + $0xc10] sm:$0xff]
    %v1103 = vld [vmem:[#allocation8 + $0xc18] sm:$0xff]
    %v1104 = vld [vmem:[#allocation8 + $0xc20] sm:$0xff]
    %v1105 = vld [vmem:[#allocation8 + $0xc28] sm:$0xff]
    %v1106 = vld [vmem:[#allocation8 + $0xc30] sm:$0xff]
    %v1107 = vld [vmem:[#allocation8 + $0xc38] sm:$0xff]
    %v1108 = vld [vmem:[#allocation8 + $0xc40] sm:$0xff]
    %v1109 = vld [vmem:[#allocation8 + $0xc48] sm:$0xff]
    %v1110 = vld [vmem:[#allocation8 + $0xc50] sm:$0xff]
    %v1111 = vld [vmem:[#allocation8 + $0xc58] sm:$0xff]
    %v1112 = vld [vmem:[#allocation8 + $0xc60] sm:$0xff]
    %v1113 = vld [vmem:[#allocation8 + $0xc68] sm:$0xff]
    %v1114 = vld [vmem:[#allocation8 + $0xc70] sm:$0xff]
    %v1115 = vld [vmem:[#allocation8 + $0xc78] sm:$0xff]
    %v1116 = vld [vmem:[#allocation8 + $0xc80] sm:$0xff]
    %v1117 = vld [vmem:[#allocation8 + $0xc88] sm:$0xff]
    %v1118 = vld [vmem:[#allocation8 + $0xc90] sm:$0xff]
    %v1119 = vld [vmem:[#allocation8 + $0xc98] sm:$0xff]
    %v1120 = vld [vmem:[#allocation8 + $0xca0] sm:$0xff]
    %v1121 = vld [vmem:[#allocation8 + $0xca8] sm:$0xff]
    %v1122 = vld [vmem:[#allocation8 + $0xcb0] sm:$0xff]
    %v1123 = vld [vmem:[#allocation8 + $0xcb8] sm:$0xff]
    %v1124 = vld [vmem:[#allocation8 + $0xcc0] sm:$0xff]
    %v1125 = vld [vmem:[#allocation8 + $0xcc8] sm:$0xff]
    %v1126 = vld [vmem:[#allocation8 + $0xcd0] sm:$0xff]
    %v1127 = vld [vmem:[#allocation8 + $0xcd8] sm:$0xff]
    %v1128 = vld [vmem:[#allocation8 + $0xce0] sm:$0xff]
    %v1129 = vld [vmem:[#allocation8 + $0xce8] sm:$0xff]
    %v1130 = vld [vmem:[#allocation8 + $0xcf0] sm:$0xff]
    %v1131 = vld [vmem:[#allocation8 + $0xcf8] sm:$0xff]
    %v1132 = vld [vmem:[#allocation8 + $0xd00] sm:$0xff]
    %v1133 = vld [vmem:[#allocation8 + $0xd08] sm:$0xff]
    %v1134 = vld [vmem:[#allocation8 + $0xd10] sm:$0xff]
    %v1135 = vld [vmem:[#allocation8 + $0xd18] sm:$0xff]
    %v1136 = vld [vmem:[#allocation8 + $0xd20] sm:$0xff]
    %v1137 = vld [vmem:[#allocation8 + $0xd28] sm:$0xff]
    %v1138 = vld [vmem:[#allocation8 + $0xd30] sm:$0xff]
    %v1139 = vld [vmem:[#allocation8 + $0xd38] sm:$0xff]
    %v1140 = vld [vmem:[#allocation8 + $0xd40] sm:$0xff]
    %v1141 = vld [vmem:[#allocation8 + $0xd48] sm:$0xff]
    %v1142 = vld [vmem:[#allocation8 + $0xd50] sm:$0xff]
    %v1143 = vld [vmem:[#allocation8 + $0xd58] sm:$0xff]
    %v1144 = vld [vmem:[#allocation8 + $0xd60] sm:$0xff]
    %v1145 = vld [vmem:[#allocation8 + $0xd68] sm:$0xff]
    %v1146 = vld [vmem:[#allocation8 + $0xd70] sm:$0xff]
    %v1147 = vld [vmem:[#allocation8 + $0xd78] sm:$0xff]
    %v1148 = vld [vmem:[#allocation8 + $0xd80] sm:$0xff]
    %v1149 = vld [vmem:[#allocation8 + $0xd88] sm:$0xff]
    %v1150 = vld [vmem:[#allocation8 + $0xd90] sm:$0xff]
    %v1151 = vld [vmem:[#allocation8 + $0xd98] sm:$0xff]
    %v1152 = vld [vmem:[#allocation8 + $0xda0] sm:$0xff]
    %v1153 = vld [vmem:[#allocation8 + $0xda8] sm:$0xff]
    %v1154 = vld [vmem:[#allocation8 + $0xdb0] sm:$0xff]
    %v1155 = vld [vmem:[#allocation8 + $0xdb8] sm:$0xff]
    %v1156 = vld [vmem:[#allocation8 + $0xdc0] sm:$0xff]
    %v1157 = vld [vmem:[#allocation8 + $0xdc8] sm:$0xff]
    %v1158 = vld [vmem:[#allocation8 + $0xdd0] sm:$0xff]
    %v1159 = vld [vmem:[#allocation8 + $0xdd8] sm:$0xff]
    %v1160 = vld [vmem:[#allocation8 + $0xde0] sm:$0xff]
    %v1161 = vld [vmem:[#allocation8 + $0xde8] sm:$0xff]
    %v1162 = vld [vmem:[#allocation8 + $0xdf0] sm:$0xff]
    %v1163 = vld [vmem:[#allocation8 + $0xdf8] sm:$0xff]
    %v1164 = vld [vmem:[#allocation8 + $0xe00] sm:$0xff]
    %v1165 = vld [vmem:[#allocation8 + $0xe08] sm:$0xff]
    %v1166 = vld [vmem:[#allocation8 + $0xe10] sm:$0xff]
    %v1167 = vld [vmem:[#allocation8 + $0xe18] sm:$0xff]
    %v1168 = vld [vmem:[#allocation8 + $0xe20] sm:$0xff]
    %v1169 = vld [vmem:[#allocation8 + $0xe28] sm:$0xff]
    %v1170 = vld [vmem:[#allocation8 + $0xe30] sm:$0xff]
    %v1171 = vld [vmem:[#allocation8 + $0xe38] sm:$0xff]
    %v1172 = vld [vmem:[#allocation8 + $0xe40] sm:$0xff]
    %v1173 = vld [vmem:[#allocation8 + $0xe48] sm:$0xff]
    %v1174 = vld [vmem:[#allocation8 + $0xe50] sm:$0xff]
    %v1175 = vld [vmem:[#allocation8 + $0xe58] sm:$0xff]
    %v1176 = vld [vmem:[#allocation8 + $0xe60] sm:$0xff]
    %v1177 = vld [vmem:[#allocation8 + $0xe68] sm:$0xff]
    %v1178 = vld [vmem:[#allocation8 + $0xe70] sm:$0xff]
    %v1179 = vld [vmem:[#allocation8 + $0xe78] sm:$0xff]
    %v1180 = vld [vmem:[#allocation8 + $0xe80] sm:$0xff]
    %v1181 = vld [vmem:[#allocation8 + $0xe88] sm:$0xff]
    %v1182 = vld [vmem:[#allocation8 + $0xe90] sm:$0xff]
    %v1183 = vld [vmem:[#allocation8 + $0xe98] sm:$0xff]
    %v1184 = vld [vmem:[#allocation8 + $0xea0] sm:$0xff]
    %v1185 = vld [vmem:[#allocation8 + $0xea8] sm:$0xff]
    %v1186 = vld [vmem:[#allocation8 + $0xeb0] sm:$0xff]
    %v1187 = vld [vmem:[#allocation8 + $0xeb8] sm:$0xff]
    %v1188 = vld [vmem:[#allocation8 + $0xec0] sm:$0xff]
    %v1189 = vld [vmem:[#allocation8 + $0xec8] sm:$0xff]
    %v1190 = vld [vmem:[#allocation8 + $0xed0] sm:$0xff]
    %v1191 = vld [vmem:[#allocation8 + $0xed8] sm:$0xff]
    %v1192 = vld [vmem:[#allocation8 + $0xee0] sm:$0xff]
    %v1193 = vld [vmem:[#allocation8 + $0xee8] sm:$0xff]
    %v1194 = vld [vmem:[#allocation8 + $0xef0] sm:$0xff]
    %v1195 = vld [vmem:[#allocation8 + $0xef8] sm:$0xff]
    %v1196 = vld [vmem:[#allocation8 + $0xf00] sm:$0xff]
    %v1197 = vld [vmem:[#allocation8 + $0xf08] sm:$0xff]
    %v1198 = vld [vmem:[#allocation8 + $0xf10] sm:$0xff]
    %v1199 = vld [vmem:[#allocation8 + $0xf18] sm:$0xff]
    %v1200 = vld [vmem:[#allocation8 + $0xf20] sm:$0xff]
    %v1201 = vld [vmem:[#allocation8 + $0xf28] sm:$0xff]
    %v1202 = vld [vmem:[#allocation8 + $0xf30] sm:$0xff]
    %v1203 = vld [vmem:[#allocation8 + $0xf38] sm:$0xff]
    %v1204 = vld [vmem:[#allocation8 + $0xf40] sm:$0xff]
    %v1205 = vld [vmem:[#allocation8 + $0xf48] sm:$0xff]
    %v1206 = vld [vmem:[#allocation8 + $0xf50] sm:$0xff]
    %v1207 = vld [vmem:[#allocation8 + $0xf58] sm:$0xff]
    %v1208 = vld [vmem:[#allocation8 + $0xf60] sm:$0xff]
    %v1209 = vld [vmem:[#allocation8 + $0xf68] sm:$0xff]
    %v1210 = vld [vmem:[#allocation8 + $0xf70] sm:$0xff]
    %v1211 = vld [vmem:[#allocation8 + $0xf78] sm:$0xff]
    %v1212 = vld [vmem:[#allocation8 + $0xf80] sm:$0xff]
    %v1213 = vld [vmem:[#allocation8 + $0xf88] sm:$0xff]
    %v1214 = vld [vmem:[#allocation8 + $0xf90] sm:$0xff]
    %v1215 = vld [vmem:[#allocation8 + $0xf98] sm:$0xff]
    %v1216 = vld [vmem:[#allocation8 + $0xfa0] sm:$0xff]
    %v1217 = vld [vmem:[#allocation8 + $0xfa8] sm:$0xff]
    %v1218 = vld [vmem:[#allocation8 + $0xfb0] sm:$0xff]
    %v1219 = vld [vmem:[#allocation8 + $0xfb8] sm:$0xff]
    %v1220 = vld [vmem:[#allocation8 + $0xfc0] sm:$0xff]
    %v1221 = vld [vmem:[#allocation8 + $0xfc8] sm:$0xff]
    %v1222 = vld [vmem:[#allocation8 + $0xfd0] sm:$0xff]
    %v1223 = vld [vmem:[#allocation8 + $0xfd8] sm:$0xff]
    %v1224 = vld [vmem:[#allocation8 + $0xfe0] sm:$0xff]
    %v1225 = vld [vmem:[#allocation8 + $0xfe8] sm:$0xff]
    %v1226 = vld [vmem:[#allocation8 + $0xff0] sm:$0xff]
    %v1227 = vld [vmem:[#allocation8 + $0xff8] sm:$0xff]
    %v1228 = vld [vmem:[#allocation8 + $0x1000] sm:$0xff]
    %v1229 = vld [vmem:[#allocation8 + $0x1008] sm:$0xff]
    %v1230 = vld [vmem:[#allocation8 + $0x1010] sm:$0xff]
    %v1231 = vld [vmem:[#allocation8 + $0x1018] sm:$0xff]
    %v1232 = vld [vmem:[#allocation8 + $0x1020] sm:$0xff]
    %v1233 = vld [vmem:[#allocation8 + $0x1028] sm:$0xff]
    %v1234 = vld [vmem:[#allocation8 + $0x1030] sm:$0xff]
    %v1235 = vld [vmem:[#allocation8 + $0x1038] sm:$0xff]
    %v1236 = vld [vmem:[#allocation8 + $0x1040] sm:$0xff]
    %v1237 = vld [vmem:[#allocation8 + $0x1048] sm:$0xff]
    %v1238 = vld [vmem:[#allocation8 + $0x1050] sm:$0xff]
    %v1239 = vld [vmem:[#allocation8 + $0x1058] sm:$0xff]
    %v1240 = vld [vmem:[#allocation8 + $0x1060] sm:$0xff]
    %v1241 = vld [vmem:[#allocation8 + $0x1068] sm:$0xff]
    %v1242 = vld [vmem:[#allocation8 + $0x1070] sm:$0xff]
    %v1243 = vld [vmem:[#allocation8 + $0x1078] sm:$0xff]
    %v1244 = vld [vmem:[#allocation8 + $0x1080] sm:$0xff]
    %v1245 = vld [vmem:[#allocation8 + $0x1088] sm:$0xff]
    %v1246 = vld [vmem:[#allocation8 + $0x1090] sm:$0xff]
    %v1247 = vld [vmem:[#allocation8 + $0x1098] sm:$0xff]
    %v1248 = vld [vmem:[#allocation8 + $0x10a0] sm:$0xff]
    %v1249 = vld [vmem:[#allocation8 + $0x10a8] sm:$0xff]
    %v1250 = vld [vmem:[#allocation8 + $0x10b0] sm:$0xff]
    %v1251 = vld [vmem:[#allocation8 + $0x10b8] sm:$0xff]
    %v1252 = vld [vmem:[#allocation8 + $0x10c0] sm:$0xff]
    %v1253 = vld [vmem:[#allocation8 + $0x10c8] sm:$0xff]
    %v1254 = vld [vmem:[#allocation8 + $0x10d0] sm:$0xff]
    %v1255 = vld [vmem:[#allocation8 + $0x10d8] sm:$0xff]
    %v1256 = vld [vmem:[#allocation8 + $0x10e0] sm:$0xff]
    %v1257 = vld [vmem:[#allocation8 + $0x10e8] sm:$0xff]
    %v1258 = vld [vmem:[#allocation8 + $0x10f0] sm:$0xff]
    %v1259 = vld [vmem:[#allocation8 + $0x10f8] sm:$0xff]
    %v1260 = vld [vmem:[#allocation8 + $0x1100] sm:$0xff]
    %v1261 = vld [vmem:[#allocation8 + $0x1108] sm:$0xff]
    %v1262 = vld [vmem:[#allocation8 + $0x1110] sm:$0xff]
    %v1263 = vld [vmem:[#allocation8 + $0x1118] sm:$0xff]
    %v1264 = vld [vmem:[#allocation8 + $0x1120] sm:$0xff]
    %v1265 = vld [vmem:[#allocation8 + $0x1128] sm:$0xff]
    %v1266 = vld [vmem:[#allocation8 + $0x1130] sm:$0xff]
    %v1267 = vld [vmem:[#allocation8 + $0x1138] sm:$0xff]
    %v1268 = vld [vmem:[#allocation8 + $0x1140] sm:$0xff]
    %v1269 = vld [vmem:[#allocation8 + $0x1148] sm:$0xff]
    %v1270 = vld [vmem:[#allocation8 + $0x1150] sm:$0xff]
    %v1271 = vld [vmem:[#allocation8 + $0x1158] sm:$0xff]
    %v1272 = vld [vmem:[#allocation8 + $0x1160] sm:$0xff]
    %v1273 = vld [vmem:[#allocation8 + $0x1168] sm:$0xff]
    %v1274 = vld [vmem:[#allocation8 + $0x1170] sm:$0xff]
    %v1275 = vld [vmem:[#allocation8 + $0x1178] sm:$0xff]
    %v1276 = vld [vmem:[#allocation8 + $0x1180] sm:$0xff]
    %v1277 = vld [vmem:[#allocation8 + $0x1188] sm:$0xff]
    %v1278 = vld [vmem:[#allocation8 + $0x1190] sm:$0xff]
    %v1279 = vld [vmem:[#allocation8 + $0x1198] sm:$0xff]
    %v1280 = vld [vmem:[#allocation8 + $0x11a0] sm:$0xff]
    %v1281 = vld [vmem:[#allocation8 + $0x11a8] sm:$0xff]
    %v1282 = vld [vmem:[#allocation8 + $0x11b0] sm:$0xff]
    %v1283 = vld [vmem:[#allocation8 + $0x11b8] sm:$0xff]
    %v1284 = vld [vmem:[#allocation8 + $0x11c0] sm:$0xff]
    %v1285 = vld [vmem:[#allocation8 + $0x11c8] sm:$0xff]
    %v1286 = vld [vmem:[#allocation8 + $0x11d0] sm:$0xff]
    %v1287 = vld [vmem:[#allocation8 + $0x11d8] sm:$0xff]
    %v1288 = vld [vmem:[#allocation8 + $0x11e0] sm:$0xff]
    %v1289 = vld [vmem:[#allocation8 + $0x11e8] sm:$0xff]
    %v1290 = vld [vmem:[#allocation8 + $0x11f0] sm:$0xff]
    %v1291 = vld [vmem:[#allocation8 + $0x11f8] sm:$0xff]
    %1292 = vmatpush.msra.mxu0 %v806
    %1293 = vmatpush.msra.mxu0 %v800
    %1294 = vmatpush.msra.mxu0 %v794
    %1295 = vmatpush.msra.mxu0 %v788
    %1296 = vmatpush.msra.mxu0 %v782
    %1297 = vmatpush.msra.mxu0 %v776
    %1298 = vmatpush.msra.mxu0 %v770
    %1299 = vmatpush.msra.mxu0 %v764
    %1300 = vmatpush.msra.mxu0 %v758
    %1301 = vmatpush.msra.mxu0 %v752
    %1302 = vmatpush.msra.mxu0 %v746
    %1303 = vmatpush.msra.mxu0 %v740
    %1304 = vmatpush.msra.mxu0 %v734
    %1305 = vmatpush.msra.mxu0 %v728
    %1306 = vmatpush.msra.mxu0 %v722
    %1307 = vmatpush.msra.mxu0 %v716
    %1308 = vmatmul.f32.gmra.mxu0 %v710
    %v1309 = vpop.f32.mrf.mxu0
    %v1310 = vadd.f32 0.0, %v1309
    %1311 = vdwg.mxu0
    %1312 = vmatpush.msra.mxu0 %v902
    %1313 = vmatpush.msra.mxu0 %v896
    %1314 = vmatpush.msra.mxu0 %v890
    %1315 = vmatpush.msra.mxu0 %v884
    %1316 = vmatpush.msra.mxu0 %v878
    %1317 = vmatpush.msra.mxu0 %v872
    %1318 = vmatpush.msra.mxu0 %v866
    %1319 = vmatpush.msra.mxu0 %v860
    %1320 = vmatpush.msra.mxu0 %v854
    %1321 = vmatpush.msra.mxu0 %v848
    %1322 = vmatpush.msra.mxu0 %v842
    %1323 = vmatpush.msra.mxu0 %v836
    %1324 = vmatpush.msra.mxu0 %v830
    %1325 = vmatpush.msra.mxu0 %v824
    %1326 = vmatpush.msra.mxu0 %v818
    %1327 = vmatpush.msra.mxu0 %v812
    %1328 = vmatmul.f32.gmra.mxu0 %v711
    %v1329 = vpop.f32.mrf.mxu0
    %v1330 = vadd.f32 %v1310, %v1329
    %1331 = vdwg.mxu0
    %1332 = vmatpush.msra.mxu0 %v998
    %1333 = vmatpush.msra.mxu0 %v992
    %1334 = vmatpush.msra.mxu0 %v986
    %1335 = vmatpush.msra.mxu0 %v980
    %1336 = vmatpush.msra.mxu0 %v974
    %1337 = vmatpush.msra.mxu0 %v968
    %1338 = vmatpush.msra.mxu0 %v962
    %1339 = vmatpush.msra.mxu0 %v956
    %1340 = vmatpush.msra.mxu0 %v950
    %1341 = vmatpush.msra.mxu0 %v944
    %1342 = vmatpush.msra.mxu0 %v938
    %1343 = vmatpush.msra.mxu0 %v932
    %1344 = vmatpush.msra.mxu0 %v926
    %1345 = vmatpush.msra.mxu0 %v920
    %1346 = vmatpush.msra.mxu0 %v914
    %1347 = vmatpush.msra.mxu0 %v908
    %1348 = vmatmul.f32.gmra.mxu0 %v712
    %v1349 = vpop.f32.mrf.mxu0
    %v1350 = vadd.f32 %v1330, %v1349
    %1351 = vdwg.mxu0
    %1352 = vmatpush.msra.mxu0 %v1094
    %1353 = vmatpush.msra.mxu0 %v1088
    %1354 = vmatpush.msra.mxu0 %v1082
    %1355 = vmatpush.msra.mxu0 %v1076
    %1356 = vmatpush.msra.mxu0 %v1070
    %1357 = vmatpush.msra.mxu0 %v1064
    %1358 = vmatpush.msra.mxu0 %v1058
    %1359 = vmatpush.msra.mxu0 %v1052
    %1360 = vmatpush.msra.mxu0 %v1046
    %1361 = vmatpush.msra.mxu0 %v1040
    %1362 = vmatpush.msra.mxu0 %v1034
    %1363 = vmatpush.msra.mxu0 %v1028
    %1364 = vmatpush.msra.mxu0 %v1022
    %1365 = vmatpush.msra.mxu0 %v1016
    %1366 = vmatpush.msra.mxu0 %v1010
    %1367 = vmatpush.msra.mxu0 %v1004
    %1368 = vmatmul.f32.gmra.mxu0 %v713
    %v1369 = vpop.f32.mrf.mxu0
    %v1370 = vadd.f32 %v1350, %v1369
    %1371 = vdwg.mxu0
    %1372 = vmatpush.msra.mxu0 %v1190
    %1373 = vmatpush.msra.mxu0 %v1184
    %1374 = vmatpush.msra.mxu0 %v1178
    %1375 = vmatpush.msra.mxu0 %v1172
    %1376 = vmatpush.msra.mxu0 %v1166
    %1377 = vmatpush.msra.mxu0 %v1160
    %1378 = vmatpush.msra.mxu0 %v1154
    %1379 = vmatpush.msra.mxu0 %v1148
    %1380 = vmatpush.msra.mxu0 %v1142
    %1381 = vmatpush.msra.mxu0 %v1136
    %1382 = vmatpush.msra.mxu0 %v1130
    %1383 = vmatpush.msra.mxu0 %v1124
    %1384 = vmatpush.msra.mxu0 %v1118
    %1385 = vmatpush.msra.mxu0 %v1112
    %1386 = vmatpush.msra.mxu0 %v1106
    %1387 = vmatpush.msra.mxu0 %v1100
    %1388 = vmatmul.f32.gmra.mxu0 %v714
    %v1389 = vpop.f32.mrf.mxu0
    %v1390 = vadd.f32 %v1370, %v1389
    %1391 = vdwg.mxu0
    %1392 = vmatpush.msra.mxu0 %v1286
    %1393 = vmatpush.msra.mxu0 %v1280
    %1394 = vmatpush.msra.mxu0 %v1274
    %1395 = vmatpush.msra.mxu0 %v1268
    %1396 = vmatpush.msra.mxu0 %v1262
    %1397 = vmatpush.msra.mxu0 %v1256
    %1398 = vmatpush.msra.mxu0 %v1250
    %1399 = vmatpush.msra.mxu0 %v1244
    %1400 = vmatpush.msra.mxu0 %v1238
    %1401 = vmatpush.msra.mxu0 %v1232
    %1402 = vmatpush.msra.mxu0 %v1226
    %1403 = vmatpush.msra.mxu0 %v1220
    %1404 = vmatpush.msra.mxu0 %v1214
    %1405 = vmatpush.msra.mxu0 %v1208
    %1406 = vmatpush.msra.mxu0 %v1202
    %1407 = vmatpush.msra.mxu0 %v1196
    %1408 = vmatmul.f32.gmra.mxu0 %v715
    %v1409 = vpop.f32.mrf.mxu0
    %v1410 = vadd.f32 %v1390, %v1409
    %1411 = vdwg.mxu0
    %1412 = vmatpush.msra.mxu0 %v807
    %1413 = vmatpush.msra.mxu0 %v801
    %1414 = vmatpush.msra.mxu0 %v795
    %1415 = vmatpush.msra.mxu0 %v789
    %1416 = vmatpush.msra.mxu0 %v783
    %1417 = vmatpush.msra.mxu0 %v777
    %1418 = vmatpush.msra.mxu0 %v771
    %1419 = vmatpush.msra.mxu0 %v765
    %1420 = vmatpush.msra.mxu0 %v759
    %1421 = vmatpush.msra.mxu0 %v753
    %1422 = vmatpush.msra.mxu0 %v747
    %1423 = vmatpush.msra.mxu0 %v741
    %1424 = vmatpush.msra.mxu0 %v735
    %1425 = vmatpush.msra.mxu0 %v729
    %1426 = vmatpush.msra.mxu0 %v723
    %1427 = vmatpush.msra.mxu0 %v717
    %1428 = vmatmul.f32.gmra.mxu0 %v710
    %v1429 = vpop.f32.mrf.mxu0
    %v1430 = vadd.f32 0.0, %v1429
    %1431 = vdwg.mxu0
    %1432 = vmatpush.msra.mxu0 %v903
    %1433 = vmatpush.msra.mxu0 %v897
    %1434 = vmatpush.msra.mxu0 %v891
    %1435 = vmatpush.msra.mxu0 %v885
    %1436 = vmatpush.msra.mxu0 %v879
    %1437 = vmatpush.msra.mxu0 %v873
    %1438 = vmatpush.msra.mxu0 %v867
    %1439 = vmatpush.msra.mxu0 %v861
    %1440 = vmatpush.msra.mxu0 %v855
    %1441 = vmatpush.msra.mxu0 %v849
    %1442 = vmatpush.msra.mxu0 %v843
    %1443 = vmatpush.msra.mxu0 %v837
    %1444 = vmatpush.msra.mxu0 %v831
    %1445 = vmatpush.msra.mxu0 %v825
    %1446 = vmatpush.msra.mxu0 %v819
    %1447 = vmatpush.msra.mxu0 %v813
    %1448 = vmatmul.f32.gmra.mxu0 %v711
    %v1449 = vpop.f32.mrf.mxu0
    %v1450 = vadd.f32 %v1430, %v1449
    %1451 = vdwg.mxu0
    %1452 = vmatpush.msra.mxu0 %v999
    %1453 = vmatpush.msra.mxu0 %v993
    %1454 = vmatpush.msra.mxu0 %v987
    %1455 = vmatpush.msra.mxu0 %v981
    %1456 = vmatpush.msra.mxu0 %v975
    %1457 = vmatpush.msra.mxu0 %v969
    %1458 = vmatpush.msra.mxu0 %v963
    %1459 = vmatpush.msra.mxu0 %v957
    %1460 = vmatpush.msra.mxu0 %v951
    %1461 = vmatpush.msra.mxu0 %v945
    %1462 = vmatpush.msra.mxu0 %v939
    %1463 = vmatpush.msra.mxu0 %v933
    %1464 = vmatpush.msra.mxu0 %v927
    %1465 = vmatpush.msra.mxu0 %v921
    %1466 = vmatpush.msra.mxu0 %v915
    %1467 = vmatpush.msra.mxu0 %v909
    %1468 = vmatmul.f32.gmra.mxu0 %v712
    %v1469 = vpop.f32.mrf.mxu0
    %v1470 = vadd.f32 %v1450, %v1469
    %1471 = vdwg.mxu0
    %1472 = vmatpush.msra.mxu0 %v1095
    %1473 = vmatpush.msra.mxu0 %v1089
    %1474 = vmatpush.msra.mxu0 %v1083
    %1475 = vmatpush.msra.mxu0 %v1077
    %1476 = vmatpush.msra.mxu0 %v1071
    %1477 = vmatpush.msra.mxu0 %v1065
    %1478 = vmatpush.msra.mxu0 %v1059
    %1479 = vmatpush.msra.mxu0 %v1053
    %1480 = vmatpush.msra.mxu0 %v1047
    %1481 = vmatpush.msra.mxu0 %v1041
    %1482 = vmatpush.msra.mxu0 %v1035
    %1483 = vmatpush.msra.mxu0 %v1029
    %1484 = vmatpush.msra.mxu0 %v1023
    %1485 = vmatpush.msra.mxu0 %v1017
    %1486 = vmatpush.msra.mxu0 %v1011
    %1487 = vmatpush.msra.mxu0 %v1005
    %1488 = vmatmul.f32.gmra.mxu0 %v713
    %v1489 = vpop.f32.mrf.mxu0
    %v1490 = vadd.f32 %v1470, %v1489
    %1491 = vdwg.mxu0
    %1492 = vmatpush.msra.mxu0 %v1191
    %1493 = vmatpush.msra.mxu0 %v1185
    %1494 = vmatpush.msra.mxu0 %v1179
    %1495 = vmatpush.msra.mxu0 %v1173
    %1496 = vmatpush.msra.mxu0 %v1167
    %1497 = vmatpush.msra.mxu0 %v1161
    %1498 = vmatpush.msra.mxu0 %v1155
    %1499 = vmatpush.msra.mxu0 %v1149
    %1500 = vmatpush.msra.mxu0 %v1143
    %1501 = vmatpush.msra.mxu0 %v1137
    %1502 = vmatpush.msra.mxu0 %v1131
    %1503 = vmatpush.msra.mxu0 %v1125
    %1504 = vmatpush.msra.mxu0 %v1119
    %1505 = vmatpush.msra.mxu0 %v1113
    %1506 = vmatpush.msra.mxu0 %v1107
    %1507 = vmatpush.msra.mxu0 %v1101
    %1508 = vmatmul.f32.gmra.mxu0 %v714
    %v1509 = vpop.f32.mrf.mxu0
    %v1510 = vadd.f32 %v1490, %v1509
    %1511 = vdwg.mxu0
    %1512 = vmatpush.msra.mxu0 %v1287
    %1513 = vmatpush.msra.mxu0 %v1281
    %1514 = vmatpush.msra.mxu0 %v1275
    %1515 = vmatpush.msra.mxu0 %v1269
    %1516 = vmatpush.msra.mxu0 %v1263
    %1517 = vmatpush.msra.mxu0 %v1257
    %1518 = vmatpush.msra.mxu0 %v1251
    %1519 = vmatpush.msra.mxu0 %v1245
    %1520 = vmatpush.msra.mxu0 %v1239
    %1521 = vmatpush.msra.mxu0 %v1233
    %1522 = vmatpush.msra.mxu0 %v1227
    %1523 = vmatpush.msra.mxu0 %v1221
    %1524 = vmatpush.msra.mxu0 %v1215
    %1525 = vmatpush.msra.mxu0 %v1209
    %1526 = vmatpush.msra.mxu0 %v1203
    %1527 = vmatpush.msra.mxu0 %v1197
    %1528 = vmatmul.f32.gmra.mxu0 %v715
    %v1529 = vpop.f32.mrf.mxu0
    %v1530 = vadd.f32 %v1510, %v1529
    %1531 = vdwg.mxu0
    %1532 = vmatpush.msra.mxu0 %v808
    %1533 = vmatpush.msra.mxu0 %v802
    %1534 = vmatpush.msra.mxu0 %v796
    %1535 = vmatpush.msra.mxu0 %v790
    %1536 = vmatpush.msra.mxu0 %v784
    %1537 = vmatpush.msra.mxu0 %v778
    %1538 = vmatpush.msra.mxu0 %v772
    %1539 = vmatpush.msra.mxu0 %v766
    %1540 = vmatpush.msra.mxu0 %v760
    %1541 = vmatpush.msra.mxu0 %v754
    %1542 = vmatpush.msra.mxu0 %v748
    %1543 = vmatpush.msra.mxu0 %v742
    %1544 = vmatpush.msra.mxu0 %v736
    %1545 = vmatpush.msra.mxu0 %v730
    %1546 = vmatpush.msra.mxu0 %v724
    %1547 = vmatpush.msra.mxu0 %v718
    %1548 = vmatmul.f32.gmra.mxu0 %v710
    %v1549 = vpop.f32.mrf.mxu0
    %v1550 = vadd.f32 0.0, %v1549
    %1551 = vdwg.mxu0
    %1552 = vmatpush.msra.mxu0 %v904
    %1553 = vmatpush.msra.mxu0 %v898
    %1554 = vmatpush.msra.mxu0 %v892
    %1555 = vmatpush.msra.mxu0 %v886
    %1556 = vmatpush.msra.mxu0 %v880
    %1557 = vmatpush.msra.mxu0 %v874
    %1558 = vmatpush.msra.mxu0 %v868
    %1559 = vmatpush.msra.mxu0 %v862
    %1560 = vmatpush.msra.mxu0 %v856
    %1561 = vmatpush.msra.mxu0 %v850
    %1562 = vmatpush.msra.mxu0 %v844
    %1563 = vmatpush.msra.mxu0 %v838
    %1564 = vmatpush.msra.mxu0 %v832
    %1565 = vmatpush.msra.mxu0 %v826
    %1566 = vmatpush.msra.mxu0 %v820
    %1567 = vmatpush.msra.mxu0 %v814
    %1568 = vmatmul.f32.gmra.mxu0 %v711
    %v1569 = vpop.f32.mrf.mxu0
    %v1570 = vadd.f32 %v1550, %v1569
    %1571 = vdwg.mxu0
    %1572 = vmatpush.msra.mxu0 %v1000
    %1573 = vmatpush.msra.mxu0 %v994
    %1574 = vmatpush.msra.mxu0 %v988
    %1575 = vmatpush.msra.mxu0 %v982
    %1576 = vmatpush.msra.mxu0 %v976
    %1577 = vmatpush.msra.mxu0 %v970
    %1578 = vmatpush.msra.mxu0 %v964
    %1579 = vmatpush.msra.mxu0 %v958
    %1580 = vmatpush.msra.mxu0 %v952
    %1581 = vmatpush.msra.mxu0 %v946
    %1582 = vmatpush.msra.mxu0 %v940
    %1583 = vmatpush.msra.mxu0 %v934
    %1584 = vmatpush.msra.mxu0 %v928
    %1585 = vmatpush.msra.mxu0 %v922
    %1586 = vmatpush.msra.mxu0 %v916
    %1587 = vmatpush.msra.mxu0 %v910
    %1588 = vmatmul.f32.gmra.mxu0 %v712
    %v1589 = vpop.f32.mrf.mxu0
    %v1590 = vadd.f32 %v1570, %v1589
    %1591 = vdwg.mxu0
    %1592 = vmatpush.msra.mxu0 %v1096
    %1593 = vmatpush.msra.mxu0 %v1090
    %1594 = vmatpush.msra.mxu0 %v1084
    %1595 = vmatpush.msra.mxu0 %v1078
    %1596 = vmatpush.msra.mxu0 %v1072
    %1597 = vmatpush.msra.mxu0 %v1066
    %1598 = vmatpush.msra.mxu0 %v1060
    %1599 = vmatpush.msra.mxu0 %v1054
    %1600 = vmatpush.msra.mxu0 %v1048
    %1601 = vmatpush.msra.mxu0 %v1042
    %1602 = vmatpush.msra.mxu0 %v1036
    %1603 = vmatpush.msra.mxu0 %v1030
    %1604 = vmatpush.msra.mxu0 %v1024
    %1605 = vmatpush.msra.mxu0 %v1018
    %1606 = vmatpush.msra.mxu0 %v1012
    %1607 = vmatpush.msra.mxu0 %v1006
    %1608 = vmatmul.f32.gmra.mxu0 %v713
    %v1609 = vpop.f32.mrf.mxu0
    %v1610 = vadd.f32 %v1590, %v1609
    %1611 = vdwg.mxu0
    %1612 = vmatpush.msra.mxu0 %v1192
    %1613 = vmatpush.msra.mxu0 %v1186
    %1614 = vmatpush.msra.mxu0 %v1180
    %1615 = vmatpush.msra.mxu0 %v1174
    %1616 = vmatpush.msra.mxu0 %v1168
    %1617 = vmatpush.msra.mxu0 %v1162
    %1618 = vmatpush.msra.mxu0 %v1156
    %1619 = vmatpush.msra.mxu0 %v1150
    %1620 = vmatpush.msra.mxu0 %v1144
    %1621 = vmatpush.msra.mxu0 %v1138
    %1622 = vmatpush.msra.mxu0 %v1132
    %1623 = vmatpush.msra.mxu0 %v1126
    %1624 = vmatpush.msra.mxu0 %v1120
    %1625 = vmatpush.msra.mxu0 %v1114
    %1626 = vmatpush.msra.mxu0 %v1108
    %1627 = vmatpush.msra.mxu0 %v1102
    %1628 = vmatmul.f32.gmra.mxu0 %v714
    %v1629 = vpop.f32.mrf.mxu0
    %v1630 = vadd.f32 %v1610, %v1629
    %1631 = vdwg.mxu0
    %1632 = vmatpush.msra.mxu0 %v1288
    %1633 = vmatpush.msra.mxu0 %v1282
    %1634 = vmatpush.msra.mxu0 %v1276
    %1635 = vmatpush.msra.mxu0 %v1270
    %1636 = vmatpush.msra.mxu0 %v1264
    %1637 = vmatpush.msra.mxu0 %v1258
    %1638 = vmatpush.msra.mxu0 %v1252
    %1639 = vmatpush.msra.mxu0 %v1246
    %1640 = vmatpush.msra.mxu0 %v1240
    %1641 = vmatpush.msra.mxu0 %v1234
    %1642 = vmatpush.msra.mxu0 %v1228
    %1643 = vmatpush.msra.mxu0 %v1222
    %1644 = vmatpush.msra.mxu0 %v1216
    %1645 = vmatpush.msra.mxu0 %v1210
    %1646 = vmatpush.msra.mxu0 %v1204
    %1647 = vmatpush.msra.mxu0 %v1198
    %1648 = vmatmul.f32.gmra.mxu0 %v715
    %v1649 = vpop.f32.mrf.mxu0
    %v1650 = vadd.f32 %v1630, %v1649
    %1651 = vdwg.mxu0
    %1652 = vmatpush.msra.mxu0 %v809
    %1653 = vmatpush.msra.mxu0 %v803
    %1654 = vmatpush.msra.mxu0 %v797
    %1655 = vmatpush.msra.mxu0 %v791
    %1656 = vmatpush.msra.mxu0 %v785
    %1657 = vmatpush.msra.mxu0 %v779
    %1658 = vmatpush.msra.mxu0 %v773
    %1659 = vmatpush.msra.mxu0 %v767
    %1660 = vmatpush.msra.mxu0 %v761
    %1661 = vmatpush.msra.mxu0 %v755
    %1662 = vmatpush.msra.mxu0 %v749
    %1663 = vmatpush.msra.mxu0 %v743
    %1664 = vmatpush.msra.mxu0 %v737
    %1665 = vmatpush.msra.mxu0 %v731
    %1666 = vmatpush.msra.mxu0 %v725
    %1667 = vmatpush.msra.mxu0 %v719
    %1668 = vmatmul.f32.gmra.mxu0 %v710
    %v1669 = vpop.f32.mrf.mxu0
    %v1670 = vadd.f32 0.0, %v1669
    %1671 = vdwg.mxu0
    %1672 = vmatpush.msra.mxu0 %v905
    %1673 = vmatpush.msra.mxu0 %v899
    %1674 = vmatpush.msra.mxu0 %v893
    %1675 = vmatpush.msra.mxu0 %v887
    %1676 = vmatpush.msra.mxu0 %v881
    %1677 = vmatpush.msra.mxu0 %v875
    %1678 = vmatpush.msra.mxu0 %v869
    %1679 = vmatpush.msra.mxu0 %v863
    %1680 = vmatpush.msra.mxu0 %v857
    %1681 = vmatpush.msra.mxu0 %v851
    %1682 = vmatpush.msra.mxu0 %v845
    %1683 = vmatpush.msra.mxu0 %v839
    %1684 = vmatpush.msra.mxu0 %v833
    %1685 = vmatpush.msra.mxu0 %v827
    %1686 = vmatpush.msra.mxu0 %v821
    %1687 = vmatpush.msra.mxu0 %v815
    %1688 = vmatmul.f32.gmra.mxu0 %v711
    %v1689 = vpop.f32.mrf.mxu0
    %v1690 = vadd.f32 %v1670, %v1689
    %1691 = vdwg.mxu0
    %1692 = vmatpush.msra.mxu0 %v1001
    %1693 = vmatpush.msra.mxu0 %v995
    %1694 = vmatpush.msra.mxu0 %v989
    %1695 = vmatpush.msra.mxu0 %v983
    %1696 = vmatpush.msra.mxu0 %v977
    %1697 = vmatpush.msra.mxu0 %v971
    %1698 = vmatpush.msra.mxu0 %v965
    %1699 = vmatpush.msra.mxu0 %v959
    %1700 = vmatpush.msra.mxu0 %v953
    %1701 = vmatpush.msra.mxu0 %v947
    %1702 = vmatpush.msra.mxu0 %v941
    %1703 = vmatpush.msra.mxu0 %v935
    %1704 = vmatpush.msra.mxu0 %v929
    %1705 = vmatpush.msra.mxu0 %v923
    %1706 = vmatpush.msra.mxu0 %v917
    %1707 = vmatpush.msra.mxu0 %v911
    %1708 = vmatmul.f32.gmra.mxu0 %v712
    %v1709 = vpop.f32.mrf.mxu0
    %v1710 = vadd.f32 %v1690, %v1709
    %1711 = vdwg.mxu0
    %1712 = vmatpush.msra.mxu0 %v1097
    %1713 = vmatpush.msra.mxu0 %v1091
    %1714 = vmatpush.msra.mxu0 %v1085
    %1715 = vmatpush.msra.mxu0 %v1079
    %1716 = vmatpush.msra.mxu0 %v1073
    %1717 = vmatpush.msra.mxu0 %v1067
    %1718 = vmatpush.msra.mxu0 %v1061
    %1719 = vmatpush.msra.mxu0 %v1055
    %1720 = vmatpush.msra.mxu0 %v1049
    %1721 = vmatpush.msra.mxu0 %v1043
    %1722 = vmatpush.msra.mxu0 %v1037
    %1723 = vmatpush.msra.mxu0 %v1031
    %1724 = vmatpush.msra.mxu0 %v1025
    %1725 = vmatpush.msra.mxu0 %v1019
    %1726 = vmatpush.msra.mxu0 %v1013
    %1727 = vmatpush.msra.mxu0 %v1007
    %1728 = vmatmul.f32.gmra.mxu0 %v713
    %v1729 = vpop.f32.mrf.mxu0
    %v1730 = vadd.f32 %v1710, %v1729
    %1731 = vdwg.mxu0
    %1732 = vmatpush.msra.mxu0 %v1193
    %1733 = vmatpush.msra.mxu0 %v1187
    %1734 = vmatpush.msra.mxu0 %v1181
    %1735 = vmatpush.msra.mxu0 %v1175
    %1736 = vmatpush.msra.mxu0 %v1169
    %1737 = vmatpush.msra.mxu0 %v1163
    %1738 = vmatpush.msra.mxu0 %v1157
    %1739 = vmatpush.msra.mxu0 %v1151
    %1740 = vmatpush.msra.mxu0 %v1145
    %1741 = vmatpush.msra.mxu0 %v1139
    %1742 = vmatpush.msra.mxu0 %v1133
    %1743 = vmatpush.msra.mxu0 %v1127
    %1744 = vmatpush.msra.mxu0 %v1121
    %1745 = vmatpush.msra.mxu0 %v1115
    %1746 = vmatpush.msra.mxu0 %v1109
    %1747 = vmatpush.msra.mxu0 %v1103
    %1748 = vmatmul.f32.gmra.mxu0 %v714
    %v1749 = vpop.f32.mrf.mxu0
    %v1750 = vadd.f32 %v1730, %v1749
    %1751 = vdwg.mxu0
    %1752 = vmatpush.msra.mxu0 %v1289
    %1753 = vmatpush.msra.mxu0 %v1283
    %1754 = vmatpush.msra.mxu0 %v1277
    %1755 = vmatpush.msra.mxu0 %v1271
    %1756 = vmatpush.msra.mxu0 %v1265
    %1757 = vmatpush.msra.mxu0 %v1259
    %1758 = vmatpush.msra.mxu0 %v1253
    %1759 = vmatpush.msra.mxu0 %v1247
    %1760 = vmatpush.msra.mxu0 %v1241
    %1761 = vmatpush.msra.mxu0 %v1235
    %1762 = vmatpush.msra.mxu0 %v1229
    %1763 = vmatpush.msra.mxu0 %v1223
    %1764 = vmatpush.msra.mxu0 %v1217
    %1765 = vmatpush.msra.mxu0 %v1211
    %1766 = vmatpush.msra.mxu0 %v1205
    %1767 = vmatpush.msra.mxu0 %v1199
    %1768 = vmatmul.f32.gmra.mxu0 %v715
    %v1769 = vpop.f32.mrf.mxu0
    %v1770 = vadd.f32 %v1750, %v1769
    %1771 = vdwg.mxu0
    %1772 = vmatpush.msra.mxu0 %v810
    %1773 = vmatpush.msra.mxu0 %v804
    %1774 = vmatpush.msra.mxu0 %v798
    %1775 = vmatpush.msra.mxu0 %v792
    %1776 = vmatpush.msra.mxu0 %v786
    %1777 = vmatpush.msra.mxu0 %v780
    %1778 = vmatpush.msra.mxu0 %v774
    %1779 = vmatpush.msra.mxu0 %v768
    %1780 = vmatpush.msra.mxu0 %v762
    %1781 = vmatpush.msra.mxu0 %v756
    %1782 = vmatpush.msra.mxu0 %v750
    %1783 = vmatpush.msra.mxu0 %v744
    %1784 = vmatpush.msra.mxu0 %v738
    %1785 = vmatpush.msra.mxu0 %v732
    %1786 = vmatpush.msra.mxu0 %v726
    %1787 = vmatpush.msra.mxu0 %v720
    %1788 = vmatmul.f32.gmra.mxu0 %v710
    %v1789 = vpop.f32.mrf.mxu0
    %v1790 = vadd.f32 0.0, %v1789
    %1791 = vdwg.mxu0
    %1792 = vmatpush.msra.mxu0 %v906
    %1793 = vmatpush.msra.mxu0 %v900
    %1794 = vmatpush.msra.mxu0 %v894
    %1795 = vmatpush.msra.mxu0 %v888
    %1796 = vmatpush.msra.mxu0 %v882
    %1797 = vmatpush.msra.mxu0 %v876
    %1798 = vmatpush.msra.mxu0 %v870
    %1799 = vmatpush.msra.mxu0 %v864
    %1800 = vmatpush.msra.mxu0 %v858
    %1801 = vmatpush.msra.mxu0 %v852
    %1802 = vmatpush.msra.mxu0 %v846
    %1803 = vmatpush.msra.mxu0 %v840
    %1804 = vmatpush.msra.mxu0 %v834
    %1805 = vmatpush.msra.mxu0 %v828
    %1806 = vmatpush.msra.mxu0 %v822
    %1807 = vmatpush.msra.mxu0 %v816
    %1808 = vmatmul.f32.gmra.mxu0 %v711
    %v1809 = vpop.f32.mrf.mxu0
    %v1810 = vadd.f32 %v1790, %v1809
    %1811 = vdwg.mxu0
    %1812 = vmatpush.msra.mxu0 %v1002
    %1813 = vmatpush.msra.mxu0 %v996
    %1814 = vmatpush.msra.mxu0 %v990
    %1815 = vmatpush.msra.mxu0 %v984
    %1816 = vmatpush.msra.mxu0 %v978
    %1817 = vmatpush.msra.mxu0 %v972
    %1818 = vmatpush.msra.mxu0 %v966
    %1819 = vmatpush.msra.mxu0 %v960
    %1820 = vmatpush.msra.mxu0 %v954
    %1821 = vmatpush.msra.mxu0 %v948
    %1822 = vmatpush.msra.mxu0 %v942
    %1823 = vmatpush.msra.mxu0 %v936
    %1824 = vmatpush.msra.mxu0 %v930
    %1825 = vmatpush.msra.mxu0 %v924
    %1826 = vmatpush.msra.mxu0 %v918
    %1827 = vmatpush.msra.mxu0 %v912
    %1828 = vmatmul.f32.gmra.mxu0 %v712
    %v1829 = vpop.f32.mrf.mxu0
    %v1830 = vadd.f32 %v1810, %v1829
    %1831 = vdwg.mxu0
    %1832 = vmatpush.msra.mxu0 %v1098
    %1833 = vmatpush.msra.mxu0 %v1092
    %1834 = vmatpush.msra.mxu0 %v1086
    %1835 = vmatpush.msra.mxu0 %v1080
    %1836 = vmatpush.msra.mxu0 %v1074
    %1837 = vmatpush.msra.mxu0 %v1068
    %1838 = vmatpush.msra.mxu0 %v1062
    %1839 = vmatpush.msra.mxu0 %v1056
    %1840 = vmatpush.msra.mxu0 %v1050
    %1841 = vmatpush.msra.mxu0 %v1044
    %1842 = vmatpush.msra.mxu0 %v1038
    %1843 = vmatpush.msra.mxu0 %v1032
    %1844 = vmatpush.msra.mxu0 %v1026
    %1845 = vmatpush.msra.mxu0 %v1020
    %1846 = vmatpush.msra.mxu0 %v1014
    %1847 = vmatpush.msra.mxu0 %v1008
    %1848 = vmatmul.f32.gmra.mxu0 %v713
    %v1849 = vpop.f32.mrf.mxu0
    %v1850 = vadd.f32 %v1830, %v1849
    %1851 = vdwg.mxu0
    %1852 = vmatpush.msra.mxu0 %v1194
    %1853 = vmatpush.msra.mxu0 %v1188
    %1854 = vmatpush.msra.mxu0 %v1182
    %1855 = vmatpush.msra.mxu0 %v1176
    %1856 = vmatpush.msra.mxu0 %v1170
    %1857 = vmatpush.msra.mxu0 %v1164
    %1858 = vmatpush.msra.mxu0 %v1158
    %1859 = vmatpush.msra.mxu0 %v1152
    %1860 = vmatpush.msra.mxu0 %v1146
    %1861 = vmatpush.msra.mxu0 %v1140
    %1862 = vmatpush.msra.mxu0 %v1134
    %1863 = vmatpush.msra.mxu0 %v1128
    %1864 = vmatpush.msra.mxu0 %v1122
    %1865 = vmatpush.msra.mxu0 %v1116
    %1866 = vmatpush.msra.mxu0 %v1110
    %1867 = vmatpush.msra.mxu0 %v1104
    %1868 = vmatmul.f32.gmra.mxu0 %v714
    %v1869 = vpop.f32.mrf.mxu0
    %v1870 = vadd.f32 %v1850, %v1869
    %1871 = vdwg.mxu0
    %1872 = vmatpush.msra.mxu0 %v1290
    %1873 = vmatpush.msra.mxu0 %v1284
    %1874 = vmatpush.msra.mxu0 %v1278
    %1875 = vmatpush.msra.mxu0 %v1272
    %1876 = vmatpush.msra.mxu0 %v1266
    %1877 = vmatpush.msra.mxu0 %v1260
    %1878 = vmatpush.msra.mxu0 %v1254
    %1879 = vmatpush.msra.mxu0 %v1248
    %1880 = vmatpush.msra.mxu0 %v1242
    %1881 = vmatpush.msra.mxu0 %v1236
    %1882 = vmatpush.msra.mxu0 %v1230
    %1883 = vmatpush.msra.mxu0 %v1224
    %1884 = vmatpush.msra.mxu0 %v1218
    %1885 = vmatpush.msra.mxu0 %v1212
    %1886 = vmatpush.msra.mxu0 %v1206
    %1887 = vmatpush.msra.mxu0 %v1200
    %1888 = vmatmul.f32.gmra.mxu0 %v715
    %v1889 = vpop.f32.mrf.mxu0
    %v1890 = vadd.f32 %v1870, %v1889
    %1891 = vdwg.mxu0
    %1892 = vmatpush.msra.mxu0 %v811
    %1893 = vmatpush.msra.mxu0 %v805
    %1894 = vmatpush.msra.mxu0 %v799
    %1895 = vmatpush.msra.mxu0 %v793
    %1896 = vmatpush.msra.mxu0 %v787
    %1897 = vmatpush.msra.mxu0 %v781
    %1898 = vmatpush.msra.mxu0 %v775
    %1899 = vmatpush.msra.mxu0 %v769
    %1900 = vmatpush.msra.mxu0 %v763
    %1901 = vmatpush.msra.mxu0 %v757
    %1902 = vmatpush.msra.mxu0 %v751
    %1903 = vmatpush.msra.mxu0 %v745
    %1904 = vmatpush.msra.mxu0 %v739
    %1905 = vmatpush.msra.mxu0 %v733
    %1906 = vmatpush.msra.mxu0 %v727
    %1907 = vmatpush.msra.mxu0 %v721
    %1908 = vmatmul.f32.gmra.mxu0 %v710
    %v1909 = vpop.f32.mrf.mxu0
    %v1910 = vadd.f32 0.0, %v1909
    %1911 = vdwg.mxu0
    %1912 = vmatpush.msra.mxu0 %v907
    %1913 = vmatpush.msra.mxu0 %v901
    %1914 = vmatpush.msra.mxu0 %v895
    %1915 = vmatpush.msra.mxu0 %v889
    %1916 = vmatpush.msra.mxu0 %v883
    %1917 = vmatpush.msra.mxu0 %v877
    %1918 = vmatpush.msra.mxu0 %v871
    %1919 = vmatpush.msra.mxu0 %v865
    %1920 = vmatpush.msra.mxu0 %v859
    %1921 = vmatpush.msra.mxu0 %v853
    %1922 = vmatpush.msra.mxu0 %v847
    %1923 = vmatpush.msra.mxu0 %v841
    %1924 = vmatpush.msra.mxu0 %v835
    %1925 = vmatpush.msra.mxu0 %v829
    %1926 = vmatpush.msra.mxu0 %v823
    %1927 = vmatpush.msra.mxu0 %v817
    %1928 = vmatmul.f32.gmra.mxu0 %v711
    %v1929 = vpop.f32.mrf.mxu0
    %v1930 = vadd.f32 %v1910, %v1929
    %1931 = vdwg.mxu0
    %1932 = vmatpush.msra.mxu0 %v1003
    %1933 = vmatpush.msra.mxu0 %v997
    %1934 = vmatpush.msra.mxu0 %v991
    %1935 = vmatpush.msra.mxu0 %v985
    %1936 = vmatpush.msra.mxu0 %v979
    %1937 = vmatpush.msra.mxu0 %v973
    %1938 = vmatpush.msra.mxu0 %v967
    %1939 = vmatpush.msra.mxu0 %v961
    %1940 = vmatpush.msra.mxu0 %v955
    %1941 = vmatpush.msra.mxu0 %v949
    %1942 = vmatpush.msra.mxu0 %v943
    %1943 = vmatpush.msra.mxu0 %v937
    %1944 = vmatpush.msra.mxu0 %v931
    %1945 = vmatpush.msra.mxu0 %v925
    %1946 = vmatpush.msra.mxu0 %v919
    %1947 = vmatpush.msra.mxu0 %v913
    %1948 = vmatmul.f32.gmra.mxu0 %v712
    %v1949 = vpop.f32.mrf.mxu0
    %v1950 = vadd.f32 %v1930, %v1949
    %1951 = vdwg.mxu0
    %1952 = vmatpush.msra.mxu0 %v1099
    %1953 = vmatpush.msra.mxu0 %v1093
    %1954 = vmatpush.msra.mxu0 %v1087
    %1955 = vmatpush.msra.mxu0 %v1081
    %1956 = vmatpush.msra.mxu0 %v1075
    %1957 = vmatpush.msra.mxu0 %v1069
    %1958 = vmatpush.msra.mxu0 %v1063
    %1959 = vmatpush.msra.mxu0 %v1057
    %1960 = vmatpush.msra.mxu0 %v1051
    %1961 = vmatpush.msra.mxu0 %v1045
    %1962 = vmatpush.msra.mxu0 %v1039
    %1963 = vmatpush.msra.mxu0 %v1033
    %1964 = vmatpush.msra.mxu0 %v1027
    %1965 = vmatpush.msra.mxu0 %v1021
    %1966 = vmatpush.msra.mxu0 %v1015
    %1967 = vmatpush.msra.mxu0 %v1009
    %1968 = vmatmul.f32.gmra.mxu0 %v713
    %v1969 = vpop.f32.mrf.mxu0
    %v1970 = vadd.f32 %v1950, %v1969
    %1971 = vdwg.mxu0
    %1972 = vmatpush.msra.mxu0 %v1195
    %1973 = vmatpush.msra.mxu0 %v1189
    %1974 = vmatpush.msra.mxu0 %v1183
    %1975 = vmatpush.msra.mxu0 %v1177
    %1976 = vmatpush.msra.mxu0 %v1171
    %1977 = vmatpush.msra.mxu0 %v1165
    %1978 = vmatpush.msra.mxu0 %v1159
    %1979 = vmatpush.msra.mxu0 %v1153
    %1980 = vmatpush.msra.mxu0 %v1147
    %1981 = vmatpush.msra.mxu0 %v1141
    %1982 = vmatpush.msra.mxu0 %v1135
    %1983 = vmatpush.msra.mxu0 %v1129
    %1984 = vmatpush.msra.mxu0 %v1123
    %1985 = vmatpush.msra.mxu0 %v1117
    %1986 = vmatpush.msra.mxu0 %v1111
    %1987 = vmatpush.msra.mxu0 %v1105
    %1988 = vmatmul.f32.gmra.mxu0 %v714
    %v1989 = vpop.f32.mrf.mxu0
    %v1990 = vadd.f32 %v1970, %v1989
    %1991 = vdwg.mxu0
    %1992 = vmatpush.msra.mxu0 %v1291
    %1993 = vmatpush.msra.mxu0 %v1285
    %1994 = vmatpush.msra.mxu0 %v1279
    %1995 = vmatpush.msra.mxu0 %v1273
    %1996 = vmatpush.msra.mxu0 %v1267
    %1997 = vmatpush.msra.mxu0 %v1261
    %1998 = vmatpush.msra.mxu0 %v1255
    %1999 = vmatpush.msra.mxu0 %v1249
    %2000 = vmatpush.msra.mxu0 %v1243
    %2001 = vmatpush.msra.mxu0 %v1237
    %2002 = vmatpush.msra.mxu0 %v1231
    %2003 = vmatpush.msra.mxu0 %v1225
    %2004 = vmatpush.msra.mxu0 %v1219
    %2005 = vmatpush.msra.mxu0 %v1213
    %2006 = vmatpush.msra.mxu0 %v1207
    %2007 = vmatpush.msra.mxu0 %v1201
    %2008 = vmatmul.f32.gmra.mxu0 %v715
    %v2009 = vpop.f32.mrf.mxu0
    %v2010 = vadd.f32 %v1990, %v2009
    %2011 = vdwg.mxu0
    %2012 = vmatpush.msra.mxu0 %v224
    %2013 = vmatpush.msra.mxu0 %v218
    %2014 = vmatpush.msra.mxu0 %v212
    %2015 = vmatpush.msra.mxu0 %v206
    %2016 = vmatpush.msra.mxu0 %v200
    %2017 = vmatpush.msra.mxu0 %v194
    %2018 = vmatpush.msra.mxu0 %v188
    %2019 = vmatpush.msra.mxu0 %v182
    %2020 = vmatpush.msra.mxu0 %v176
    %2021 = vmatpush.msra.mxu0 %v170
    %2022 = vmatpush.msra.mxu0 %v164
    %2023 = vmatpush.msra.mxu0 %v158
    %2024 = vmatpush.msra.mxu0 %v152
    %2025 = vmatpush.msra.mxu0 %v146
    %2026 = vmatpush.msra.mxu0 %v140
    %2027 = vmatpush.msra.mxu0 %v134
    %2028 = vmatmul.f32.gmra.mxu0 %v128
    %v2029 = vpop.f32.mrf.mxu0
    %v2030 = vadd.f32 %v1410, %v2029
    %2031 = vdwg.mxu0
    %2032 = vmatpush.msra.mxu0 %v320
    %2033 = vmatpush.msra.mxu0 %v314
    %2034 = vmatpush.msra.mxu0 %v308
    %2035 = vmatpush.msra.mxu0 %v302
    %2036 = vmatpush.msra.mxu0 %v296
    %2037 = vmatpush.msra.mxu0 %v290
    %2038 = vmatpush.msra.mxu0 %v284
    %2039 = vmatpush.msra.mxu0 %v278
    %2040 = vmatpush.msra.mxu0 %v272
    %2041 = vmatpush.msra.mxu0 %v266
    %2042 = vmatpush.msra.mxu0 %v260
    %2043 = vmatpush.msra.mxu0 %v254
    %2044 = vmatpush.msra.mxu0 %v248
    %2045 = vmatpush.msra.mxu0 %v242
    %2046 = vmatpush.msra.mxu0 %v236
    %2047 = vmatpush.msra.mxu0 %v230
    %2048 = vmatmul.f32.gmra.mxu0 %v129
    %v2049 = vpop.f32.mrf.mxu0
    %v2050 = vadd.f32 %v2030, %v2049
    %2051 = vdwg.mxu0
    %2052 = vmatpush.msra.mxu0 %v416
    %2053 = vmatpush.msra.mxu0 %v410
    %2054 = vmatpush.msra.mxu0 %v404
    %2055 = vmatpush.msra.mxu0 %v398
    %2056 = vmatpush.msra.mxu0 %v392
    %2057 = vmatpush.msra.mxu0 %v386
    %2058 = vmatpush.msra.mxu0 %v380
    %2059 = vmatpush.msra.mxu0 %v374
    %2060 = vmatpush.msra.mxu0 %v368
    %2061 = vmatpush.msra.mxu0 %v362
    %2062 = vmatpush.msra.mxu0 %v356
    %2063 = vmatpush.msra.mxu0 %v350
    %2064 = vmatpush.msra.mxu0 %v344
    %2065 = vmatpush.msra.mxu0 %v338
    %2066 = vmatpush.msra.mxu0 %v332
    %2067 = vmatpush.msra.mxu0 %v326
    %2068 = vmatmul.f32.gmra.mxu0 %v130
    %v2069 = vpop.f32.mrf.mxu0
    %v2070 = vadd.f32 %v2050, %v2069
    %2071 = vdwg.mxu0
    %2072 = vmatpush.msra.mxu0 %v512
    %2073 = vmatpush.msra.mxu0 %v506
    %2074 = vmatpush.msra.mxu0 %v500
    %2075 = vmatpush.msra.mxu0 %v494
    %2076 = vmatpush.msra.mxu0 %v488
    %2077 = vmatpush.msra.mxu0 %v482
    %2078 = vmatpush.msra.mxu0 %v476
    %2079 = vmatpush.msra.mxu0 %v470
    %2080 = vmatpush.msra.mxu0 %v464
    %2081 = vmatpush.msra.mxu0 %v458
    %2082 = vmatpush.msra.mxu0 %v452
    %2083 = vmatpush.msra.mxu0 %v446
    %2084 = vmatpush.msra.mxu0 %v440
    %2085 = vmatpush.msra.mxu0 %v434
    %2086 = vmatpush.msra.mxu0 %v428
    %2087 = vmatpush.msra.mxu0 %v422
    %2088 = vmatmul.f32.gmra.mxu0 %v131
    %v2089 = vpop.f32.mrf.mxu0
    %v2090 = vadd.f32 %v2070, %v2089
    %2091 = vdwg.mxu0
    %2092 = vmatpush.msra.mxu0 %v608
    %2093 = vmatpush.msra.mxu0 %v602
    %2094 = vmatpush.msra.mxu0 %v596
    %2095 = vmatpush.msra.mxu0 %v590
    %2096 = vmatpush.msra.mxu0 %v584
    %2097 = vmatpush.msra.mxu0 %v578
    %2098 = vmatpush.msra.mxu0 %v572
    %2099 = vmatpush.msra.mxu0 %v566
    %2100 = vmatpush.msra.mxu0 %v560
    %2101 = vmatpush.msra.mxu0 %v554
    %2102 = vmatpush.msra.mxu0 %v548
    %2103 = vmatpush.msra.mxu0 %v542
    %2104 = vmatpush.msra.mxu0 %v536
    %2105 = vmatpush.msra.mxu0 %v530
    %2106 = vmatpush.msra.mxu0 %v524
    %2107 = vmatpush.msra.mxu0 %v518
    %2108 = vmatmul.f32.gmra.mxu0 %v132
    %v2109 = vpop.f32.mrf.mxu0
    %v2110 = vadd.f32 %v2090, %v2109
    %2111 = vdwg.mxu0
    %2112 = vmatpush.msra.mxu0 %v704
    %2113 = vmatpush.msra.mxu0 %v698
    %2114 = vmatpush.msra.mxu0 %v692
    %2115 = vmatpush.msra.mxu0 %v686
    %2116 = vmatpush.msra.mxu0 %v680
    %2117 = vmatpush.msra.mxu0 %v674
    %2118 = vmatpush.msra.mxu0 %v668
    %2119 = vmatpush.msra.mxu0 %v662
    %2120 = vmatpush.msra.mxu0 %v656
    %2121 = vmatpush.msra.mxu0 %v650
    %2122 = vmatpush.msra.mxu0 %v644
    %2123 = vmatpush.msra.mxu0 %v638
    %2124 = vmatpush.msra.mxu0 %v632
    %2125 = vmatpush.msra.mxu0 %v626
    %2126 = vmatpush.msra.mxu0 %v620
    %2127 = vmatpush.msra.mxu0 %v614
    %2128 = vmatmul.f32.gmra.mxu0 %v133
    %v2129 = vpop.f32.mrf.mxu0
    %v2130 = vadd.f32 %v2110, %v2129
    %2131 = vdwg.mxu0
    %2132 = vmatpush.msra.mxu0 %v225
    %2133 = vmatpush.msra.mxu0 %v219
    %2134 = vmatpush.msra.mxu0 %v213
    %2135 = vmatpush.msra.mxu0 %v207
    %2136 = vmatpush.msra.mxu0 %v201
    %2137 = vmatpush.msra.mxu0 %v195
    %2138 = vmatpush.msra.mxu0 %v189
    %2139 = vmatpush.msra.mxu0 %v183
    %2140 = vmatpush.msra.mxu0 %v177
    %2141 = vmatpush.msra.mxu0 %v171
    %2142 = vmatpush.msra.mxu0 %v165
    %2143 = vmatpush.msra.mxu0 %v159
    %2144 = vmatpush.msra.mxu0 %v153
    %2145 = vmatpush.msra.mxu0 %v147
    %2146 = vmatpush.msra.mxu0 %v141
    %2147 = vmatpush.msra.mxu0 %v135
    %2148 = vmatmul.f32.gmra.mxu0 %v128
    %v2149 = vpop.f32.mrf.mxu0
    %v2150 = vadd.f32 %v1530, %v2149
    %2151 = vdwg.mxu0
    %2152 = vmatpush.msra.mxu0 %v321
    %2153 = vmatpush.msra.mxu0 %v315
    %2154 = vmatpush.msra.mxu0 %v309
    %2155 = vmatpush.msra.mxu0 %v303
    %2156 = vmatpush.msra.mxu0 %v297
    %2157 = vmatpush.msra.mxu0 %v291
    %2158 = vmatpush.msra.mxu0 %v285
    %2159 = vmatpush.msra.mxu0 %v279
    %2160 = vmatpush.msra.mxu0 %v273
    %2161 = vmatpush.msra.mxu0 %v267
    %2162 = vmatpush.msra.mxu0 %v261
    %2163 = vmatpush.msra.mxu0 %v255
    %2164 = vmatpush.msra.mxu0 %v249
    %2165 = vmatpush.msra.mxu0 %v243
    %2166 = vmatpush.msra.mxu0 %v237
    %2167 = vmatpush.msra.mxu0 %v231
    %2168 = vmatmul.f32.gmra.mxu0 %v129
    %v2169 = vpop.f32.mrf.mxu0
    %v2170 = vadd.f32 %v2150, %v2169
    %2171 = vdwg.mxu0
    %2172 = vmatpush.msra.mxu0 %v417
    %2173 = vmatpush.msra.mxu0 %v411
    %2174 = vmatpush.msra.mxu0 %v405
    %2175 = vmatpush.msra.mxu0 %v399
    %2176 = vmatpush.msra.mxu0 %v393
    %2177 = vmatpush.msra.mxu0 %v387
    %2178 = vmatpush.msra.mxu0 %v381
    %2179 = vmatpush.msra.mxu0 %v375
    %2180 = vmatpush.msra.mxu0 %v369
    %2181 = vmatpush.msra.mxu0 %v363
    %2182 = vmatpush.msra.mxu0 %v357
    %2183 = vmatpush.msra.mxu0 %v351
    %2184 = vmatpush.msra.mxu0 %v345
    %2185 = vmatpush.msra.mxu0 %v339
    %2186 = vmatpush.msra.mxu0 %v333
    %2187 = vmatpush.msra.mxu0 %v327
    %2188 = vmatmul.f32.gmra.mxu0 %v130
    %v2189 = vpop.f32.mrf.mxu0
    %v2190 = vadd.f32 %v2170, %v2189
    %2191 = vdwg.mxu0
    %2192 = vmatpush.msra.mxu0 %v513
    %2193 = vmatpush.msra.mxu0 %v507
    %2194 = vmatpush.msra.mxu0 %v501
    %2195 = vmatpush.msra.mxu0 %v495
    %2196 = vmatpush.msra.mxu0 %v489
    %2197 = vmatpush.msra.mxu0 %v483
    %2198 = vmatpush.msra.mxu0 %v477
    %2199 = vmatpush.msra.mxu0 %v471
    %2200 = vmatpush.msra.mxu0 %v465
    %2201 = vmatpush.msra.mxu0 %v459
    %2202 = vmatpush.msra.mxu0 %v453
    %2203 = vmatpush.msra.mxu0 %v447
    %2204 = vmatpush.msra.mxu0 %v441
    %2205 = vmatpush.msra.mxu0 %v435
    %2206 = vmatpush.msra.mxu0 %v429
    %2207 = vmatpush.msra.mxu0 %v423
    %2208 = vmatmul.f32.gmra.mxu0 %v131
    %v2209 = vpop.f32.mrf.mxu0
    %v2210 = vadd.f32 %v2190, %v2209
    %2211 = vdwg.mxu0
    %2212 = vmatpush.msra.mxu0 %v609
    %2213 = vmatpush.msra.mxu0 %v603
    %2214 = vmatpush.msra.mxu0 %v597
    %2215 = vmatpush.msra.mxu0 %v591
    %2216 = vmatpush.msra.mxu0 %v585
    %2217 = vmatpush.msra.mxu0 %v579
    %2218 = vmatpush.msra.mxu0 %v573
    %2219 = vmatpush.msra.mxu0 %v567
    %2220 = vmatpush.msra.mxu0 %v561
    %2221 = vmatpush.msra.mxu0 %v555
    %2222 = vmatpush.msra.mxu0 %v549
    %2223 = vmatpush.msra.mxu0 %v543
    %2224 = vmatpush.msra.mxu0 %v537
    %2225 = vmatpush.msra.mxu0 %v531
    %2226 = vmatpush.msra.mxu0 %v525
    %2227 = vmatpush.msra.mxu0 %v519
    %2228 = vmatmul.f32.gmra.mxu0 %v132
    %v2229 = vpop.f32.mrf.mxu0
    %v2230 = vadd.f32 %v2210, %v2229
    %2231 = vdwg.mxu0
    %2232 = vmatpush.msra.mxu0 %v705
    %2233 = vmatpush.msra.mxu0 %v699
    %2234 = vmatpush.msra.mxu0 %v693
    %2235 = vmatpush.msra.mxu0 %v687
    %2236 = vmatpush.msra.mxu0 %v681
    %2237 = vmatpush.msra.mxu0 %v675
    %2238 = vmatpush.msra.mxu0 %v669
    %2239 = vmatpush.msra.mxu0 %v663
    %2240 = vmatpush.msra.mxu0 %v657
    %2241 = vmatpush.msra.mxu0 %v651
    %2242 = vmatpush.msra.mxu0 %v645
    %2243 = vmatpush.msra.mxu0 %v639
    %2244 = vmatpush.msra.mxu0 %v633
    %2245 = vmatpush.msra.mxu0 %v627
    %2246 = vmatpush.msra.mxu0 %v621
    %2247 = vmatpush.msra.mxu0 %v615
    %2248 = vmatmul.f32.gmra.mxu0 %v133
    %v2249 = vpop.f32.mrf.mxu0
    %v2250 = vadd.f32 %v2230, %v2249
    %2251 = vdwg.mxu0
    %2252 = vmatpush.msra.mxu0 %v226
    %2253 = vmatpush.msra.mxu0 %v220
    %2254 = vmatpush.msra.mxu0 %v214
    %2255 = vmatpush.msra.mxu0 %v208
    %2256 = vmatpush.msra.mxu0 %v202
    %2257 = vmatpush.msra.mxu0 %v196
    %2258 = vmatpush.msra.mxu0 %v190
    %2259 = vmatpush.msra.mxu0 %v184
    %2260 = vmatpush.msra.mxu0 %v178
    %2261 = vmatpush.msra.mxu0 %v172
    %2262 = vmatpush.msra.mxu0 %v166
    %2263 = vmatpush.msra.mxu0 %v160
    %2264 = vmatpush.msra.mxu0 %v154
    %2265 = vmatpush.msra.mxu0 %v148
    %2266 = vmatpush.msra.mxu0 %v142
    %2267 = vmatpush.msra.mxu0 %v136
    %2268 = vmatmul.f32.gmra.mxu0 %v128
    %v2269 = vpop.f32.mrf.mxu0
    %v2270 = vadd.f32 %v1650, %v2269
    %2271 = vdwg.mxu0
    %2272 = vmatpush.msra.mxu0 %v322
    %2273 = vmatpush.msra.mxu0 %v316
    %2274 = vmatpush.msra.mxu0 %v310
    %2275 = vmatpush.msra.mxu0 %v304
    %2276 = vmatpush.msra.mxu0 %v298
    %2277 = vmatpush.msra.mxu0 %v292
    %2278 = vmatpush.msra.mxu0 %v286
    %2279 = vmatpush.msra.mxu0 %v280
    %2280 = vmatpush.msra.mxu0 %v274
    %2281 = vmatpush.msra.mxu0 %v268
    %2282 = vmatpush.msra.mxu0 %v262
    %2283 = vmatpush.msra.mxu0 %v256
    %2284 = vmatpush.msra.mxu0 %v250
    %2285 = vmatpush.msra.mxu0 %v244
    %2286 = vmatpush.msra.mxu0 %v238
    %2287 = vmatpush.msra.mxu0 %v232
    %2288 = vmatmul.f32.gmra.mxu0 %v129
    %v2289 = vpop.f32.mrf.mxu0
    %v2290 = vadd.f32 %v2270, %v2289
    %2291 = vdwg.mxu0
    %2292 = vmatpush.msra.mxu0 %v418
    %2293 = vmatpush.msra.mxu0 %v412
    %2294 = vmatpush.msra.mxu0 %v406
    %2295 = vmatpush.msra.mxu0 %v400
    %2296 = vmatpush.msra.mxu0 %v394
    %2297 = vmatpush.msra.mxu0 %v388
    %2298 = vmatpush.msra.mxu0 %v382
    %2299 = vmatpush.msra.mxu0 %v376
    %2300 = vmatpush.msra.mxu0 %v370
    %2301 = vmatpush.msra.mxu0 %v364
    %2302 = vmatpush.msra.mxu0 %v358
    %2303 = vmatpush.msra.mxu0 %v352
    %2304 = vmatpush.msra.mxu0 %v346
    %2305 = vmatpush.msra.mxu0 %v340
    %2306 = vmatpush.msra.mxu0 %v334
    %2307 = vmatpush.msra.mxu0 %v328
    %2308 = vmatmul.f32.gmra.mxu0 %v130
    %v2309 = vpop.f32.mrf.mxu0
    %v2310 = vadd.f32 %v2290, %v2309
    %2311 = vdwg.mxu0
    %2312 = vmatpush.msra.mxu0 %v514
    %2313 = vmatpush.msra.mxu0 %v508
    %2314 = vmatpush.msra.mxu0 %v502
    %2315 = vmatpush.msra.mxu0 %v496
    %2316 = vmatpush.msra.mxu0 %v490
    %2317 = vmatpush.msra.mxu0 %v484
    %2318 = vmatpush.msra.mxu0 %v478
    %2319 = vmatpush.msra.mxu0 %v472
    %2320 = vmatpush.msra.mxu0 %v466
    %2321 = vmatpush.msra.mxu0 %v460
    %2322 = vmatpush.msra.mxu0 %v454
    %2323 = vmatpush.msra.mxu0 %v448
    %2324 = vmatpush.msra.mxu0 %v442
    %2325 = vmatpush.msra.mxu0 %v436
    %2326 = vmatpush.msra.mxu0 %v430
    %2327 = vmatpush.msra.mxu0 %v424
    %2328 = vmatmul.f32.gmra.mxu0 %v131
    %v2329 = vpop.f32.mrf.mxu0
    %v2330 = vadd.f32 %v2310, %v2329
    %2331 = vdwg.mxu0
    %2332 = vmatpush.msra.mxu0 %v610
    %2333 = vmatpush.msra.mxu0 %v604
    %2334 = vmatpush.msra.mxu0 %v598
    %2335 = vmatpush.msra.mxu0 %v592
    %2336 = vmatpush.msra.mxu0 %v586
    %2337 = vmatpush.msra.mxu0 %v580
    %2338 = vmatpush.msra.mxu0 %v574
    %2339 = vmatpush.msra.mxu0 %v568
    %2340 = vmatpush.msra.mxu0 %v562
    %2341 = vmatpush.msra.mxu0 %v556
    %2342 = vmatpush.msra.mxu0 %v550
    %2343 = vmatpush.msra.mxu0 %v544
    %2344 = vmatpush.msra.mxu0 %v538
    %2345 = vmatpush.msra.mxu0 %v532
    %2346 = vmatpush.msra.mxu0 %v526
    %2347 = vmatpush.msra.mxu0 %v520
    %2348 = vmatmul.f32.gmra.mxu0 %v132
    %v2349 = vpop.f32.mrf.mxu0
    %v2350 = vadd.f32 %v2330, %v2349
    %2351 = vdwg.mxu0
    %2352 = vmatpush.msra.mxu0 %v706
    %2353 = vmatpush.msra.mxu0 %v700
    %2354 = vmatpush.msra.mxu0 %v694
    %2355 = vmatpush.msra.mxu0 %v688
    %2356 = vmatpush.msra.mxu0 %v682
    %2357 = vmatpush.msra.mxu0 %v676
    %2358 = vmatpush.msra.mxu0 %v670
    %2359 = vmatpush.msra.mxu0 %v664
    %2360 = vmatpush.msra.mxu0 %v658
    %2361 = vmatpush.msra.mxu0 %v652
    %2362 = vmatpush.msra.mxu0 %v646
    %2363 = vmatpush.msra.mxu0 %v640
    %2364 = vmatpush.msra.mxu0 %v634
    %2365 = vmatpush.msra.mxu0 %v628
    %2366 = vmatpush.msra.mxu0 %v622
    %2367 = vmatpush.msra.mxu0 %v616
    %2368 = vmatmul.f32.gmra.mxu0 %v133
    %v2369 = vpop.f32.mrf.mxu0
    %v2370 = vadd.f32 %v2350, %v2369
    %2371 = vdwg.mxu0
    %2372 = vmatpush.msra.mxu0 %v227
    %2373 = vmatpush.msra.mxu0 %v221
    %2374 = vmatpush.msra.mxu0 %v215
    %2375 = vmatpush.msra.mxu0 %v209
    %2376 = vmatpush.msra.mxu0 %v203
    %2377 = vmatpush.msra.mxu0 %v197
    %2378 = vmatpush.msra.mxu0 %v191
    %2379 = vmatpush.msra.mxu0 %v185
    %2380 = vmatpush.msra.mxu0 %v179
    %2381 = vmatpush.msra.mxu0 %v173
    %2382 = vmatpush.msra.mxu0 %v167
    %2383 = vmatpush.msra.mxu0 %v161
    %2384 = vmatpush.msra.mxu0 %v155
    %2385 = vmatpush.msra.mxu0 %v149
    %2386 = vmatpush.msra.mxu0 %v143
    %2387 = vmatpush.msra.mxu0 %v137
    %2388 = vmatmul.f32.gmra.mxu0 %v128
    %v2389 = vpop.f32.mrf.mxu0
    %v2390 = vadd.f32 %v1770, %v2389
    %2391 = vdwg.mxu0
    %2392 = vmatpush.msra.mxu0 %v323
    %2393 = vmatpush.msra.mxu0 %v317
    %2394 = vmatpush.msra.mxu0 %v311
    %2395 = vmatpush.msra.mxu0 %v305
    %2396 = vmatpush.msra.mxu0 %v299
    %2397 = vmatpush.msra.mxu0 %v293
    %2398 = vmatpush.msra.mxu0 %v287
    %2399 = vmatpush.msra.mxu0 %v281
    %2400 = vmatpush.msra.mxu0 %v275
    %2401 = vmatpush.msra.mxu0 %v269
    %2402 = vmatpush.msra.mxu0 %v263
    %2403 = vmatpush.msra.mxu0 %v257
    %2404 = vmatpush.msra.mxu0 %v251
    %2405 = vmatpush.msra.mxu0 %v245
    %2406 = vmatpush.msra.mxu0 %v239
    %2407 = vmatpush.msra.mxu0 %v233
    %2408 = vmatmul.f32.gmra.mxu0 %v129
    %v2409 = vpop.f32.mrf.mxu0
    %v2410 = vadd.f32 %v2390, %v2409
    %2411 = vdwg.mxu0
    %2412 = vmatpush.msra.mxu0 %v419
    %2413 = vmatpush.msra.mxu0 %v413
    %2414 = vmatpush.msra.mxu0 %v407
    %2415 = vmatpush.msra.mxu0 %v401
    %2416 = vmatpush.msra.mxu0 %v395
    %2417 = vmatpush.msra.mxu0 %v389
    %2418 = vmatpush.msra.mxu0 %v383
    %2419 = vmatpush.msra.mxu0 %v377
    %2420 = vmatpush.msra.mxu0 %v371
    %2421 = vmatpush.msra.mxu0 %v365
    %2422 = vmatpush.msra.mxu0 %v359
    %2423 = vmatpush.msra.mxu0 %v353
    %2424 = vmatpush.msra.mxu0 %v347
    %2425 = vmatpush.msra.mxu0 %v341
    %2426 = vmatpush.msra.mxu0 %v335
    %2427 = vmatpush.msra.mxu0 %v329
    %2428 = vmatmul.f32.gmra.mxu0 %v130
    %v2429 = vpop.f32.mrf.mxu0
    %v2430 = vadd.f32 %v2410, %v2429
    %2431 = vdwg.mxu0
    %2432 = vmatpush.msra.mxu0 %v515
    %2433 = vmatpush.msra.mxu0 %v509
    %2434 = vmatpush.msra.mxu0 %v503
    %2435 = vmatpush.msra.mxu0 %v497
    %2436 = vmatpush.msra.mxu0 %v491
    %2437 = vmatpush.msra.mxu0 %v485
    %2438 = vmatpush.msra.mxu0 %v479
    %2439 = vmatpush.msra.mxu0 %v473
    %2440 = vmatpush.msra.mxu0 %v467
    %2441 = vmatpush.msra.mxu0 %v461
    %2442 = vmatpush.msra.mxu0 %v455
    %2443 = vmatpush.msra.mxu0 %v449
    %2444 = vmatpush.msra.mxu0 %v443
    %2445 = vmatpush.msra.mxu0 %v437
    %2446 = vmatpush.msra.mxu0 %v431
    %2447 = vmatpush.msra.mxu0 %v425
    %2448 = vmatmul.f32.gmra.mxu0 %v131
    %v2449 = vpop.f32.mrf.mxu0
    %v2450 = vadd.f32 %v2430, %v2449
    %2451 = vdwg.mxu0
    %2452 = vmatpush.msra.mxu0 %v611
    %2453 = vmatpush.msra.mxu0 %v605
    %2454 = vmatpush.msra.mxu0 %v599
    %2455 = vmatpush.msra.mxu0 %v593
    %2456 = vmatpush.msra.mxu0 %v587
    %2457 = vmatpush.msra.mxu0 %v581
    %2458 = vmatpush.msra.mxu0 %v575
    %2459 = vmatpush.msra.mxu0 %v569
    %2460 = vmatpush.msra.mxu0 %v563
    %2461 = vmatpush.msra.mxu0 %v557
    %2462 = vmatpush.msra.mxu0 %v551
    %2463 = vmatpush.msra.mxu0 %v545
    %2464 = vmatpush.msra.mxu0 %v539
    %2465 = vmatpush.msra.mxu0 %v533
    %2466 = vmatpush.msra.mxu0 %v527
    %2467 = vmatpush.msra.mxu0 %v521
    %2468 = vmatmul.f32.gmra.mxu0 %v132
    %v2469 = vpop.f32.mrf.mxu0
    %v2470 = vadd.f32 %v2450, %v2469
    %2471 = vdwg.mxu0
    %2472 = vmatpush.msra.mxu0 %v707
    %2473 = vmatpush.msra.mxu0 %v701
    %2474 = vmatpush.msra.mxu0 %v695
    %2475 = vmatpush.msra.mxu0 %v689
    %2476 = vmatpush.msra.mxu0 %v683
    %2477 = vmatpush.msra.mxu0 %v677
    %2478 = vmatpush.msra.mxu0 %v671
    %2479 = vmatpush.msra.mxu0 %v665
    %2480 = vmatpush.msra.mxu0 %v659
    %2481 = vmatpush.msra.mxu0 %v653
    %2482 = vmatpush.msra.mxu0 %v647
    %2483 = vmatpush.msra.mxu0 %v641
    %2484 = vmatpush.msra.mxu0 %v635
    %2485 = vmatpush.msra.mxu0 %v629
    %2486 = vmatpush.msra.mxu0 %v623
    %2487 = vmatpush.msra.mxu0 %v617
    %2488 = vmatmul.f32.gmra.mxu0 %v133
    %v2489 = vpop.f32.mrf.mxu0
    %v2490 = vadd.f32 %v2470, %v2489
    %2491 = vdwg.mxu0
    %2492 = vmatpush.msra.mxu0 %v228
    %2493 = vmatpush.msra.mxu0 %v222
    %2494 = vmatpush.msra.mxu0 %v216
    %2495 = vmatpush.msra.mxu0 %v210
    %2496 = vmatpush.msra.mxu0 %v204
    %2497 = vmatpush.msra.mxu0 %v198
    %2498 = vmatpush.msra.mxu0 %v192
    %2499 = vmatpush.msra.mxu0 %v186
    %2500 = vmatpush.msra.mxu0 %v180
    %2501 = vmatpush.msra.mxu0 %v174
    %2502 = vmatpush.msra.mxu0 %v168
    %2503 = vmatpush.msra.mxu0 %v162
    %2504 = vmatpush.msra.mxu0 %v156
    %2505 = vmatpush.msra.mxu0 %v150
    %2506 = vmatpush.msra.mxu0 %v144
    %2507 = vmatpush.msra.mxu0 %v138
    %2508 = vmatmul.f32.gmra.mxu0 %v128
    %v2509 = vpop.f32.mrf.mxu0
    %v2510 = vadd.f32 %v1890, %v2509
    %2511 = vdwg.mxu0
    %2512 = vmatpush.msra.mxu0 %v324
    %2513 = vmatpush.msra.mxu0 %v318
    %2514 = vmatpush.msra.mxu0 %v312
    %2515 = vmatpush.msra.mxu0 %v306
    %2516 = vmatpush.msra.mxu0 %v300
    %2517 = vmatpush.msra.mxu0 %v294
    %2518 = vmatpush.msra.mxu0 %v288
    %2519 = vmatpush.msra.mxu0 %v282
    %2520 = vmatpush.msra.mxu0 %v276
    %2521 = vmatpush.msra.mxu0 %v270
    %2522 = vmatpush.msra.mxu0 %v264
    %2523 = vmatpush.msra.mxu0 %v258
    %2524 = vmatpush.msra.mxu0 %v252
    %2525 = vmatpush.msra.mxu0 %v246
    %2526 = vmatpush.msra.mxu0 %v240
    %2527 = vmatpush.msra.mxu0 %v234
    %2528 = vmatmul.f32.gmra.mxu0 %v129
    %v2529 = vpop.f32.mrf.mxu0
    %v2530 = vadd.f32 %v2510, %v2529
    %2531 = vdwg.mxu0
    %2532 = vmatpush.msra.mxu0 %v420
    %2533 = vmatpush.msra.mxu0 %v414
    %2534 = vmatpush.msra.mxu0 %v408
    %2535 = vmatpush.msra.mxu0 %v402
    %2536 = vmatpush.msra.mxu0 %v396
    %2537 = vmatpush.msra.mxu0 %v390
    %2538 = vmatpush.msra.mxu0 %v384
    %2539 = vmatpush.msra.mxu0 %v378
    %2540 = vmatpush.msra.mxu0 %v372
    %2541 = vmatpush.msra.mxu0 %v366
    %2542 = vmatpush.msra.mxu0 %v360
    %2543 = vmatpush.msra.mxu0 %v354
    %2544 = vmatpush.msra.mxu0 %v348
    %2545 = vmatpush.msra.mxu0 %v342
    %2546 = vmatpush.msra.mxu0 %v336
    %2547 = vmatpush.msra.mxu0 %v330
    %2548 = vmatmul.f32.gmra.mxu0 %v130
    %v2549 = vpop.f32.mrf.mxu0
    %v2550 = vadd.f32 %v2530, %v2549
    %2551 = vdwg.mxu0
    %2552 = vmatpush.msra.mxu0 %v516
    %2553 = vmatpush.msra.mxu0 %v510
    %2554 = vmatpush.msra.mxu0 %v504
    %2555 = vmatpush.msra.mxu0 %v498
    %2556 = vmatpush.msra.mxu0 %v492
    %2557 = vmatpush.msra.mxu0 %v486
    %2558 = vmatpush.msra.mxu0 %v480
    %2559 = vmatpush.msra.mxu0 %v474
    %2560 = vmatpush.msra.mxu0 %v468
    %2561 = vmatpush.msra.mxu0 %v462
    %2562 = vmatpush.msra.mxu0 %v456
    %2563 = vmatpush.msra.mxu0 %v450
    %2564 = vmatpush.msra.mxu0 %v444
    %2565 = vmatpush.msra.mxu0 %v438
    %2566 = vmatpush.msra.mxu0 %v432
    %2567 = vmatpush.msra.mxu0 %v426
    %2568 = vmatmul.f32.gmra.mxu0 %v131
    %v2569 = vpop.f32.mrf.mxu0
    %v2570 = vadd.f32 %v2550, %v2569
    %2571 = vdwg.mxu0
    %2572 = vmatpush.msra.mxu0 %v612
    %2573 = vmatpush.msra.mxu0 %v606
    %2574 = vmatpush.msra.mxu0 %v600
    %2575 = vmatpush.msra.mxu0 %v594
    %2576 = vmatpush.msra.mxu0 %v588
    %2577 = vmatpush.msra.mxu0 %v582
    %2578 = vmatpush.msra.mxu0 %v576
    %2579 = vmatpush.msra.mxu0 %v570
    %2580 = vmatpush.msra.mxu0 %v564
    %2581 = vmatpush.msra.mxu0 %v558
    %2582 = vmatpush.msra.mxu0 %v552
    %2583 = vmatpush.msra.mxu0 %v546
    %2584 = vmatpush.msra.mxu0 %v540
    %2585 = vmatpush.msra.mxu0 %v534
    %2586 = vmatpush.msra.mxu0 %v528
    %2587 = vmatpush.msra.mxu0 %v522
    %2588 = vmatmul.f32.gmra.mxu0 %v132
    %v2589 = vpop.f32.mrf.mxu0
    %v2590 = vadd.f32 %v2570, %v2589
    %2591 = vdwg.mxu0
    %2592 = vmatpush.msra.mxu0 %v708
    %2593 = vmatpush.msra.mxu0 %v702
    %2594 = vmatpush.msra.mxu0 %v696
    %2595 = vmatpush.msra.mxu0 %v690
    %2596 = vmatpush.msra.mxu0 %v684
    %2597 = vmatpush.msra.mxu0 %v678
    %2598 = vmatpush.msra.mxu0 %v672
    %2599 = vmatpush.msra.mxu0 %v666
    %2600 = vmatpush.msra.mxu0 %v660
    %2601 = vmatpush.msra.mxu0 %v654
    %2602 = vmatpush.msra.mxu0 %v648
    %2603 = vmatpush.msra.mxu0 %v642
    %2604 = vmatpush.msra.mxu0 %v636
    %2605 = vmatpush.msra.mxu0 %v630
    %2606 = vmatpush.msra.mxu0 %v624
    %2607 = vmatpush.msra.mxu0 %v618
    %2608 = vmatmul.f32.gmra.mxu0 %v133
    %v2609 = vpop.f32.mrf.mxu0
    %v2610 = vadd.f32 %v2590, %v2609
    %2611 = vdwg.mxu0
    %2612 = vmatpush.msra.mxu0 %v229
    %2613 = vmatpush.msra.mxu0 %v223
    %2614 = vmatpush.msra.mxu0 %v217
    %2615 = vmatpush.msra.mxu0 %v211
    %2616 = vmatpush.msra.mxu0 %v205
    %2617 = vmatpush.msra.mxu0 %v199
    %2618 = vmatpush.msra.mxu0 %v193
    %2619 = vmatpush.msra.mxu0 %v187
    %2620 = vmatpush.msra.mxu0 %v181
    %2621 = vmatpush.msra.mxu0 %v175
    %2622 = vmatpush.msra.mxu0 %v169
    %2623 = vmatpush.msra.mxu0 %v163
    %2624 = vmatpush.msra.mxu0 %v157
    %2625 = vmatpush.msra.mxu0 %v151
    %2626 = vmatpush.msra.mxu0 %v145
    %2627 = vmatpush.msra.mxu0 %v139
    %2628 = vmatmul.f32.gmra.mxu0 %v128
    %v2629 = vpop.f32.mrf.mxu0
    %v2630 = vadd.f32 %v2010, %v2629
    %2631 = vdwg.mxu0
    %2632 = vmatpush.msra.mxu0 %v325
    %2633 = vmatpush.msra.mxu0 %v319
    %2634 = vmatpush.msra.mxu0 %v313
    %2635 = vmatpush.msra.mxu0 %v307
    %2636 = vmatpush.msra.mxu0 %v301
    %2637 = vmatpush.msra.mxu0 %v295
    %2638 = vmatpush.msra.mxu0 %v289
    %2639 = vmatpush.msra.mxu0 %v283
    %2640 = vmatpush.msra.mxu0 %v277
    %2641 = vmatpush.msra.mxu0 %v271
    %2642 = vmatpush.msra.mxu0 %v265
    %2643 = vmatpush.msra.mxu0 %v259
    %2644 = vmatpush.msra.mxu0 %v253
    %2645 = vmatpush.msra.mxu0 %v247
    %2646 = vmatpush.msra.mxu0 %v241
    %2647 = vmatpush.msra.mxu0 %v235
    %2648 = vmatmul.f32.gmra.mxu0 %v129
    %v2649 = vpop.f32.mrf.mxu0
    %v2650 = vadd.f32 %v2630, %v2649
    %2651 = vdwg.mxu0
    %2652 = vmatpush.msra.mxu0 %v421
    %2653 = vmatpush.msra.mxu0 %v415
    %2654 = vmatpush.msra.mxu0 %v409
    %2655 = vmatpush.msra.mxu0 %v403
    %2656 = vmatpush.msra.mxu0 %v397
    %2657 = vmatpush.msra.mxu0 %v391
    %2658 = vmatpush.msra.mxu0 %v385
    %2659 = vmatpush.msra.mxu0 %v379
    %2660 = vmatpush.msra.mxu0 %v373
    %2661 = vmatpush.msra.mxu0 %v367
    %2662 = vmatpush.msra.mxu0 %v361
    %2663 = vmatpush.msra.mxu0 %v355
    %2664 = vmatpush.msra.mxu0 %v349
    %2665 = vmatpush.msra.mxu0 %v343
    %2666 = vmatpush.msra.mxu0 %v337
    %2667 = vmatpush.msra.mxu0 %v331
    %2668 = vmatmul.f32.gmra.mxu0 %v130
    %v2669 = vpop.f32.mrf.mxu0
    %v2670 = vadd.f32 %v2650, %v2669
    %2671 = vdwg.mxu0
    %2672 = vmatpush.msra.mxu0 %v517
    %2673 = vmatpush.msra.mxu0 %v511
    %2674 = vmatpush.msra.mxu0 %v505
    %2675 = vmatpush.msra.mxu0 %v499
    %2676 = vmatpush.msra.mxu0 %v493
    %2677 = vmatpush.msra.mxu0 %v487
    %2678 = vmatpush.msra.mxu0 %v481
    %2679 = vmatpush.msra.mxu0 %v475
    %2680 = vmatpush.msra.mxu0 %v469
    %2681 = vmatpush.msra.mxu0 %v463
    %2682 = vmatpush.msra.mxu0 %v457
    %2683 = vmatpush.msra.mxu0 %v451
    %2684 = vmatpush.msra.mxu0 %v445
    %2685 = vmatpush.msra.mxu0 %v439
    %2686 = vmatpush.msra.mxu0 %v433
    %2687 = vmatpush.msra.mxu0 %v427
    %2688 = vmatmul.f32.gmra.mxu0 %v131
    %v2689 = vpop.f32.mrf.mxu0
    %v2690 = vadd.f32 %v2670, %v2689
    %2691 = vdwg.mxu0
    %2692 = vmatpush.msra.mxu0 %v613
    %2693 = vmatpush.msra.mxu0 %v607
    %2694 = vmatpush.msra.mxu0 %v601
    %2695 = vmatpush.msra.mxu0 %v595
    %2696 = vmatpush.msra.mxu0 %v589
    %2697 = vmatpush.msra.mxu0 %v583
    %2698 = vmatpush.msra.mxu0 %v577
    %2699 = vmatpush.msra.mxu0 %v571
    %2700 = vmatpush.msra.mxu0 %v565
    %2701 = vmatpush.msra.mxu0 %v559
    %2702 = vmatpush.msra.mxu0 %v553
    %2703 = vmatpush.msra.mxu0 %v547
    %2704 = vmatpush.msra.mxu0 %v541
    %2705 = vmatpush.msra.mxu0 %v535
    %2706 = vmatpush.msra.mxu0 %v529
    %2707 = vmatpush.msra.mxu0 %v523
    %2708 = vmatmul.f32.gmra.mxu0 %v132
    %v2709 = vpop.f32.mrf.mxu0
    %v2710 = vadd.f32 %v2690, %v2709
    %2711 = vdwg.mxu0
    %2712 = vmatpush.msra.mxu0 %v709
    %2713 = vmatpush.msra.mxu0 %v703
    %2714 = vmatpush.msra.mxu0 %v697
    %2715 = vmatpush.msra.mxu0 %v691
    %2716 = vmatpush.msra.mxu0 %v685
    %2717 = vmatpush.msra.mxu0 %v679
    %2718 = vmatpush.msra.mxu0 %v673
    %2719 = vmatpush.msra.mxu0 %v667
    %2720 = vmatpush.msra.mxu0 %v661
    %2721 = vmatpush.msra.mxu0 %v655
    %2722 = vmatpush.msra.mxu0 %v649
    %2723 = vmatpush.msra.mxu0 %v643
    %2724 = vmatpush.msra.mxu0 %v637
    %2725 = vmatpush.msra.mxu0 %v631
    %2726 = vmatpush.msra.mxu0 %v625
    %2727 = vmatpush.msra.mxu0 %v619
    %2728 = vmatmul.f32.gmra.mxu0 %v133
    %v2729 = vpop.f32.mrf.mxu0
    %v2730 = vadd.f32 %v2710, %v2729
    %2731 = vdwg.mxu0
    %v2732 = vld [vmem:[#allocation10] sm:$0x3f]
    %v2734 = vperm.slane %v2732, 0
    %v2735 = vperm.slane %v2732, 1
    %v2736 = vperm.slane %v2732, 2
    %v2737 = vperm.slane %v2732, 3
    %v2738 = vperm.slane %v2732, 4
    %v2739 = vperm.slane %v2732, 5
    %v2746 = vadd.f32 %v2130, %v2734
    %v2747 = vadd.f32 %v2250, %v2735
    %v2748 = vadd.f32 %v2370, %v2736
    %v2749 = vadd.f32 %v2490, %v2737
    %v2750 = vadd.f32 %v2610, %v2738
    %v2751 = vadd.f32 %v2730, %v2739
    %v2752 = vmax.f32 %v2746, 0.0
    %v2753 = vmax.f32 %v2747, 0.0
    %v2754 = vmax.f32 %v2748, 0.0
    %v2755 = vmax.f32 %v2749, 0.0
    %v2756 = vmax.f32 %v2750, 0.0
    %v2757 = vmax.f32 %v2751, 0.0
    %v2758 = vld [vmem:[#allocation11] sm:$0xff]
    %v2759 = vld [vmem:[#allocation11 + $0x8] sm:$0xff]
    %v2760 = vld [vmem:[#allocation11 + $0x10] sm:$0xff]
    %v2761 = vld [vmem:[#allocation11 + $0x18] sm:$0xff]
    %v2762 = vld [vmem:[#allocation11 + $0x20] sm:$0xff]
    %v2763 = vld [vmem:[#allocation11 + $0x28] sm:$0xff]
    %v2764 = vld [vmem:[#allocation11 + $0x30] sm:$0xff]
    %v2765 = vld [vmem:[#allocation11 + $0x38] sm:$0xff]
    %v2766 = vld [vmem:[#allocation11 + $0x40] sm:$0xff]
    %v2767 = vld [vmem:[#allocation11 + $0x48] sm:$0xff]
    %v2768 = vld [vmem:[#allocation11 + $0x50] sm:$0xff]
    %v2769 = vld [vmem:[#allocation11 + $0x58] sm:$0xff]
    %v2770 = vld [vmem:[#allocation11 + $0x60] sm:$0xff]
    %v2771 = vld [vmem:[#allocation11 + $0x68] sm:$0xff]
    %v2772 = vld [vmem:[#allocation11 + $0x70] sm:$0xff]
    %v2773 = vld [vmem:[#allocation11 + $0x78] sm:$0xff]
    %v2774 = vld [vmem:[#allocation11 + $0x80] sm:$0xff]
    %v2775 = vld [vmem:[#allocation11 + $0x88] sm:$0xff]
    %v2776 = vld [vmem:[#allocation11 + $0x90] sm:$0xff]
    %v2777 = vld [vmem:[#allocation11 + $0x98] sm:$0xff]
    %v2778 = vld [vmem:[#allocation11 + $0xa0] sm:$0xff]
    %v2779 = vld [vmem:[#allocation11 + $0xa8] sm:$0xff]
    %v2780 = vld [vmem:[#allocation11 + $0xb0] sm:$0xff]
    %v2781 = vld [vmem:[#allocation11 + $0xb8] sm:$0xff]
    %v2782 = vld [vmem:[#allocation11 + $0xc0] sm:$0xff]
    %v2783 = vld [vmem:[#allocation11 + $0xc8] sm:$0xff]
    %v2784 = vld [vmem:[#allocation11 + $0xd0] sm:$0xff]
    %v2785 = vld [vmem:[#allocation11 + $0xd8] sm:$0xff]
    %v2786 = vld [vmem:[#allocation11 + $0xe0] sm:$0xff]
    %v2787 = vld [vmem:[#allocation11 + $0xe8] sm:$0xff]
    %v2788 = vld [vmem:[#allocation11 + $0xf0] sm:$0xff]
    %v2789 = vld [vmem:[#allocation11 + $0xf8] sm:$0xff]
    %v2790 = vld [vmem:[#allocation11 + $0x100] sm:$0xff]
    %v2791 = vld [vmem:[#allocation11 + $0x108] sm:$0xff]
    %v2792 = vld [vmem:[#allocation11 + $0x110] sm:$0xff]
    %v2793 = vld [vmem:[#allocation11 + $0x118] sm:$0xff]
    %v2794 = vld [vmem:[#allocation11 + $0x120] sm:$0xff]
    %v2795 = vld [vmem:[#allocation11 + $0x128] sm:$0xff]
    %v2796 = vld [vmem:[#allocation11 + $0x130] sm:$0xff]
    %v2797 = vld [vmem:[#allocation11 + $0x138] sm:$0xff]
    %v2798 = vld [vmem:[#allocation11 + $0x140] sm:$0xff]
    %v2799 = vld [vmem:[#allocation11 + $0x148] sm:$0xff]
    %v2800 = vld [vmem:[#allocation11 + $0x150] sm:$0xff]
    %v2801 = vld [vmem:[#allocation11 + $0x158] sm:$0xff]
    %v2802 = vld [vmem:[#allocation11 + $0x160] sm:$0xff]
    %v2803 = vld [vmem:[#allocation11 + $0x168] sm:$0xff]
    %v2804 = vld [vmem:[#allocation11 + $0x170] sm:$0xff]
    %v2805 = vld [vmem:[#allocation11 + $0x178] sm:$0xff]
    %v2806 = vld [vmem:[#allocation11 + $0x180] sm:$0xff]
    %v2807 = vld [vmem:[#allocation11 + $0x188] sm:$0xff]
    %v2808 = vld [vmem:[#allocation11 + $0x190] sm:$0xff]
    %v2809 = vld [vmem:[#allocation11 + $0x198] sm:$0xff]
    %v2810 = vld [vmem:[#allocation11 + $0x1a0] sm:$0xff]
    %v2811 = vld [vmem:[#allocation11 + $0x1a8] sm:$0xff]
    %v2812 = vld [vmem:[#allocation11 + $0x1b0] sm:$0xff]
    %v2813 = vld [vmem:[#allocation11 + $0x1b8] sm:$0xff]
    %v2814 = vld [vmem:[#allocation11 + $0x1c0] sm:$0xff]
    %v2815 = vld [vmem:[#allocation11 + $0x1c8] sm:$0xff]
    %v2816 = vld [vmem:[#allocation11 + $0x1d0] sm:$0xff]
    %v2817 = vld [vmem:[#allocation11 + $0x1d8] sm:$0xff]
    %v2818 = vld [vmem:[#allocation11 + $0x1e0] sm:$0xff]
    %v2819 = vld [vmem:[#allocation11 + $0x1e8] sm:$0xff]
    %v2820 = vld [vmem:[#allocation11 + $0x1f0] sm:$0xff]
    %v2821 = vld [vmem:[#allocation11 + $0x1f8] sm:$0xff]
    %v2822 = vld [vmem:[#allocation11 + $0x200] sm:$0xff]
    %v2823 = vld [vmem:[#allocation11 + $0x208] sm:$0xff]
    %v2824 = vld [vmem:[#allocation11 + $0x210] sm:$0xff]
    %v2825 = vld [vmem:[#allocation11 + $0x218] sm:$0xff]
    %v2826 = vld [vmem:[#allocation11 + $0x220] sm:$0xff]
    %v2827 = vld [vmem:[#allocation11 + $0x228] sm:$0xff]
    %v2828 = vld [vmem:[#allocation11 + $0x230] sm:$0xff]
    %v2829 = vld [vmem:[#allocation11 + $0x238] sm:$0xff]
    %v2830 = vld [vmem:[#allocation11 + $0x240] sm:$0xff]
    %v2831 = vld [vmem:[#allocation11 + $0x248] sm:$0xff]
    %v2832 = vld [vmem:[#allocation11 + $0x250] sm:$0xff]
    %v2833 = vld [vmem:[#allocation11 + $0x258] sm:$0xff]
    %v2834 = vld [vmem:[#allocation11 + $0x260] sm:$0xff]
    %v2835 = vld [vmem:[#allocation11 + $0x268] sm:$0xff]
    %v2836 = vld [vmem:[#allocation11 + $0x270] sm:$0xff]
    %v2837 = vld [vmem:[#allocation11 + $0x278] sm:$0xff]
    %v2838 = vld [vmem:[#allocation11 + $0x280] sm:$0xff]
    %v2839 = vld [vmem:[#allocation11 + $0x288] sm:$0xff]
    %v2840 = vld [vmem:[#allocation11 + $0x290] sm:$0xff]
    %v2841 = vld [vmem:[#allocation11 + $0x298] sm:$0xff]
    %v2842 = vld [vmem:[#allocation11 + $0x2a0] sm:$0xff]
    %v2843 = vld [vmem:[#allocation11 + $0x2a8] sm:$0xff]
    %v2844 = vld [vmem:[#allocation11 + $0x2b0] sm:$0xff]
    %v2845 = vld [vmem:[#allocation11 + $0x2b8] sm:$0xff]
    %v2846 = vld [vmem:[#allocation11 + $0x2c0] sm:$0xff]
    %v2847 = vld [vmem:[#allocation11 + $0x2c8] sm:$0xff]
    %v2848 = vld [vmem:[#allocation11 + $0x2d0] sm:$0xff]
    %v2849 = vld [vmem:[#allocation11 + $0x2d8] sm:$0xff]
    %v2850 = vld [vmem:[#allocation11 + $0x2e0] sm:$0xff]
    %v2851 = vld [vmem:[#allocation11 + $0x2e8] sm:$0xff]
    %v2852 = vld [vmem:[#allocation11 + $0x2f0] sm:$0xff]
    %v2853 = vld [vmem:[#allocation11 + $0x2f8] sm:$0xff]
    %v2854 = vld [vmem:[#allocation13] sm:$0x1]
    %v2856 = vperm.slane %v2854, 0
    %2858 = vmatpush.msra.mxu0 %v2773
    %2859 = vmatpush.msra.mxu0 %v2772
    %2860 = vmatpush.msra.mxu0 %v2771
    %2861 = vmatpush.msra.mxu0 %v2770
    %2862 = vmatpush.msra.mxu0 %v2769
    %2863 = vmatpush.msra.mxu0 %v2768
    %2864 = vmatpush.msra.mxu0 %v2767
    %2865 = vmatpush.msra.mxu0 %v2766
    %2866 = vmatpush.msra.mxu0 %v2765
    %2867 = vmatpush.msra.mxu0 %v2764
    %2868 = vmatpush.msra.mxu0 %v2763
    %2869 = vmatpush.msra.mxu0 %v2762
    %2870 = vmatpush.msra.mxu0 %v2761
    %2871 = vmatpush.msra.mxu0 %v2760
    %2872 = vmatpush.msra.mxu0 %v2759
    %2873 = vmatpush.msra.mxu0 %v2758
    %2874 = vmatmul.f32.gmra.mxu0 %v2752
    %v2875 = vpop.f32.mrf.mxu0
    %v2876 = vadd.f32 %v2856, %v2875
    %2877 = vdwg.mxu0
    %2878 = vmatpush.msra.mxu0 %v2789
    %2879 = vmatpush.msra.mxu0 %v2788
    %2880 = vmatpush.msra.mxu0 %v2787
    %2881 = vmatpush.msra.mxu0 %v2786
    %2882 = vmatpush.msra.mxu0 %v2785
    %2883 = vmatpush.msra.mxu0 %v2784
    %2884 = vmatpush.msra.mxu0 %v2783
    %2885 = vmatpush.msra.mxu0 %v2782
    %2886 = vmatpush.msra.mxu0 %v2781
    %2887 = vmatpush.msra.mxu0 %v2780
    %2888 = vmatpush.msra.mxu0 %v2779
    %2889 = vmatpush.msra.mxu0 %v2778
    %2890 = vmatpush.msra.mxu0 %v2777
    %2891 = vmatpush.msra.mxu0 %v2776
    %2892 = vmatpush.msra.mxu0 %v2775
    %2893 = vmatpush.msra.mxu0 %v2774
    %2894 = vmatmul.f32.gmra.mxu0 %v2753
    %v2895 = vpop.f32.mrf.mxu0
    %v2896 = vadd.f32 %v2876, %v2895
    %2897 = vdwg.mxu0
    %2898 = vmatpush.msra.mxu0 %v2805
    %2899 = vmatpush.msra.mxu0 %v2804
    %2900 = vmatpush.msra.mxu0 %v2803
    %2901 = vmatpush.msra.mxu0 %v2802
    %2902 = vmatpush.msra.mxu0 %v2801
    %2903 = vmatpush.msra.mxu0 %v2800
    %2904 = vmatpush.msra.mxu0 %v2799
    %2905 = vmatpush.msra.mxu0 %v2798
    %2906 = vmatpush.msra.mxu0 %v2797
    %2907 = vmatpush.msra.mxu0 %v2796
    %2908 = vmatpush.msra.mxu0 %v2795
    %2909 = vmatpush.msra.mxu0 %v2794
    %2910 = vmatpush.msra.mxu0 %v2793
    %2911 = vmatpush.msra.mxu0 %v2792
    %2912 = vmatpush.msra.mxu0 %v2791
    %2913 = vmatpush.msra.mxu0 %v2790
    %2914 = vmatmul.f32.gmra.mxu0 %v2754
    %v2915 = vpop.f32.mrf.mxu0
    %v2916 = vadd.f32 %v2896, %v2915
    %2917 = vdwg.mxu0
    %2918 = vmatpush.msra.mxu0 %v2821
    %2919 = vmatpush.msra.mxu0 %v2820
    %2920 = vmatpush.msra.mxu0 %v2819
    %2921 = vmatpush.msra.mxu0 %v2818
    %2922 = vmatpush.msra.mxu0 %v2817
    %2923 = vmatpush.msra.mxu0 %v2816
    %2924 = vmatpush.msra.mxu0 %v2815
    %2925 = vmatpush.msra.mxu0 %v2814
    %2926 = vmatpush.msra.mxu0 %v2813
    %2927 = vmatpush.msra.mxu0 %v2812
    %2928 = vmatpush.msra.mxu0 %v2811
    %2929 = vmatpush.msra.mxu0 %v2810
    %2930 = vmatpush.msra.mxu0 %v2809
    %2931 = vmatpush.msra.mxu0 %v2808
    %2932 = vmatpush.msra.mxu0 %v2807
    %2933 = vmatpush.msra.mxu0 %v2806
    %2934 = vmatmul.f32.gmra.mxu0 %v2755
    %v2935 = vpop.f32.mrf.mxu0
    %v2936 = vadd.f32 %v2916, %v2935
    %2937 = vdwg.mxu0
    %2938 = vmatpush.msra.mxu0 %v2837
    %2939 = vmatpush.msra.mxu0 %v2836
    %2940 = vmatpush.msra.mxu0 %v2835
    %2941 = vmatpush.msra.mxu0 %v2834
    %2942 = vmatpush.msra.mxu0 %v2833
    %2943 = vmatpush.msra.mxu0 %v2832
    %2944 = vmatpush.msra.mxu0 %v2831
    %2945 = vmatpush.msra.mxu0 %v2830
    %2946 = vmatpush.msra.mxu0 %v2829
    %2947 = vmatpush.msra.mxu0 %v2828
    %2948 = vmatpush.msra.mxu0 %v2827
    %2949 = vmatpush.msra.mxu0 %v2826
    %2950 = vmatpush.msra.mxu0 %v2825
    %2951 = vmatpush.msra.mxu0 %v2824
    %2952 = vmatpush.msra.mxu0 %v2823
    %2953 = vmatpush.msra.mxu0 %v2822
    %2954 = vmatmul.f32.gmra.mxu0 %v2756
    %v2955 = vpop.f32.mrf.mxu0
    %v2956 = vadd.f32 %v2936, %v2955
    %2957 = vdwg.mxu0
    %2958 = vmatpush.msra.mxu0 %v2853
    %2959 = vmatpush.msra.mxu0 %v2852
    %2960 = vmatpush.msra.mxu0 %v2851
    %2961 = vmatpush.msra.mxu0 %v2850
    %2962 = vmatpush.msra.mxu0 %v2849
    %2963 = vmatpush.msra.mxu0 %v2848
    %2964 = vmatpush.msra.mxu0 %v2847
    %2965 = vmatpush.msra.mxu0 %v2846
    %2966 = vmatpush.msra.mxu0 %v2845
    %2967 = vmatpush.msra.mxu0 %v2844
    %2968 = vmatpush.msra.mxu0 %v2843
    %2969 = vmatpush.msra.mxu0 %v2842
    %2970 = vmatpush.msra.mxu0 %v2841
    %2971 = vmatpush.msra.mxu0 %v2840
    %2972 = vmatpush.msra.mxu0 %v2839
    %2973 = vmatpush.msra.mxu0 %v2838
    %2974 = vmatmul.f32.gmra.mxu0 %v2757
    %v2975 = vpop.f32.mrf.mxu0
    %v2976 = vadd.f32 %v2956, %v2975
    %2977 = vdwg.mxu0
    %2978 = vst [vmem:[#allocation14] sm:$0xff] %v2976
    // Predicated region
    $region58: #{tpu_custom_call.1} parent=1 // pred_check
      _
    $region59: #{tpu_custom_call.1} parent=1 // pred_check_branch
      %2980 = sbr.rel (0) target = $region61
    $region60: #{tpu_custom_call.1} parent=1 // pred_region
      %2982 = vsyncadd [#allocation4], 0
      %s2984 = sshll.u32 [#allocation14], 4
      %s2985 = int_to_ptr.vmem [resolvable:$true] %s2984
      %s2986 = sshll.u32 %s7, 4
      %s2987 = int_to_ptr.hbm [resolvable:$true] %s2986
      %2989 = dma.vmem_to_hbm [thread:$0]  %s2985, 128, %s2987, [#allocation4]
    $region61: #{tpu_custom_call.1} parent=1 // pred_fallthru
      _
    // Predicated region
    $region62: #{tpu_custom_call.1} parent=1 // pred_check
      _
    $region63: #{tpu_custom_call.1} parent=1 // pred_check_branch
      %2991 = sbr.rel (0) target = $region65
    $region64: #{tpu_custom_call.1} parent=1 // pred_region
      %2993 = dma.done [#allocation4], 128
    $region65: #{tpu_custom_call.1} parent=1 // pred_fallthru
      _
    %2994 = vsyncpa [#allocation3], 1
    %2995 = vsyncpa [#allocation6], 1
    %2996 = vsyncpa [#allocation9], 1
    %2997 = vsyncpa [#allocation12], 1
    %2998 = vsyncpa [#allocation4], 1

</llo_original>
